<compile_context>
chip_gen: v6e
topology: v6e:2x2x1
jax: 0.10.0
libtpu: 0.0.40
codegen_flags: <defaults>
</compile_context>

<pallas_src>
import functools

import jax
import jax.numpy as jnp
from jax import lax
from jax.experimental import pallas as pl
from jax.experimental.pallas import tpu as pltpu


def _layernorm(x, g, b, eps=1e-6):
    # matches nn.LayerNorm(hidden_dim, eps=1e-06)
    mu = jnp.mean(x, axis=-1, keepdims=True)
    var = jnp.mean(jnp.square(x - mu), axis=-1, keepdims=True)
    return (x - mu) * lax.rsqrt(var + eps) * g + b


def _mm(a, b, contract):
    """2-D matmul with explicit contraction dims, f32 accumulation on the MXU."""
    return lax.dot_general(a, b, dimension_numbers=(contract, ((), ())),
                           preferred_element_type=jnp.float32)


# packed `small` rows: 0 ln1_g | 1 ln1_b | 2 bproj | 3 ln2_g | 4 ln2_b | 5 b2 | 6 b1 | 7 pad
def transformer_kernel(x_ref, small_ref, bqkv_ref, wqkv_ref, wproj_ref,
                       w1_ref, w2_ref, out_ref, attn_t_ref, *, heads, batch, seq):
    """One grid step = one layer, applied to the whole (B*N, C) residual stream.
    The residual stream lives in out_ref (resident across the depth grid axis)."""
    d = pl.program_id(0)
    bf16 = jnp.bfloat16

    BN, C = out_ref.shape                         # BN = batch * seq
    mlp = w1_ref.shape[-1]
    dh = C // heads
    scale = dh ** -0.5

    # Seed the residual stream with the input at the first layer.
    @pl.when(d == 0)
    def _():
        out_ref[...] = x_ref[...]

    x = out_ref[...]                              # (BN, C) f32 residual stream

    small = small_ref[0]                          # (8, Pmax) packed per-layer vectors
    ln1_g, ln1_b = small[0:1, :C], small[1:2, :C]
    bproj = small[2:3, :C]
    ln2_g, ln2_b = small[3:4, :C], small[4:5, :C]
    b2 = small[5:6, :C]
    b1 = small[6:7, :mlp]

    # ---------------- attention branch: x = proj(softmax(q k^T / sqrt(dh)) v) + x ------
    h1 = _layernorm(x, ln1_g, ln1_b)                                        # (BN, C) f32
    # qkv in transposed (3C, BN) layout so per-head slices are sublane-aligned.
    qkv_t = _mm(wqkv_ref[0], h1.astype(bf16), ((1,), (1,))) + bqkv_ref[0]   # (3C, BN) f32

    for b in range(batch):                        # static: lane offsets stay static
        col = b * seq
        for h in range(heads):                    # heads is small here; see TODO for pl.loop
            r = h * dh
            q = (qkv_t[r:r + dh, col:col + seq] * scale).astype(bf16)       # (dh, N)
            k = qkv_t[C + r:C + r + dh, col:col + seq].astype(bf16)         # (dh, N)
            v = qkv_t[2 * C + r:2 * C + r + dh, col:col + seq].astype(bf16)  # (dh, N)

            s = _mm(q, k, ((0,), (0,)))                                     # (N, N) f32
            s = s - jnp.max(s, axis=-1, keepdims=True)
            p = jnp.exp(s)
            # approx reciprocal deviates ~2^-12 relative from exact division (EUP slot).
            p = p * pl.reciprocal(jnp.sum(p, axis=-1, keepdims=True), approx=True)

            # head output, transposed: (dh, N); sublane-aligned write into the scratch.
            o_t = _mm(v, p.astype(bf16), ((1,), (1,)))
            attn_t_ref[r:r + dh, col:col + seq] = o_t

    # ONE projection matmul with K = C over all heads and batch rows.
    proj = _mm(attn_t_ref[...].astype(bf16), wproj_ref[0], ((0,), (0,)))    # (BN, C) f32
    x = x + proj + bproj

    # ---------------- MLP branch: x = fc2(gelu(fc1(norm2(x)))) + x  (dropout p=0) ------
    h2 = _layernorm(x, ln2_g, ln2_b).astype(bf16)
    z = _mm(h2, w1_ref[0], ((1,), (0,))) + b1                               # (BN, mlp) f32
    z = 0.5 * z * (1.0 + lax.erf(z * (2.0 ** -0.5)))                        # exact GELU
    y = _mm(z.astype(bf16), w2_ref[0], ((1,), (0,))) + b2                   # (BN, C) f32

    out_ref[...] = x + y


def transformer_forward(x, params, heads):
    """Run all `depth` TransformerBlocks in one pallas_call, grid = (depth,)."""
    B, N, C = x.shape
    depth = params["wqkv"].shape[0]
    mlp = params["w1"].shape[-1]
    assert C % heads == 0 and (C // heads) % 8 == 0, "dh must be a sublane multiple"
    BN = B * N

    x2 = x.reshape(BN, C)   # free layout-preserving reshape in the wrapper

    kernel = functools.partial(transformer_kernel, heads=heads, batch=B, seq=N)

    out2 = pl.pallas_call(
        kernel,
        out_shape=jax.ShapeDtypeStruct((BN, C), jnp.float32),
        grid_spec=pltpu.PrefetchScalarGridSpec(
            num_scalar_prefetch=0,
            grid=(depth,),                                   # depth only: weights DMA'd once
            in_specs=[
                pl.BlockSpec((BN, C), lambda d: (0, 0)),                    # x (read at d==0)
                pl.BlockSpec((1,) + params["small"].shape[1:], lambda d: (d, 0, 0)),
                pl.BlockSpec((1, 3 * C, 1), lambda d: (d, 0, 0)),           # qkv bias (column)
                pl.BlockSpec((1, 3 * C, C), lambda d: (d, 0, 0)),           # Wqkv (out, in)
                pl.BlockSpec((1, C, C), lambda d: (d, 0, 0)),               # Wproj (in, out)
                pl.BlockSpec((1, C, mlp), lambda d: (d, 0, 0)),             # W1 (in, out)
                pl.BlockSpec((1, mlp, C), lambda d: (d, 0, 0)),             # W2 (in, out)
            ],
            out_specs=pl.BlockSpec((BN, C), lambda d: (0, 0)),              # resident residual
            scratch_shapes=[pltpu.VMEM((C, BN), jnp.float32)],              # transposed attn out
        ),
        compiler_params=pltpu.CompilerParams(
            dimension_semantics=("arbitrary",),              # depth is sequential
            vmem_limit_bytes=48 * 1024 * 1024),              # v7x-safe; raise on v5e/v6e if needed
        input_output_aliases={0: 0},                         # x buffer reused for the output
    )(x2, params["small"], params["bqkv"], params["wqkv"],
      params["wproj"], params["w1"], params["w2"])

    return out2.reshape(B, N, C)


def init_block_params(key, hidden_dim, mlp_dim):
    C, M = hidden_dim, mlp_dim
    ks = jax.random.split(key, 8)
    s = 0.02
    f32, bf16 = jnp.float32, jnp.bfloat16
    return {
        "ln1_g": jnp.ones((C,), f32),
        "ln1_b": jnp.zeros((C,), f32),
        # qkv weight kept in PyTorch (out=3C, in=C) layout; bf16 for the MXU
        "wqkv": (s * jax.random.normal(ks[0], (3 * C, C))).astype(bf16),
        "bqkv": (s * jax.random.normal(ks[4], (3 * C,))).astype(f32),
        # remaining weights stored transposed (in, out) so the kernel does x @ W
        "wproj": (s * jax.random.normal(ks[1], (C, C))).astype(bf16),
        "bproj": (s * jax.random.normal(ks[5], (C,))).astype(f32),
        "ln2_g": jnp.ones((C,), f32),
        "ln2_b": jnp.zeros((C,), f32),
        "w1": (s * jax.random.normal(ks[2], (C, M))).astype(bf16),
        "b1": (s * jax.random.normal(ks[6], (M,))).astype(f32),
        "w2": (s * jax.random.normal(ks[3], (M, C))).astype(bf16),
        "b2": (s * jax.random.normal(ks[7], (C,))).astype(f32),
    }


def stack_layer_params(per_layer, hidden_dim, mlp_dim):
    """Stack per-layer params along depth and pack the small vectors into one array."""
    C, M = hidden_dim, mlp_dim
    pmax = max(C, M)

    def pad_row(v):
        v = v.astype(jnp.float32).reshape(-1)
        return jnp.pad(v, (0, pmax - v.shape[0]))

    def pack_small(p):
        rows = [p["ln1_g"], p["ln1_b"], p["bproj"], p["ln2_g"], p["ln2_b"],
                p["b2"], p["b1"], jnp.zeros((pmax,), jnp.float32)]
        return jnp.stack([pad_row(r) for r in rows], axis=0)      # (8, pmax)

    return {
        "small": jnp.stack([pack_small(p) for p in per_layer], axis=0),           # (D, 8, pmax)
        "bqkv": jnp.stack([p["bqkv"].reshape(3 * C, 1) for p in per_layer], 0),   # (D, 3C, 1)
        "wqkv": jnp.stack([p["wqkv"] for p in per_layer], 0),                     # (D, 3C, C)
        "wproj": jnp.stack([p["wproj"] for p in per_layer], 0),                   # (D, C, C)
        "w1": jnp.stack([p["w1"] for p in per_layer], 0),                         # (D, C, M)
        "w2": jnp.stack([p["w2"] for p in per_layer], 0),                         # (D, M, C)
    }


if __name__ == "__main__":
    # Small but lane-dense demo shapes: hidden/mlp multiples of 128, seq a multiple of 8.
    B, N, C = 2, 16, 128
    heads, mlp_dim, depth = 4, 256, 2

    key = jax.random.PRNGKey(0)
    kx, *kblocks = jax.random.split(key, depth + 1)
    x = jax.random.normal(kx, (B, N, C), dtype=jnp.float32)

    per_layer = [init_block_params(kb, C, mlp_dim) for kb in kblocks]
    params = stack_layer_params(per_layer, C, mlp_dim)

    fwd = jax.jit(transformer_forward, static_argnums=(2,))
    out = fwd(x, params, heads)
    jax.block_until_ready(out)
    assert out.shape == (B, N, C) and out.dtype == jnp.float32
    print("KERNEL_OK")
</pallas_src>

<mosaic_0001>
module attributes {stable_mosaic.version = 11 : i64} {
  func.func @transformer_kernel(%arg0: i32, %arg1: memref<32x128xf32, #tpu.memory_space<vmem>>, %arg2: memref<1x8x256xf32, #tpu.memory_space<vmem>>, %arg3: memref<1x384x1xf32, #tpu.memory_space<vmem>>, %arg4: memref<1x384x128xbf16, #tpu.memory_space<vmem>>, %arg5: memref<1x128x128xbf16, #tpu.memory_space<vmem>>, %arg6: memref<1x128x256xbf16, #tpu.memory_space<vmem>>, %arg7: memref<1x256x128xbf16, #tpu.memory_space<vmem>>, %arg8: memref<32x128xf32, #tpu.memory_space<vmem>>, %arg9: memref<128x32xf32, #tpu.memory_space<vmem>>) attributes {dimension_semantics = [#tpu.dimension_semantics<arbitrary>], iteration_bounds = array<i64: 2>, scalar_prefetch = 0 : i64, scratch_operands = 1 : i64, tpu.core_type = #tpu.core_type<tc>, window_params = [{pipeline_mode = #tpu.pipeline_mode<synchronous>, transform_indices = @transform_0, window_bounds = array<i64: 32, 128>}, {transform_indices = @transform_1, window_bounds = array<i64: 1, 8, 256>}, {transform_indices = @transform_2, window_bounds = array<i64: 1, 384, 1>}, {transform_indices = @transform_3, window_bounds = array<i64: 1, 384, 128>}, {transform_indices = @transform_4, window_bounds = array<i64: 1, 128, 128>}, {transform_indices = @transform_5, window_bounds = array<i64: 1, 128, 256>}, {transform_indices = @transform_6, window_bounds = array<i64: 1, 256, 128>}, {pipeline_mode = #tpu.pipeline_mode<synchronous>, transform_indices = @transform_7, window_bounds = array<i64: 32, 128>}]} {
    %c0_i32 = arith.constant 0 : i32
    %0 = arith.cmpi eq, %arg0, %c0_i32 : i32
    %1 = arith.extui %0 : i1 to i32
    %c0_i32_0 = arith.constant 0 : i32
    %2 = arith.cmpi ne, %1, %c0_i32_0 : i32
    scf.if %2 {
      %c0_92 = arith.constant 0 : index
      %c0_93 = arith.constant 0 : index
      %271 = vector.load %arg1[%c0_92, %c0_93] : memref<32x128xf32, #tpu.memory_space<vmem>>, vector<32x128xf32>
      %c0_94 = arith.constant 0 : index
      %c0_95 = arith.constant 0 : index
      %272 = vector.load %arg8[%c0_94, %c0_95] : memref<32x128xf32, #tpu.memory_space<vmem>>, vector<32x128xf32>
      tpu.vector_store %arg8[%c0_94, %c0_95], %271 {strides = array<i32>} : memref<32x128xf32, #tpu.memory_space<vmem>>, vector<32x128xf32>,
    } else {
    }
    %c0 = arith.constant 0 : index
    %c0_1 = arith.constant 0 : index
    %3 = vector.load %arg8[%c0, %c0_1] : memref<32x128xf32, #tpu.memory_space<vmem>>, vector<32x128xf32>
    %c0_2 = arith.constant 0 : index
    %c0_3 = arith.constant 0 : index
    %c0_4 = arith.constant 0 : index
    %4 = vector.load %arg2[%c0_2, %c0_3, %c0_4] : memref<1x8x256xf32, #tpu.memory_space<vmem>>, vector<1x8x256xf32>
    %5 = vector.shape_cast %4 : vector<1x8x256xf32> to vector<8x256xf32>
    %6 = vector.extract_strided_slice %5 {offsets = [0, 0], sizes = [1, 128], strides = [1, 1]} : vector<8x256xf32> to vector<1x128xf32>
    %7 = vector.extract_strided_slice %5 {offsets = [1, 0], sizes = [1, 128], strides = [1, 1]} : vector<8x256xf32> to vector<1x128xf32>
    %8 = vector.extract_strided_slice %5 {offsets = [2, 0], sizes = [1, 128], strides = [1, 1]} : vector<8x256xf32> to vector<1x128xf32>
    %9 = vector.extract_strided_slice %5 {offsets = [3, 0], sizes = [1, 128], strides = [1, 1]} : vector<8x256xf32> to vector<1x128xf32>
    %10 = vector.extract_strided_slice %5 {offsets = [4, 0], sizes = [1, 128], strides = [1, 1]} : vector<8x256xf32> to vector<1x128xf32>
    %11 = vector.extract_strided_slice %5 {offsets = [5, 0], sizes = [1, 128], strides = [1, 1]} : vector<8x256xf32> to vector<1x128xf32>
    %12 = vector.extract_strided_slice %5 {offsets = [6, 0], sizes = [1, 256], strides = [1, 1]} : vector<8x256xf32> to vector<1x256xf32>
    %cst = arith.constant dense<0.000000e+00> : vector<32xf32>
    %13 = vector.multi_reduction <add>, %3, %cst [1] : vector<32x128xf32> to vector<32xf32>
    %14 = vector.shape_cast %13 : vector<32xf32> to vector<32x1xf32>
    %cst_5 = arith.constant 1.280000e+02 : f32
    %15 = vector.broadcast %cst_5 : f32 to vector<32x1xf32>
    %16 = arith.divf %14, %15 : vector<32x1xf32>
    %17 = vector.broadcast %16 : vector<32x1xf32> to vector<32x128xf32>
    %18 = arith.subf %3, %17 : vector<32x128xf32>
    %19 = arith.mulf %18, %18 : vector<32x128xf32>
    %cst_6 = arith.constant dense<0.000000e+00> : vector<32xf32>
    %20 = vector.multi_reduction <add>, %19, %cst_6 [1] : vector<32x128xf32> to vector<32xf32>
    %21 = vector.shape_cast %20 : vector<32xf32> to vector<32x1xf32>
    %cst_7 = arith.constant 1.280000e+02 : f32
    %22 = vector.broadcast %cst_7 : f32 to vector<32x1xf32>
    %23 = arith.divf %21, %22 : vector<32x1xf32>
    %24 = vector.broadcast %16 : vector<32x1xf32> to vector<32x128xf32>
    %25 = arith.subf %3, %24 : vector<32x128xf32>
    %cst_8 = arith.constant 9.99999997E-7 : f32
    %26 = vector.broadcast %cst_8 : f32 to vector<32x1xf32>
    %27 = arith.addf %23, %26 : vector<32x1xf32>
    %28 = math.rsqrt %27 : vector<32x1xf32>
    %29 = vector.broadcast %28 : vector<32x1xf32> to vector<32x128xf32>
    %30 = arith.mulf %25, %29 : vector<32x128xf32>
    %31 = vector.broadcast %6 : vector<1x128xf32> to vector<32x128xf32>
    %32 = arith.mulf %30, %31 : vector<32x128xf32>
    %33 = vector.broadcast %7 : vector<1x128xf32> to vector<32x128xf32>
    %34 = arith.addf %32, %33 : vector<32x128xf32>
    %c0_9 = arith.constant 0 : index
    %c0_10 = arith.constant 0 : index
    %c0_11 = arith.constant 0 : index
    %35 = vector.load %arg4[%c0_9, %c0_10, %c0_11] : memref<1x384x128xbf16, #tpu.memory_space<vmem>>, vector<1x384x128xbf16>
    %36 = vector.shape_cast %35 : vector<1x384x128xbf16> to vector<384x128xbf16>
    %37 = arith.truncf %34 : vector<32x128xf32> to vector<32x128xbf16>
    %cst_12 = arith.constant dense<0.000000e+00> : vector<384x32xf32>
    %38 = tpu.matmul %36, %37, %cst_12 {dimension_numbers = #tpu.dot_dimension_numbers<[1], [1], [0], [0], [0, 0, 1, 0], [], []>} : vector<384x128xbf16>, vector<32x128xbf16>, vector<384x32xf32> -> vector<384x32xf32>
    %c0_13 = arith.constant 0 : index
    %c0_14 = arith.constant 0 : index
    %c0_15 = arith.constant 0 : index
    %39 = vector.load %arg3[%c0_13, %c0_14, %c0_15] : memref<1x384x1xf32, #tpu.memory_space<vmem>>, vector<1x384x1xf32>
    %40 = vector.shape_cast %39 : vector<1x384x1xf32> to vector<384x1xf32>
    %41 = vector.broadcast %40 : vector<384x1xf32> to vector<384x32xf32>
    %42 = arith.addf %38, %41 : vector<384x32xf32>
    %43 = vector.extract_strided_slice %42 {offsets = [0, 0], sizes = [32, 16], strides = [1, 1]} : vector<384x32xf32> to vector<32x16xf32>
    %cst_16 = arith.constant 0.176776692 : f32
    %44 = vector.broadcast %cst_16 : f32 to vector<32x16xf32>
    %45 = arith.mulf %43, %44 : vector<32x16xf32>
    %46 = arith.truncf %45 : vector<32x16xf32> to vector<32x16xbf16>
    %47 = vector.extract_strided_slice %42 {offsets = [128, 0], sizes = [32, 16], strides = [1, 1]} : vector<384x32xf32> to vector<32x16xf32>
    %48 = arith.truncf %47 : vector<32x16xf32> to vector<32x16xbf16>
    %49 = vector.extract_strided_slice %42 {offsets = [256, 0], sizes = [32, 16], strides = [1, 1]} : vector<384x32xf32> to vector<32x16xf32>
    %50 = arith.truncf %49 : vector<32x16xf32> to vector<32x16xbf16>
    %cst_17 = arith.constant dense<0.000000e+00> : vector<16x16xf32>
    %51 = tpu.matmul %46, %48, %cst_17 {dimension_numbers = #tpu.dot_dimension_numbers<[0], [0], [1], [1], [0, 1, 1, 1], [], []>} : vector<32x16xbf16>, vector<32x16xbf16>, vector<16x16xf32> -> vector<16x16xf32>
    %cst_18 = arith.constant dense<0xFF800000> : vector<16xf32>
    %52 = vector.multi_reduction <maximumf>, %51, %cst_18 [1] : vector<16x16xf32> to vector<16xf32>
    %53 = vector.shape_cast %52 : vector<16xf32> to vector<16x1xf32>
    %54 = vector.broadcast %53 : vector<16x1xf32> to vector<16x16xf32>
    %55 = arith.subf %51, %54 : vector<16x16xf32>
    %56 = math.exp %55 : vector<16x16xf32>
    %cst_19 = arith.constant dense<0.000000e+00> : vector<16xf32>
    %57 = vector.multi_reduction <add>, %56, %cst_19 [1] : vector<16x16xf32> to vector<16xf32>
    %58 = vector.shape_cast %57 : vector<16xf32> to vector<16x1xf32>
    %59 = tpu.reciprocal %58 {approx = true} : vector<16x1xf32> -> vector<16x1xf32>
    %60 = vector.broadcast %59 : vector<16x1xf32> to vector<16x16xf32>
    %61 = arith.mulf %56, %60 : vector<16x16xf32>
    %62 = arith.truncf %61 : vector<16x16xf32> to vector<16x16xbf16>
    %cst_20 = arith.constant dense<0.000000e+00> : vector<32x16xf32>
    %63 = tpu.matmul %50, %62, %cst_20 {dimension_numbers = #tpu.dot_dimension_numbers<[1], [1], [0], [0], [0, 0, 1, 0], [], []>} : vector<32x16xbf16>, vector<16x16xbf16>, vector<32x16xf32> -> vector<32x16xf32>
    %c0_21 = arith.constant 0 : index
    %c0_22 = arith.constant 0 : index
    %64 = vector.load %arg9[%c0_21, %c0_22] : memref<128x32xf32, #tpu.memory_space<vmem>>, vector<32x16xf32>
    tpu.vector_store %arg9[%c0_21, %c0_22], %63 {strides = array<i32>} : memref<128x32xf32, #tpu.memory_space<vmem>>, vector<32x16xf32>,
    %65 = vector.extract_strided_slice %42 {offsets = [32, 0], sizes = [32, 16], strides = [1, 1]} : vector<384x32xf32> to vector<32x16xf32>
    %cst_23 = arith.constant 0.176776692 : f32
    %66 = vector.broadcast %cst_23 : f32 to vector<32x16xf32>
    %67 = arith.mulf %65, %66 : vector<32x16xf32>
    %68 = arith.truncf %67 : vector<32x16xf32> to vector<32x16xbf16>
    %69 = vector.extract_strided_slice %42 {offsets = [160, 0], sizes = [32, 16], strides = [1, 1]} : vector<384x32xf32> to vector<32x16xf32>
    %70 = arith.truncf %69 : vector<32x16xf32> to vector<32x16xbf16>
    %71 = vector.extract_strided_slice %42 {offsets = [288, 0], sizes = [32, 16], strides = [1, 1]} : vector<384x32xf32> to vector<32x16xf32>
    %72 = arith.truncf %71 : vector<32x16xf32> to vector<32x16xbf16>
    %cst_24 = arith.constant dense<0.000000e+00> : vector<16x16xf32>
    %73 = tpu.matmul %68, %70, %cst_24 {dimension_numbers = #tpu.dot_dimension_numbers<[0], [0], [1], [1], [0, 1, 1, 1], [], []>} : vector<32x16xbf16>, vector<32x16xbf16>, vector<16x16xf32> -> vector<16x16xf32>
    %cst_25 = arith.constant dense<0xFF800000> : vector<16xf32>
    %74 = vector.multi_reduction <maximumf>, %73, %cst_25 [1] : vector<16x16xf32> to vector<16xf32>
    %75 = vector.shape_cast %74 : vector<16xf32> to vector<16x1xf32>
    %76 = vector.broadcast %75 : vector<16x1xf32> to vector<16x16xf32>
    %77 = arith.subf %73, %76 : vector<16x16xf32>
    %78 = math.exp %77 : vector<16x16xf32>
    %cst_26 = arith.constant dense<0.000000e+00> : vector<16xf32>
    %79 = vector.multi_reduction <add>, %78, %cst_26 [1] : vector<16x16xf32> to vector<16xf32>
    %80 = vector.shape_cast %79 : vector<16xf32> to vector<16x1xf32>
    %81 = tpu.reciprocal %80 {approx = true} : vector<16x1xf32> -> vector<16x1xf32>
    %82 = vector.broadcast %81 : vector<16x1xf32> to vector<16x16xf32>
    %83 = arith.mulf %78, %82 : vector<16x16xf32>
    %84 = arith.truncf %83 : vector<16x16xf32> to vector<16x16xbf16>
    %cst_27 = arith.constant dense<0.000000e+00> : vector<32x16xf32>
    %85 = tpu.matmul %72, %84, %cst_27 {dimension_numbers = #tpu.dot_dimension_numbers<[1], [1], [0], [0], [0, 0, 1, 0], [], []>} : vector<32x16xbf16>, vector<16x16xbf16>, vector<32x16xf32> -> vector<32x16xf32>
    %c32 = arith.constant 32 : index
    %c0_28 = arith.constant 0 : index
    %86 = vector.load %arg9[%c32, %c0_28] : memref<128x32xf32, #tpu.memory_space<vmem>>, vector<32x16xf32>
    tpu.vector_store %arg9[%c32, %c0_28], %85 {strides = array<i32>} : memref<128x32xf32, #tpu.memory_space<vmem>>, vector<32x16xf32>,
    %87 = vector.extract_strided_slice %42 {offsets = [64, 0], sizes = [32, 16], strides = [1, 1]} : vector<384x32xf32> to vector<32x16xf32>
    %cst_29 = arith.constant 0.176776692 : f32
    %88 = vector.broadcast %cst_29 : f32 to vector<32x16xf32>
    %89 = arith.mulf %87, %88 : vector<32x16xf32>
    %90 = arith.truncf %89 : vector<32x16xf32> to vector<32x16xbf16>
    %91 = vector.extract_strided_slice %42 {offsets = [192, 0], sizes = [32, 16], strides = [1, 1]} : vector<384x32xf32> to vector<32x16xf32>
    %92 = arith.truncf %91 : vector<32x16xf32> to vector<32x16xbf16>
    %93 = vector.extract_strided_slice %42 {offsets = [320, 0], sizes = [32, 16], strides = [1, 1]} : vector<384x32xf32> to vector<32x16xf32>
    %94 = arith.truncf %93 : vector<32x16xf32> to vector<32x16xbf16>
    %cst_30 = arith.constant dense<0.000000e+00> : vector<16x16xf32>
    %95 = tpu.matmul %90, %92, %cst_30 {dimension_numbers = #tpu.dot_dimension_numbers<[0], [0], [1], [1], [0, 1, 1, 1], [], []>} : vector<32x16xbf16>, vector<32x16xbf16>, vector<16x16xf32> -> vector<16x16xf32>
    %cst_31 = arith.constant dense<0xFF800000> : vector<16xf32>
    %96 = vector.multi_reduction <maximumf>, %95, %cst_31 [1] : vector<16x16xf32> to vector<16xf32>
    %97 = vector.shape_cast %96 : vector<16xf32> to vector<16x1xf32>
    %98 = vector.broadcast %97 : vector<16x1xf32> to vector<16x16xf32>
    %99 = arith.subf %95, %98 : vector<16x16xf32>
    %100 = math.exp %99 : vector<16x16xf32>
    %cst_32 = arith.constant dense<0.000000e+00> : vector<16xf32>
    %101 = vector.multi_reduction <add>, %100, %cst_32 [1] : vector<16x16xf32> to vector<16xf32>
    %102 = vector.shape_cast %101 : vector<16xf32> to vector<16x1xf32>
    %103 = tpu.reciprocal %102 {approx = true} : vector<16x1xf32> -> vector<16x1xf32>
    %104 = vector.broadcast %103 : vector<16x1xf32> to vector<16x16xf32>
    %105 = arith.mulf %100, %104 : vector<16x16xf32>
    %106 = arith.truncf %105 : vector<16x16xf32> to vector<16x16xbf16>
    %cst_33 = arith.constant dense<0.000000e+00> : vector<32x16xf32>
    %107 = tpu.matmul %94, %106, %cst_33 {dimension_numbers = #tpu.dot_dimension_numbers<[1], [1], [0], [0], [0, 0, 1, 0], [], []>} : vector<32x16xbf16>, vector<16x16xbf16>, vector<32x16xf32> -> vector<32x16xf32>
    %c64 = arith.constant 64 : index
    %c0_34 = arith.constant 0 : index
    %108 = vector.load %arg9[%c64, %c0_34] : memref<128x32xf32, #tpu.memory_space<vmem>>, vector<32x16xf32>
    tpu.vector_store %arg9[%c64, %c0_34], %107 {strides = array<i32>} : memref<128x32xf32, #tpu.memory_space<vmem>>, vector<32x16xf32>,
    %109 = vector.extract_strided_slice %42 {offsets = [96, 0], sizes = [32, 16], strides = [1, 1]} : vector<384x32xf32> to vector<32x16xf32>
    %cst_35 = arith.constant 0.176776692 : f32
    %110 = vector.broadcast %cst_35 : f32 to vector<32x16xf32>
    %111 = arith.mulf %109, %110 : vector<32x16xf32>
    %112 = arith.truncf %111 : vector<32x16xf32> to vector<32x16xbf16>
    %113 = vector.extract_strided_slice %42 {offsets = [224, 0], sizes = [32, 16], strides = [1, 1]} : vector<384x32xf32> to vector<32x16xf32>
    %114 = arith.truncf %113 : vector<32x16xf32> to vector<32x16xbf16>
    %115 = vector.extract_strided_slice %42 {offsets = [352, 0], sizes = [32, 16], strides = [1, 1]} : vector<384x32xf32> to vector<32x16xf32>
    %116 = arith.truncf %115 : vector<32x16xf32> to vector<32x16xbf16>
    %cst_36 = arith.constant dense<0.000000e+00> : vector<16x16xf32>
    %117 = tpu.matmul %112, %114, %cst_36 {dimension_numbers = #tpu.dot_dimension_numbers<[0], [0], [1], [1], [0, 1, 1, 1], [], []>} : vector<32x16xbf16>, vector<32x16xbf16>, vector<16x16xf32> -> vector<16x16xf32>
    %cst_37 = arith.constant dense<0xFF800000> : vector<16xf32>
    %118 = vector.multi_reduction <maximumf>, %117, %cst_37 [1] : vector<16x16xf32> to vector<16xf32>
    %119 = vector.shape_cast %118 : vector<16xf32> to vector<16x1xf32>
    %120 = vector.broadcast %119 : vector<16x1xf32> to vector<16x16xf32>
    %121 = arith.subf %117, %120 : vector<16x16xf32>
    %122 = math.exp %121 : vector<16x16xf32>
    %cst_38 = arith.constant dense<0.000000e+00> : vector<16xf32>
    %123 = vector.multi_reduction <add>, %122, %cst_38 [1] : vector<16x16xf32> to vector<16xf32>
    %124 = vector.shape_cast %123 : vector<16xf32> to vector<16x1xf32>
    %125 = tpu.reciprocal %124 {approx = true} : vector<16x1xf32> -> vector<16x1xf32>
    %126 = vector.broadcast %125 : vector<16x1xf32> to vector<16x16xf32>
    %127 = arith.mulf %122, %126 : vector<16x16xf32>
    %128 = arith.truncf %127 : vector<16x16xf32> to vector<16x16xbf16>
    %cst_39 = arith.constant dense<0.000000e+00> : vector<32x16xf32>
    %129 = tpu.matmul %116, %128, %cst_39 {dimension_numbers = #tpu.dot_dimension_numbers<[1], [1], [0], [0], [0, 0, 1, 0], [], []>} : vector<32x16xbf16>, vector<16x16xbf16>, vector<32x16xf32> -> vector<32x16xf32>
    %c96 = arith.constant 96 : index
    %c0_40 = arith.constant 0 : index
    %130 = vector.load %arg9[%c96, %c0_40] : memref<128x32xf32, #tpu.memory_space<vmem>>, vector<32x16xf32>
    tpu.vector_store %arg9[%c96, %c0_40], %129 {strides = array<i32>} : memref<128x32xf32, #tpu.memory_space<vmem>>, vector<32x16xf32>,
    %131 = vector.extract_strided_slice %42 {offsets = [0, 16], sizes = [32, 16], strides = [1, 1]} : vector<384x32xf32> to vector<32x16xf32>
    %cst_41 = arith.constant 0.176776692 : f32
    %132 = vector.broadcast %cst_41 : f32 to vector<32x16xf32>
    %133 = arith.mulf %131, %132 : vector<32x16xf32>
    %134 = arith.truncf %133 : vector<32x16xf32> to vector<32x16xbf16>
    %135 = vector.extract_strided_slice %42 {offsets = [128, 16], sizes = [32, 16], strides = [1, 1]} : vector<384x32xf32> to vector<32x16xf32>
    %136 = arith.truncf %135 : vector<32x16xf32> to vector<32x16xbf16>
    %137 = vector.extract_strided_slice %42 {offsets = [256, 16], sizes = [32, 16], strides = [1, 1]} : vector<384x32xf32> to vector<32x16xf32>
    %138 = arith.truncf %137 : vector<32x16xf32> to vector<32x16xbf16>
    %cst_42 = arith.constant dense<0.000000e+00> : vector<16x16xf32>
    %139 = tpu.matmul %134, %136, %cst_42 {dimension_numbers = #tpu.dot_dimension_numbers<[0], [0], [1], [1], [0, 1, 1, 1], [], []>} : vector<32x16xbf16>, vector<32x16xbf16>, vector<16x16xf32> -> vector<16x16xf32>
    %cst_43 = arith.constant dense<0xFF800000> : vector<16xf32>
    %140 = vector.multi_reduction <maximumf>, %139, %cst_43 [1] : vector<16x16xf32> to vector<16xf32>
    %141 = vector.shape_cast %140 : vector<16xf32> to vector<16x1xf32>
    %142 = vector.broadcast %141 : vector<16x1xf32> to vector<16x16xf32>
    %143 = arith.subf %139, %142 : vector<16x16xf32>
    %144 = math.exp %143 : vector<16x16xf32>
    %cst_44 = arith.constant dense<0.000000e+00> : vector<16xf32>
    %145 = vector.multi_reduction <add>, %144, %cst_44 [1] : vector<16x16xf32> to vector<16xf32>
    %146 = vector.shape_cast %145 : vector<16xf32> to vector<16x1xf32>
    %147 = tpu.reciprocal %146 {approx = true} : vector<16x1xf32> -> vector<16x1xf32>
    %148 = vector.broadcast %147 : vector<16x1xf32> to vector<16x16xf32>
    %149 = arith.mulf %144, %148 : vector<16x16xf32>
    %150 = arith.truncf %149 : vector<16x16xf32> to vector<16x16xbf16>
    %cst_45 = arith.constant dense<0.000000e+00> : vector<32x16xf32>
    %151 = tpu.matmul %138, %150, %cst_45 {dimension_numbers = #tpu.dot_dimension_numbers<[1], [1], [0], [0], [0, 0, 1, 0], [], []>} : vector<32x16xbf16>, vector<16x16xbf16>, vector<32x16xf32> -> vector<32x16xf32>
    %c0_46 = arith.constant 0 : index
    %c16 = arith.constant 16 : index
    %152 = vector.load %arg9[%c0_46, %c16] : memref<128x32xf32, #tpu.memory_space<vmem>>, vector<32x16xf32>
    tpu.vector_store %arg9[%c0_46, %c16], %151 {strides = array<i32>} : memref<128x32xf32, #tpu.memory_space<vmem>>, vector<32x16xf32>,
    %153 = vector.extract_strided_slice %42 {offsets = [32, 16], sizes = [32, 16], strides = [1, 1]} : vector<384x32xf32> to vector<32x16xf32>
    %cst_47 = arith.constant 0.176776692 : f32
    %154 = vector.broadcast %cst_47 : f32 to vector<32x16xf32>
    %155 = arith.mulf %153, %154 : vector<32x16xf32>
    %156 = arith.truncf %155 : vector<32x16xf32> to vector<32x16xbf16>
    %157 = vector.extract_strided_slice %42 {offsets = [160, 16], sizes = [32, 16], strides = [1, 1]} : vector<384x32xf32> to vector<32x16xf32>
    %158 = arith.truncf %157 : vector<32x16xf32> to vector<32x16xbf16>
    %159 = vector.extract_strided_slice %42 {offsets = [288, 16], sizes = [32, 16], strides = [1, 1]} : vector<384x32xf32> to vector<32x16xf32>
    %160 = arith.truncf %159 : vector<32x16xf32> to vector<32x16xbf16>
    %cst_48 = arith.constant dense<0.000000e+00> : vector<16x16xf32>
    %161 = tpu.matmul %156, %158, %cst_48 {dimension_numbers = #tpu.dot_dimension_numbers<[0], [0], [1], [1], [0, 1, 1, 1], [], []>} : vector<32x16xbf16>, vector<32x16xbf16>, vector<16x16xf32> -> vector<16x16xf32>
    %cst_49 = arith.constant dense<0xFF800000> : vector<16xf32>
    %162 = vector.multi_reduction <maximumf>, %161, %cst_49 [1] : vector<16x16xf32> to vector<16xf32>
    %163 = vector.shape_cast %162 : vector<16xf32> to vector<16x1xf32>
    %164 = vector.broadcast %163 : vector<16x1xf32> to vector<16x16xf32>
    %165 = arith.subf %161, %164 : vector<16x16xf32>
    %166 = math.exp %165 : vector<16x16xf32>
    %cst_50 = arith.constant dense<0.000000e+00> : vector<16xf32>
    %167 = vector.multi_reduction <add>, %166, %cst_50 [1] : vector<16x16xf32> to vector<16xf32>
    %168 = vector.shape_cast %167 : vector<16xf32> to vector<16x1xf32>
    %169 = tpu.reciprocal %168 {approx = true} : vector<16x1xf32> -> vector<16x1xf32>
    %170 = vector.broadcast %169 : vector<16x1xf32> to vector<16x16xf32>
    %171 = arith.mulf %166, %170 : vector<16x16xf32>
    %172 = arith.truncf %171 : vector<16x16xf32> to vector<16x16xbf16>
    %cst_51 = arith.constant dense<0.000000e+00> : vector<32x16xf32>
    %173 = tpu.matmul %160, %172, %cst_51 {dimension_numbers = #tpu.dot_dimension_numbers<[1], [1], [0], [0], [0, 0, 1, 0], [], []>} : vector<32x16xbf16>, vector<16x16xbf16>, vector<32x16xf32> -> vector<32x16xf32>
    %c32_52 = arith.constant 32 : index
    %c16_53 = arith.constant 16 : index
    %174 = vector.load %arg9[%c32_52, %c16_53] : memref<128x32xf32, #tpu.memory_space<vmem>>, vector<32x16xf32>
    tpu.vector_store %arg9[%c32_52, %c16_53], %173 {strides = array<i32>} : memref<128x32xf32, #tpu.memory_space<vmem>>, vector<32x16xf32>,
    %175 = vector.extract_strided_slice %42 {offsets = [64, 16], sizes = [32, 16], strides = [1, 1]} : vector<384x32xf32> to vector<32x16xf32>
    %cst_54 = arith.constant 0.176776692 : f32
    %176 = vector.broadcast %cst_54 : f32 to vector<32x16xf32>
    %177 = arith.mulf %175, %176 : vector<32x16xf32>
    %178 = arith.truncf %177 : vector<32x16xf32> to vector<32x16xbf16>
    %179 = vector.extract_strided_slice %42 {offsets = [192, 16], sizes = [32, 16], strides = [1, 1]} : vector<384x32xf32> to vector<32x16xf32>
    %180 = arith.truncf %179 : vector<32x16xf32> to vector<32x16xbf16>
    %181 = vector.extract_strided_slice %42 {offsets = [320, 16], sizes = [32, 16], strides = [1, 1]} : vector<384x32xf32> to vector<32x16xf32>
    %182 = arith.truncf %181 : vector<32x16xf32> to vector<32x16xbf16>
    %cst_55 = arith.constant dense<0.000000e+00> : vector<16x16xf32>
    %183 = tpu.matmul %178, %180, %cst_55 {dimension_numbers = #tpu.dot_dimension_numbers<[0], [0], [1], [1], [0, 1, 1, 1], [], []>} : vector<32x16xbf16>, vector<32x16xbf16>, vector<16x16xf32> -> vector<16x16xf32>
    %cst_56 = arith.constant dense<0xFF800000> : vector<16xf32>
    %184 = vector.multi_reduction <maximumf>, %183, %cst_56 [1] : vector<16x16xf32> to vector<16xf32>
    %185 = vector.shape_cast %184 : vector<16xf32> to vector<16x1xf32>
    %186 = vector.broadcast %185 : vector<16x1xf32> to vector<16x16xf32>
    %187 = arith.subf %183, %186 : vector<16x16xf32>
    %188 = math.exp %187 : vector<16x16xf32>
    %cst_57 = arith.constant dense<0.000000e+00> : vector<16xf32>
    %189 = vector.multi_reduction <add>, %188, %cst_57 [1] : vector<16x16xf32> to vector<16xf32>
    %190 = vector.shape_cast %189 : vector<16xf32> to vector<16x1xf32>
    %191 = tpu.reciprocal %190 {approx = true} : vector<16x1xf32> -> vector<16x1xf32>
    %192 = vector.broadcast %191 : vector<16x1xf32> to vector<16x16xf32>
    %193 = arith.mulf %188, %192 : vector<16x16xf32>
    %194 = arith.truncf %193 : vector<16x16xf32> to vector<16x16xbf16>
    %cst_58 = arith.constant dense<0.000000e+00> : vector<32x16xf32>
    %195 = tpu.matmul %182, %194, %cst_58 {dimension_numbers = #tpu.dot_dimension_numbers<[1], [1], [0], [0], [0, 0, 1, 0], [], []>} : vector<32x16xbf16>, vector<16x16xbf16>, vector<32x16xf32> -> vector<32x16xf32>
    %c64_59 = arith.constant 64 : index
    %c16_60 = arith.constant 16 : index
    %196 = vector.load %arg9[%c64_59, %c16_60] : memref<128x32xf32, #tpu.memory_space<vmem>>, vector<32x16xf32>
    tpu.vector_store %arg9[%c64_59, %c16_60], %195 {strides = array<i32>} : memref<128x32xf32, #tpu.memory_space<vmem>>, vector<32x16xf32>,
    %197 = vector.extract_strided_slice %42 {offsets = [96, 16], sizes = [32, 16], strides = [1, 1]} : vector<384x32xf32> to vector<32x16xf32>
    %cst_61 = arith.constant 0.176776692 : f32
    %198 = vector.broadcast %cst_61 : f32 to vector<32x16xf32>
    %199 = arith.mulf %197, %198 : vector<32x16xf32>
    %200 = arith.truncf %199 : vector<32x16xf32> to vector<32x16xbf16>
    %201 = vector.extract_strided_slice %42 {offsets = [224, 16], sizes = [32, 16], strides = [1, 1]} : vector<384x32xf32> to vector<32x16xf32>
    %202 = arith.truncf %201 : vector<32x16xf32> to vector<32x16xbf16>
    %203 = vector.extract_strided_slice %42 {offsets = [352, 16], sizes = [32, 16], strides = [1, 1]} : vector<384x32xf32> to vector<32x16xf32>
    %204 = arith.truncf %203 : vector<32x16xf32> to vector<32x16xbf16>
    %cst_62 = arith.constant dense<0.000000e+00> : vector<16x16xf32>
    %205 = tpu.matmul %200, %202, %cst_62 {dimension_numbers = #tpu.dot_dimension_numbers<[0], [0], [1], [1], [0, 1, 1, 1], [], []>} : vector<32x16xbf16>, vector<32x16xbf16>, vector<16x16xf32> -> vector<16x16xf32>
    %cst_63 = arith.constant dense<0xFF800000> : vector<16xf32>
    %206 = vector.multi_reduction <maximumf>, %205, %cst_63 [1] : vector<16x16xf32> to vector<16xf32>
    %207 = vector.shape_cast %206 : vector<16xf32> to vector<16x1xf32>
    %208 = vector.broadcast %207 : vector<16x1xf32> to vector<16x16xf32>
    %209 = arith.subf %205, %208 : vector<16x16xf32>
    %210 = math.exp %209 : vector<16x16xf32>
    %cst_64 = arith.constant dense<0.000000e+00> : vector<16xf32>
    %211 = vector.multi_reduction <add>, %210, %cst_64 [1] : vector<16x16xf32> to vector<16xf32>
    %212 = vector.shape_cast %211 : vector<16xf32> to vector<16x1xf32>
    %213 = tpu.reciprocal %212 {approx = true} : vector<16x1xf32> -> vector<16x1xf32>
    %214 = vector.broadcast %213 : vector<16x1xf32> to vector<16x16xf32>
    %215 = arith.mulf %210, %214 : vector<16x16xf32>
    %216 = arith.truncf %215 : vector<16x16xf32> to vector<16x16xbf16>
    %cst_65 = arith.constant dense<0.000000e+00> : vector<32x16xf32>
    %217 = tpu.matmul %204, %216, %cst_65 {dimension_numbers = #tpu.dot_dimension_numbers<[1], [1], [0], [0], [0, 0, 1, 0], [], []>} : vector<32x16xbf16>, vector<16x16xbf16>, vector<32x16xf32> -> vector<32x16xf32>
    %c96_66 = arith.constant 96 : index
    %c16_67 = arith.constant 16 : index
    %218 = vector.load %arg9[%c96_66, %c16_67] : memref<128x32xf32, #tpu.memory_space<vmem>>, vector<32x16xf32>
    tpu.vector_store %arg9[%c96_66, %c16_67], %217 {strides = array<i32>} : memref<128x32xf32, #tpu.memory_space<vmem>>, vector<32x16xf32>,
    %c0_68 = arith.constant 0 : index
    %c0_69 = arith.constant 0 : index
    %219 = vector.load %arg9[%c0_68, %c0_69] : memref<128x32xf32, #tpu.memory_space<vmem>>, vector<128x32xf32>
    %220 = arith.truncf %219 : vector<128x32xf32> to vector<128x32xbf16>
    %c0_70 = arith.constant 0 : index
    %c0_71 = arith.constant 0 : index
    %c0_72 = arith.constant 0 : index
    %221 = vector.load %arg5[%c0_70, %c0_71, %c0_72] : memref<1x128x128xbf16, #tpu.memory_space<vmem>>, vector<1x128x128xbf16>
    %222 = vector.shape_cast %221 : vector<1x128x128xbf16> to vector<128x128xbf16>
    %cst_73 = arith.constant dense<0.000000e+00> : vector<32x128xf32>
    %223 = tpu.matmul %220, %222, %cst_73 {dimension_numbers = #tpu.dot_dimension_numbers<[0], [0], [1], [1], [0, 1, 1, 1], [], []>} : vector<128x32xbf16>, vector<128x128xbf16>, vector<32x128xf32> -> vector<32x128xf32>
    %224 = arith.addf %3, %223 : vector<32x128xf32>
    %225 = vector.broadcast %8 : vector<1x128xf32> to vector<32x128xf32>
    %226 = arith.addf %224, %225 : vector<32x128xf32>
    %cst_74 = arith.constant dense<0.000000e+00> : vector<32xf32>
    %227 = vector.multi_reduction <add>, %226, %cst_74 [1] : vector<32x128xf32> to vector<32xf32>
    %228 = vector.shape_cast %227 : vector<32xf32> to vector<32x1xf32>
    %cst_75 = arith.constant 1.280000e+02 : f32
    %229 = vector.broadcast %cst_75 : f32 to vector<32x1xf32>
    %230 = arith.divf %228, %229 : vector<32x1xf32>
    %231 = vector.broadcast %230 : vector<32x1xf32> to vector<32x128xf32>
    %232 = arith.subf %226, %231 : vector<32x128xf32>
    %233 = arith.mulf %232, %232 : vector<32x128xf32>
    %cst_76 = arith.constant dense<0.000000e+00> : vector<32xf32>
    %234 = vector.multi_reduction <add>, %233, %cst_76 [1] : vector<32x128xf32> to vector<32xf32>
    %235 = vector.shape_cast %234 : vector<32xf32> to vector<32x1xf32>
    %cst_77 = arith.constant 1.280000e+02 : f32
    %236 = vector.broadcast %cst_77 : f32 to vector<32x1xf32>
    %237 = arith.divf %235, %236 : vector<32x1xf32>
    %238 = vector.broadcast %230 : vector<32x1xf32> to vector<32x128xf32>
    %239 = arith.subf %226, %238 : vector<32x128xf32>
    %cst_78 = arith.constant 9.99999997E-7 : f32
    %240 = vector.broadcast %cst_78 : f32 to vector<32x1xf32>
    %241 = arith.addf %237, %240 : vector<32x1xf32>
    %242 = math.rsqrt %241 : vector<32x1xf32>
    %243 = vector.broadcast %242 : vector<32x1xf32> to vector<32x128xf32>
    %244 = arith.mulf %239, %243 : vector<32x128xf32>
    %245 = vector.broadcast %9 : vector<1x128xf32> to vector<32x128xf32>
    %246 = arith.mulf %244, %245 : vector<32x128xf32>
    %247 = vector.broadcast %10 : vector<1x128xf32> to vector<32x128xf32>
    %248 = arith.addf %246, %247 : vector<32x128xf32>
    %249 = arith.truncf %248 : vector<32x128xf32> to vector<32x128xbf16>
    %c0_79 = arith.constant 0 : index
    %c0_80 = arith.constant 0 : index
    %c0_81 = arith.constant 0 : index
    %250 = vector.load %arg6[%c0_79, %c0_80, %c0_81] : memref<1x128x256xbf16, #tpu.memory_space<vmem>>, vector<1x128x256xbf16>
    %251 = vector.shape_cast %250 : vector<1x128x256xbf16> to vector<128x256xbf16>
    %cst_82 = arith.constant dense<0.000000e+00> : vector<32x256xf32>
    %252 = tpu.matmul %249, %251, %cst_82 {dimension_numbers = #tpu.dot_dimension_numbers<[1], [0], [0], [1], [0, 0, 1, 1], [], []>} : vector<32x128xbf16>, vector<128x256xbf16>, vector<32x256xf32> -> vector<32x256xf32>
    %253 = vector.broadcast %12 : vector<1x256xf32> to vector<32x256xf32>
    %254 = arith.addf %252, %253 : vector<32x256xf32>
    %cst_83 = arith.constant 5.000000e-01 : f32
    %255 = vector.broadcast %cst_83 : f32 to vector<32x256xf32>
    %256 = arith.mulf %255, %254 : vector<32x256xf32>
    %cst_84 = arith.constant 0.707106769 : f32
    %257 = vector.broadcast %cst_84 : f32 to vector<32x256xf32>
    %258 = arith.mulf %254, %257 : vector<32x256xf32>
    %259 = math.erf %258 : vector<32x256xf32>
    %cst_85 = arith.constant 1.000000e+00 : f32
    %260 = vector.broadcast %cst_85 : f32 to vector<32x256xf32>
    %261 = arith.addf %260, %259 : vector<32x256xf32>
    %262 = arith.mulf %256, %261 : vector<32x256xf32>
    %263 = arith.truncf %262 : vector<32x256xf32> to vector<32x256xbf16>
    %c0_86 = arith.constant 0 : index
    %c0_87 = arith.constant 0 : index
    %c0_88 = arith.constant 0 : index
    %264 = vector.load %arg7[%c0_86, %c0_87, %c0_88] : memref<1x256x128xbf16, #tpu.memory_space<vmem>>, vector<1x256x128xbf16>
    %265 = vector.shape_cast %264 : vector<1x256x128xbf16> to vector<256x128xbf16>
    %cst_89 = arith.constant dense<0.000000e+00> : vector<32x128xf32>
    %266 = tpu.matmul %263, %265, %cst_89 {dimension_numbers = #tpu.dot_dimension_numbers<[1], [0], [0], [1], [0, 0, 1, 1], [], []>} : vector<32x256xbf16>, vector<256x128xbf16>, vector<32x128xf32> -> vector<32x128xf32>
    %267 = vector.broadcast %11 : vector<1x128xf32> to vector<32x128xf32>
    %268 = arith.addf %266, %267 : vector<32x128xf32>
    %269 = arith.addf %226, %268 : vector<32x128xf32>
    %c0_90 = arith.constant 0 : index
    %c0_91 = arith.constant 0 : index
    %270 = vector.load %arg8[%c0_90, %c0_91] : memref<32x128xf32, #tpu.memory_space<vmem>>, vector<32x128xf32>
    tpu.vector_store %arg8[%c0_90, %c0_91], %269 {strides = array<i32>} : memref<32x128xf32, #tpu.memory_space<vmem>>, vector<32x128xf32>,
    return
  }
  func.func @transform_0(%arg0: i32) -> (i32, i32) {
    %c0_i32 = arith.constant 0 : i32
    %c0_i32_0 = arith.constant 0 : i32
    %c0_i32_1 = arith.constant 0 : i32
    return %c0_i32, %c0_i32_0 : i32, i32
  }
  func.func @transform_1(%arg0: i32) -> (i32, i32, i32) {
    %c0_i32 = arith.constant 0 : i32
    %c0_i32_0 = arith.constant 0 : i32
    %c0_i32_1 = arith.constant 0 : i32
    return %arg0, %c0_i32, %c0_i32_0 : i32, i32, i32
  }
  func.func @transform_2(%arg0: i32) -> (i32, i32, i32) {
    %c0_i32 = arith.constant 0 : i32
    %c0_i32_0 = arith.constant 0 : i32
    %c0_i32_1 = arith.constant 0 : i32
    return %arg0, %c0_i32, %c0_i32_0 : i32, i32, i32
  }
  func.func @transform_3(%arg0: i32) -> (i32, i32, i32) {
    %c0_i32 = arith.constant 0 : i32
    %c0_i32_0 = arith.constant 0 : i32
    %c0_i32_1 = arith.constant 0 : i32
    return %arg0, %c0_i32, %c0_i32_0 : i32, i32, i32
  }
  func.func @transform_4(%arg0: i32) -> (i32, i32, i32) {
    %c0_i32 = arith.constant 0 : i32
    %c0_i32_0 = arith.constant 0 : i32
    %c0_i32_1 = arith.constant 0 : i32
    return %arg0, %c0_i32, %c0_i32_0 : i32, i32, i32
  }
  func.func @transform_5(%arg0: i32) -> (i32, i32, i32) {
    %c0_i32 = arith.constant 0 : i32
    %c0_i32_0 = arith.constant 0 : i32
    %c0_i32_1 = arith.constant 0 : i32
    return %arg0, %c0_i32, %c0_i32_0 : i32, i32, i32
  }
  func.func @transform_6(%arg0: i32) -> (i32, i32, i32) {
    %c0_i32 = arith.constant 0 : i32
    %c0_i32_0 = arith.constant 0 : i32
    %c0_i32_1 = arith.constant 0 : i32
    return %arg0, %c0_i32, %c0_i32_0 : i32, i32, i32
  }
  func.func @transform_7(%arg0: i32) -> (i32, i32) {
    %c0_i32 = arith.constant 0 : i32
    %c0_i32_0 = arith.constant 0 : i32
    %c0_i32_1 = arith.constant 0 : i32
    return %c0_i32, %c0_i32_0 : i32, i32
  }
}

</mosaic_0001>

<llo_original>
// kernel: transformer_forward.1
$region0: #{transformer_forward.1}
  #allocation0 [shape = 'u32[]', space=smem, size = 0x4, offset = 0x4, fixed_abs, tag = 'smem constant byte address 0x4 - core index']
  #allocation1 [shape = 'u32[144,128]{1,0:T(1,128)}', space=vmem, size = 0x12000, scoped, tag = 'internal scratch']
  #allocation2 [shape = 'f32[128,32]{1,0:T(8,128)}', space=vmem, size = 0x10000, scoped, tag = 'scratch operand']
  %s0 = inlined_call_operand.vmem [shape: f32[32,128], index: 0, kind: input, shape index: {}, may-alias: {0,7}]
  %s1 = inlined_call_operand.vmem [shape: f32[2,8,256], index: 1, kind: input, shape index: {}]
  %s2 = inlined_call_operand.vmem [shape: f32[2,384,1], index: 2, kind: input, shape index: {}]
  %s3 = inlined_call_operand.vmem [shape: bf16[2,384,128], index: 3, kind: input, shape index: {}]
  %s4 = inlined_call_operand.vmem [shape: bf16[2,128,128], index: 4, kind: input, shape index: {}]
  %s5 = inlined_call_operand.vmem [shape: bf16[2,128,256], index: 5, kind: input, shape index: {}]
  %s6 = inlined_call_operand.hbm [shape: bf16[2,256,128], index: 6, kind: input, shape index: {}]
  %s7 = inlined_call_operand.vmem [shape: f32[32,128], index: 7, kind: output, shape index: {}, may-alias: {0,7}]
  %s8 = sld [smem:[#allocation0]]
  $region69: #{transformer_forward.1} parent=0
    _
  %s10 = ssub.s32 1, %s8
  %s11 = scalar_select 0, %s10, %s8
  $region1: #{transformer_forward.1} parent=0
    #allocation3 [shape = 'u8[131072]{0}', space=vmem, size = 0x20000, scoped, tag = 'input window, operand 6']
    #allocation4 [shape = 's32[2]{0}', space=sflag, size = 0x8, scoped, tag = 'scoped memory for transformer_forward.1']
    %12 = vsyncpa [#allocation4], 0
    %s13 = scalar_lea.sflag [#allocation4], 1
    %14 = vsyncpa %s13, 0
    loop: start=0, step=1, limit=4
    $region2: #{transformer_forward.1} parent=1 // loop_pre_header
      _
    $region3: #{transformer_forward.1} parent=1 // loop_header
      %s16 = sphi 0, %s20
      %p17 = scmp.ge.s32.totalorder %s16, 4
      %s24 = sphi 0, %s24
      %s26 = sphi 0, %s24
      %s27 = sphi 0, %s26
      %s41 = sphi 0, %s27
      %s47 = sphi 0, %s49
      %s50 = sphi 0, %s47
      %s51 = sphi 0, %s50
      %s67 = sphi 0, %s51
      %s73 = sphi 0, %s75
      %s76 = sphi 0, %s73
      %s77 = sphi 0, %s76
      %s93 = sphi 0, %s77
      %s99 = sphi 0, %s101
      %s102 = sphi 0, %s99
      %s103 = sphi 0, %s102
      %s119 = sphi 0, %s103
      %s125 = sphi 0, %s127
      %s128 = sphi 0, %s125
      %s129 = sphi 0, %s128
      %s145 = sphi 0, %s129
      %s151 = sphi 0, %s153
      %s154 = sphi 0, %s151
      %s155 = sphi 0, %s154
      %s171 = sphi 0, %s155
      %s177 = sphi 0, %s179
      %s180 = sphi 0, %s177
      %s181 = sphi 0, %s180
      %s197 = sphi 0, %s181
      %s201 = sphi 0, %s201
      %s203 = sphi 0, %s201
      %s204 = sphi 0, %s203
      %s218 = sphi 0, %s204
    $region4: #{transformer_forward.1} parent=1 // loop_header_branch
      %19 = sbr.rel (%p17) target = $region8
    $region5: #{transformer_forward.1} parent=1 // loop_body
      %s21 = ssub.s32 %s16, 1
      %s22 = ssub.s32 %s16, 2
      %s23 = sadd.s32 %s16, 1
      %s25 = sadd.s32 %s24, 1
      %p28 = scmp.eq.s32.totalorder %s16, 1
      %p29 = scmp.ne.s32.totalorder %s24, %s26
      %p30 = scmp.eq.s32.totalorder %s16, 0
      %p31 = por %p29, %p30
      %p32 = scmp.ne.s32.totalorder %s24, %s26
      %p33 = scmp.eq.s32.totalorder %s21, 1
      %p34 = por %p32, %p33
      %p35 = scmp.ne.s32.totalorder %s26, %s27
      %p36 = scmp.eq.s32.totalorder %s21, 0
      %p37 = por %p35, %p36
      %p38 = scmp.ne.s32.totalorder %s26, %s27
      %p39 = scmp.eq.s32.totalorder %s22, 1
      %p40 = por %p38, %p39
      %p42 = scmp.ne.s32.totalorder %s27, %s41
      %p43 = scmp.eq.s32.totalorder %s22, 0
      %p44 = por %p42, %p43
      %s45 = ssub.s32 %s16, %s23
      %p46 = scmp.eq.s32.totalorder %s45, 0
      %s48 = sadd.s32 %s47, 1
      %s49 = scalar_select %p46, %s47, %s48
      %p52 = pneg %p46
      %p53 = scmp.eq.s32.totalorder %s16, 1
      %p54 = por %p52, %p53
      %p55 = scmp.ne.s32.totalorder %s47, %s50
      %p56 = scmp.eq.s32.totalorder %s16, 0
      %p57 = por %p55, %p56
      %p58 = scmp.ne.s32.totalorder %s47, %s50
      %p59 = scmp.eq.s32.totalorder %s21, 1
      %p60 = por %p58, %p59
      %p61 = scmp.ne.s32.totalorder %s50, %s51
      %p62 = scmp.eq.s32.totalorder %s21, 0
      %p63 = por %p61, %p62
      %p64 = scmp.ne.s32.totalorder %s50, %s51
      %p65 = scmp.eq.s32.totalorder %s22, 1
      %p66 = por %p64, %p65
      %p68 = scmp.ne.s32.totalorder %s51, %s67
      %p69 = scmp.eq.s32.totalorder %s22, 0
      %p70 = por %p68, %p69
      %s71 = ssub.s32 %s16, %s23
      %p72 = scmp.eq.s32.totalorder %s71, 0
      %s74 = sadd.s32 %s73, 1
      %s75 = scalar_select %p72, %s73, %s74
      %p78 = pneg %p72
      %p79 = scmp.eq.s32.totalorder %s16, 1
      %p80 = por %p78, %p79
      %p81 = scmp.ne.s32.totalorder %s73, %s76
      %p82 = scmp.eq.s32.totalorder %s16, 0
      %p83 = por %p81, %p82
      %p84 = scmp.ne.s32.totalorder %s73, %s76
      %p85 = scmp.eq.s32.totalorder %s21, 1
      %p86 = por %p84, %p85
      %p87 = scmp.ne.s32.totalorder %s76, %s77
      %p88 = scmp.eq.s32.totalorder %s21, 0
      %p89 = por %p87, %p88
      %p90 = scmp.ne.s32.totalorder %s76, %s77
      %p91 = scmp.eq.s32.totalorder %s22, 1
      %p92 = por %p90, %p91
      %p94 = scmp.ne.s32.totalorder %s77, %s93
      %p95 = scmp.eq.s32.totalorder %s22, 0
      %p96 = por %p94, %p95
      %s97 = ssub.s32 %s16, %s23
      %p98 = scmp.eq.s32.totalorder %s97, 0
      %s100 = sadd.s32 %s99, 1
      %s101 = scalar_select %p98, %s99, %s100
      %p104 = pneg %p98
      %p105 = scmp.eq.s32.totalorder %s16, 1
      %p106 = por %p104, %p105
      %p107 = scmp.ne.s32.totalorder %s99, %s102
      %p108 = scmp.eq.s32.totalorder %s16, 0
      %p109 = por %p107, %p108
      %p110 = scmp.ne.s32.totalorder %s99, %s102
      %p111 = scmp.eq.s32.totalorder %s21, 1
      %p112 = por %p110, %p111
      %p113 = scmp.ne.s32.totalorder %s102, %s103
      %p114 = scmp.eq.s32.totalorder %s21, 0
      %p115 = por %p113, %p114
      %p116 = scmp.ne.s32.totalorder %s102, %s103
      %p117 = scmp.eq.s32.totalorder %s22, 1
      %p118 = por %p116, %p117
      %p120 = scmp.ne.s32.totalorder %s103, %s119
      %p121 = scmp.eq.s32.totalorder %s22, 0
      %p122 = por %p120, %p121
      %s123 = ssub.s32 %s16, %s23
      %p124 = scmp.eq.s32.totalorder %s123, 0
      %s126 = sadd.s32 %s125, 1
      %s127 = scalar_select %p124, %s125, %s126
      %p130 = pneg %p124
      %p131 = scmp.eq.s32.totalorder %s16, 1
      %p132 = por %p130, %p131
      %p133 = scmp.ne.s32.totalorder %s125, %s128
      %p134 = scmp.eq.s32.totalorder %s16, 0
      %p135 = por %p133, %p134
      %p136 = scmp.ne.s32.totalorder %s125, %s128
      %p137 = scmp.eq.s32.totalorder %s21, 1
      %p138 = por %p136, %p137
      %p139 = scmp.ne.s32.totalorder %s128, %s129
      %p140 = scmp.eq.s32.totalorder %s21, 0
      %p141 = por %p139, %p140
      %p142 = scmp.ne.s32.totalorder %s128, %s129
      %p143 = scmp.eq.s32.totalorder %s22, 1
      %p144 = por %p142, %p143
      %p146 = scmp.ne.s32.totalorder %s129, %s145
      %p147 = scmp.eq.s32.totalorder %s22, 0
      %p148 = por %p146, %p147
      %s149 = ssub.s32 %s16, %s23
      %p150 = scmp.eq.s32.totalorder %s149, 0
      %s152 = sadd.s32 %s151, 1
      %s153 = scalar_select %p150, %s151, %s152
      %p156 = pneg %p150
      %p157 = scmp.eq.s32.totalorder %s16, 1
      %p158 = por %p156, %p157
      %p159 = scmp.ne.s32.totalorder %s151, %s154
      %p160 = scmp.eq.s32.totalorder %s16, 0
      %p161 = por %p159, %p160
      %p162 = scmp.ne.s32.totalorder %s151, %s154
      %p163 = scmp.eq.s32.totalorder %s21, 1
      %p164 = por %p162, %p163
      %p165 = scmp.ne.s32.totalorder %s154, %s155
      %p166 = scmp.eq.s32.totalorder %s21, 0
      %p167 = por %p165, %p166
      %p168 = scmp.ne.s32.totalorder %s154, %s155
      %p169 = scmp.eq.s32.totalorder %s22, 1
      %p170 = por %p168, %p169
      %p172 = scmp.ne.s32.totalorder %s155, %s171
      %p173 = scmp.eq.s32.totalorder %s22, 0
      %p174 = por %p172, %p173
      %s175 = ssub.s32 %s16, %s23
      %p176 = scmp.eq.s32.totalorder %s175, 0
      %s178 = sadd.s32 %s177, 1
      %s179 = scalar_select %p176, %s177, %s178
      %p182 = pneg %p176
      %p183 = scmp.eq.s32.totalorder %s16, 1
      %p184 = por %p182, %p183
      %p185 = scmp.ne.s32.totalorder %s177, %s180
      %p186 = scmp.eq.s32.totalorder %s16, 0
      %p187 = por %p185, %p186
      %p188 = scmp.ne.s32.totalorder %s177, %s180
      %p189 = scmp.eq.s32.totalorder %s21, 1
      %p190 = por %p188, %p189
      %p191 = scmp.ne.s32.totalorder %s180, %s181
      %p192 = scmp.eq.s32.totalorder %s21, 0
      %p193 = por %p191, %p192
      %p194 = scmp.ne.s32.totalorder %s180, %s181
      %p195 = scmp.eq.s32.totalorder %s22, 1
      %p196 = por %p194, %p195
      %p198 = scmp.ne.s32.totalorder %s181, %s197
      %p199 = scmp.eq.s32.totalorder %s22, 0
      %p200 = por %p198, %p199
      %s202 = sadd.s32 %s201, 1
      %p205 = scmp.eq.s32.totalorder %s16, 1
      %p206 = scmp.ne.s32.totalorder %s201, %s203
      %p207 = scmp.eq.s32.totalorder %s16, 0
      %p208 = por %p206, %p207
      %p209 = scmp.ne.s32.totalorder %s201, %s203
      %p210 = scmp.eq.s32.totalorder %s21, 1
      %p211 = por %p209, %p210
      %p212 = scmp.ne.s32.totalorder %s203, %s204
      %p213 = scmp.eq.s32.totalorder %s21, 0
      %p214 = por %p212, %p213
      %p215 = scmp.ne.s32.totalorder %s203, %s204
      %p216 = scmp.eq.s32.totalorder %s22, 1
      %p217 = por %p215, %p216
      %p219 = scmp.ne.s32.totalorder %s204, %s218
      %p220 = scmp.eq.s32.totalorder %s22, 0
      %p221 = por %p219, %p220
      %p222 = scmp.le.s32.totalorder 1, %s16
      %p223 = scmp.lt.s32.totalorder %s16, 3
      %p224 = pnand %p222, %p223
      %p225 = pneg %p224
      // Predicated region
      $region9: #{transformer_forward.1} parent=5 // pred_check
        _
      $region10: #{transformer_forward.1} parent=5 // pred_check_branch
        %227 = sbr.rel (%p224) target = $region12
      $region11: #{transformer_forward.1} parent=5 // pred_region
        %s228 = ssub.s32 %s16, 1
        // Predicated region
        $region13: #{transformer_forward.1} parent=11 // pred_check
          %p229 = pneg %p37
        $region14: #{transformer_forward.1} parent=11 // pred_check_branch
          %231 = sbr.rel (%p229) target = $region16
        $region15: #{transformer_forward.1} parent=11 // pred_region
          _
        $region16: #{transformer_forward.1} parent=11 // pred_fallthru
          _
      $region12: #{transformer_forward.1} parent=5 // pred_fallthru
        _
      %p232 = scmp.lt.s32.totalorder %s16, 2
      // Predicated region
      $region17: #{transformer_forward.1} parent=5 // pred_check
        %p233 = pneg %p232
      $region18: #{transformer_forward.1} parent=5 // pred_check_branch
        %235 = sbr.rel (%p233) target = $region20
      $region19: #{transformer_forward.1} parent=5 // pred_region
        // Predicated region
        $region21: #{transformer_forward.1} parent=19 // pred_check
          %p236 = pneg %p57
        $region22: #{transformer_forward.1} parent=19 // pred_check_branch
          %238 = sbr.rel (%p236) target = $region24
        $region23: #{transformer_forward.1} parent=19 // pred_region
          %p239 = scmp.lt.s32.totalorder %s16, 1
          %s240 = scalar_select %p239, %s16, 1
          %s241 = smul.addr %s240, 2
          %s242 = smul.addr %s241, 8
          %s243 = scalar_lea.vmem %s1, %s242
        $region24: #{transformer_forward.1} parent=19 // pred_fallthru
          _
        // Predicated region
        $region25: #{transformer_forward.1} parent=19 // pred_check
          %p244 = pneg %p83
        $region26: #{transformer_forward.1} parent=19 // pred_check_branch
          %246 = sbr.rel (%p244) target = $region28
        $region27: #{transformer_forward.1} parent=19 // pred_region
          %p247 = scmp.lt.s32.totalorder %s16, 1
          %s248 = scalar_select %p247, %s16, 1
          %s249 = smul.addr %s248, 48
          %s250 = smul.addr %s249, 8
          %s251 = scalar_lea.vmem %s2, %s250
        $region28: #{transformer_forward.1} parent=19 // pred_fallthru
          _
        // Predicated region
        $region29: #{transformer_forward.1} parent=19 // pred_check
          %p252 = pneg %p109
        $region30: #{transformer_forward.1} parent=19 // pred_check_branch
          %254 = sbr.rel (%p252) target = $region32
        $region31: #{transformer_forward.1} parent=19 // pred_region
          %p255 = scmp.lt.s32.totalorder %s16, 1
          %s256 = scalar_select %p255, %s16, 1
          %s257 = smul.addr %s256, 48
          %s258 = smul.addr %s257, 4
          %s259 = scalar_lea.vmem %s3, %s258
        $region32: #{transformer_forward.1} parent=19 // pred_fallthru
          _
        // Predicated region
        $region33: #{transformer_forward.1} parent=19 // pred_check
          %p260 = pneg %p135
        $region34: #{transformer_forward.1} parent=19 // pred_check_branch
          %262 = sbr.rel (%p260) target = $region36
        $region35: #{transformer_forward.1} parent=19 // pred_region
          %p263 = scmp.lt.s32.totalorder %s16, 1
          %s264 = scalar_select %p263, %s16, 1
          %s265 = smul.addr %s264, 16
          %s266 = smul.addr %s265, 4
          %s267 = scalar_lea.vmem %s4, %s266
        $region36: #{transformer_forward.1} parent=19 // pred_fallthru
          _
        // Predicated region
        $region37: #{transformer_forward.1} parent=19 // pred_check
          %p268 = pneg %p161
        $region38: #{transformer_forward.1} parent=19 // pred_check_branch
          %270 = sbr.rel (%p268) target = $region40
        $region39: #{transformer_forward.1} parent=19 // pred_region
          %p271 = scmp.lt.s32.totalorder %s16, 1
          %s272 = scalar_select %p271, %s16, 1
          %s273 = smul.addr %s272, 32
          %s274 = smul.addr %s273, 4
          %s275 = scalar_lea.vmem %s5, %s274
        $region40: #{transformer_forward.1} parent=19 // pred_fallthru
          _
        // Predicated region
        $region41: #{transformer_forward.1} parent=19 // pred_check
          %p276 = pneg %p187
        $region42: #{transformer_forward.1} parent=19 // pred_check_branch
          %278 = sbr.rel (%p276) target = $region44
        $region43: #{transformer_forward.1} parent=19 // pred_region
          %s279 = sand.u32 %s177, 1
          %s280 = scalar_lea.sflag [#allocation4], %s279
          %s281 = sand.u32 %s177, 1
          %s282 = smul.addr %s281, 128
          %s283 = scalar_lea.vmem [#allocation3], %s282
          %s285 = ssub.s32 2048, 2048
          %286 = vsyncadd %s280, %s285
          %s287 = smul.addr %s16, 32
          %s288 = smul.addr %s287, 64
          %s289 = scalar_lea.hbm %s6, %s288
          %s290 = sshll.u32 %s283, 4
          %s291 = int_to_ptr.vmem [resolvable:$true] %s290
          %296 = dma.hbm_to_vmem [thread:$0]  %s289, 2048, %s291, %s280, 64, 64, 4
        $region44: #{transformer_forward.1} parent=19 // pred_fallthru
          _
      $region20: #{transformer_forward.1} parent=5 // pred_fallthru
        _
      %p297 = scmp.le.s32.totalorder 1, %s16
      %p298 = scmp.lt.s32.totalorder %s16, 3
      %p299 = pnand %p297, %p298
      %p300 = pneg %p299
      // Predicated region
      $region45: #{transformer_forward.1} parent=5 // pred_check
        _
      $region46: #{transformer_forward.1} parent=5 // pred_check_branch
        %302 = sbr.rel (%p299) target = $region48
      $region47: #{transformer_forward.1} parent=5 // pred_region
        %s303 = ssub.s32 %s16, 1
        %s304 = sand.u32 %s180, 1
        %s305 = scalar_lea.sflag [#allocation4], %s304
        %s306 = sand.u32 %s180, 1
        %s307 = smul.addr %s306, 128
        %s308 = scalar_lea.vmem [#allocation3], %s307
        // Predicated region
        $region49: #{transformer_forward.1} parent=47 // pred_check
          %p309 = pneg %p193
        $region50: #{transformer_forward.1} parent=47 // pred_check_branch
          %311 = sbr.rel (%p309) target = $region52
        $region51: #{transformer_forward.1} parent=47 // pred_region
          %312 = dma.done %s305, 2048
        $region52: #{transformer_forward.1} parent=47 // pred_fallthru
          _
        %p313 = pneg %p37
        %p314 = pneg %p34
        %p315 = scmp.lt.s32.totalorder %s21, 1
        %s316 = scalar_select %p315, %s21, 1
        %s317 = smul.addr %s316, 2
        %s318 = smul.addr %s317, 8
        %s319 = scalar_lea.vmem %s1, %s318
        %p320 = pneg %p63
        %p321 = pneg %p60
        %p322 = scmp.lt.s32.totalorder %s21, 1
        %s323 = scalar_select %p322, %s21, 1
        %s324 = smul.addr %s323, 48
        %s325 = smul.addr %s324, 8
        %s326 = scalar_lea.vmem %s2, %s325
        %p327 = pneg %p89
        %p328 = pneg %p86
        %p329 = scmp.lt.s32.totalorder %s21, 1
        %s330 = scalar_select %p329, %s21, 1
        %s331 = smul.addr %s330, 48
        %s332 = smul.addr %s331, 4
        %s333 = scalar_lea.vmem %s3, %s332
        %p334 = pneg %p115
        %p335 = pneg %p112
        %p336 = scmp.lt.s32.totalorder %s21, 1
        %s337 = scalar_select %p336, %s21, 1
        %s338 = smul.addr %s337, 16
        %s339 = smul.addr %s338, 4
        %s340 = scalar_lea.vmem %s4, %s339
        %p341 = pneg %p141
        %p342 = pneg %p138
        %p343 = scmp.lt.s32.totalorder %s21, 1
        %s344 = scalar_select %p343, %s21, 1
        %s345 = smul.addr %s344, 32
        %s346 = smul.addr %s345, 4
        %s347 = scalar_lea.vmem %s5, %s346
        %p348 = pneg %p167
        %p349 = pneg %p164
        %s350 = sand.u32 %s180, 1
        %s351 = scalar_lea.sflag [#allocation4], %s350
        %s352 = sand.u32 %s180, 1
        %s353 = smul.addr %s352, 128
        %s354 = scalar_lea.vmem [#allocation3], %s353
        %p355 = pneg %p193
        %p356 = pneg %p190
        %p357 = pneg %p214
        %p358 = pneg %p211
        %p359 = scmp.lt.s32.totalorder %s21, 1
        %s360 = scalar_select %p359, %s21, 1
        %s361 = smul.addr %s360, 2
        %s362 = smul.addr %s361, 8
        %s363 = scalar_lea.vmem %s1, %s362
        %p364 = scmp.lt.s32.totalorder %s21, 1
        %s365 = scalar_select %p364, %s21, 1
        %s366 = smul.addr %s365, 48
        %s367 = smul.addr %s366, 8
        %s368 = scalar_lea.vmem %s2, %s367
        %p369 = scmp.lt.s32.totalorder %s21, 1
        %s370 = scalar_select %p369, %s21, 1
        %s371 = smul.addr %s370, 48
        %s372 = smul.addr %s371, 4
        %s373 = scalar_lea.vmem %s3, %s372
        %p374 = scmp.lt.s32.totalorder %s21, 1
        %s375 = scalar_select %p374, %s21, 1
        %s376 = smul.addr %s375, 16
        %s377 = smul.addr %s376, 4
        %s378 = scalar_lea.vmem %s4, %s377
        %p379 = scmp.lt.s32.totalorder %s21, 1
        %s380 = scalar_select %p379, %s21, 1
        %s381 = smul.addr %s380, 32
        %s382 = smul.addr %s381, 4
        %s383 = scalar_lea.vmem %s5, %s382
        %p385 = scmp.eq.s32.totalorder %s21, 0
        // Predicated region
        $region53: #{transformer_forward.1} parent=47 // pred_check
          %p386 = pneg %p385
        $region54: #{transformer_forward.1} parent=47 // pred_check_branch
          %388 = sbr.rel (%p386) target = $region56
        $region55: #{transformer_forward.1} parent=47 // pred_region
          %v389 = vld [vmem:[%s0] sm:$0xff]
          %v390 = vld [vmem:[%s0 + $0x8] sm:$0xff]
          %v391 = vld [vmem:[%s0 + $0x10] sm:$0xff]
          %v392 = vld [vmem:[%s0 + $0x18] sm:$0xff]
          %393 = vst [vmem:[%s7] sm:$0xff] %v389
          %394 = vst [vmem:[%s7 + $0x8] sm:$0xff] %v390
          %395 = vst [vmem:[%s7 + $0x10] sm:$0xff] %v391
          %396 = vst [vmem:[%s7 + $0x18] sm:$0xff] %v392
        $region56: #{transformer_forward.1} parent=47 // pred_fallthru
          _
        %v397 = vld [vmem:[%s7] sm:$0xff]
        %v398 = vld [vmem:[%s7 + $0x8] sm:$0xff]
        %v399 = vld [vmem:[%s7 + $0x10] sm:$0xff]
        %v400 = vld [vmem:[%s7 + $0x18] sm:$0xff]
        %v401 = vld [vmem:[%s363] sm:$0xff]
        %v402 = vld [vmem:[%s363 + $0x8] sm:$0xff]
        %403 = vadd.xlane.f32.xlu0 %v397
        %v404 = vpop.xlane.xlu0 %403
        %405 = vadd.xlane.f32.xlu0 %v398
        %v406 = vpop.xlane.xlu0 %405
        %407 = vadd.xlane.f32.xlu0 %v399
        %v408 = vpop.xlane.xlu0 %407
        %409 = vadd.xlane.f32.xlu0 %v400
        %v410 = vpop.xlane.xlu0 %409
        %v411 = vrcp.pop 128.0
        %v412 = vmul.f32 %v404, %v411
        %v413 = vmul.f32 %v406, %v411
        %v414 = vmul.f32 %v408, %v411
        %v415 = vmul.f32 %v410, %v411
        %v416 = vsub.f32 %v397, %v412
        %v417 = vsub.f32 %v398, %v413
        %v418 = vsub.f32 %v399, %v414
        %v419 = vsub.f32 %v400, %v415
        %v420 = vmul.f32 %v416, %v416
        %v421 = vmul.f32 %v417, %v417
        %v422 = vmul.f32 %v418, %v418
        %v423 = vmul.f32 %v419, %v419
        %424 = vadd.xlane.f32.xlu0 %v420
        %v425 = vpop.xlane.xlu0 %424
        %426 = vadd.xlane.f32.xlu0 %v421
        %v427 = vpop.xlane.xlu0 %426
        %428 = vadd.xlane.f32.xlu0 %v422
        %v429 = vpop.xlane.xlu0 %428
        %430 = vadd.xlane.f32.xlu0 %v423
        %v431 = vpop.xlane.xlu0 %430
        %v432 = vmul.f32 %v425, %v411
        %v433 = vmul.f32 %v427, %v411
        %v434 = vmul.f32 %v429, %v411
        %v435 = vmul.f32 %v431, %v411
        %v436 = vadd.f32 %v432, 1e-06
        %v437 = vadd.f32 %v433, 1e-06
        %v438 = vadd.f32 %v434, 1e-06
        %v439 = vadd.f32 %v435, 1e-06
        %v440 = vrsqrt.pop %v436
        %v441 = vrsqrt.pop %v437
        %v442 = vrsqrt.pop %v438
        %v443 = vrsqrt.pop %v439
        %v444 = vmul.f32 %v416, %v440
        %v445 = vmul.f32 %v417, %v441
        %v446 = vmul.f32 %v418, %v442
        %v447 = vmul.f32 %v419, %v443
        %v448 = vlaneseq
        %v449 = vshrl.u32 %v448, 7
        %v450 = vsub.s32 0, %v449
        %v451 = vrot.slane %v401, %v450
        %v452 = vmul.f32 %v444, %v451
        %v453 = vmul.f32 %v445, %v451
        %v454 = vmul.f32 %v446, %v451
        %v455 = vmul.f32 %v447, %v451
        %v456 = vlaneseq
        %v457 = vshrl.u32 %v456, 7
        %v458 = vsub.s32 1, %v457
        %v459 = vrot.slane %v401, %v458
        %v460 = vadd.f32 %v452, %v459
        %v461 = vadd.f32 %v453, %v459
        %v462 = vadd.f32 %v454, %v459
        %v463 = vadd.f32 %v455, %v459
        %v464 = vld [vmem:[%s373] sm:$0xf]
        %v465 = vld [vmem:[%s373 + $0x4] sm:$0xf]
        %v466 = vld [vmem:[%s373 + $0x8] sm:$0xf]
        %v467 = vld [vmem:[%s373 + $0xc] sm:$0xf]
        %v468 = vld [vmem:[%s373 + $0x10] sm:$0xf]
        %v469 = vld [vmem:[%s373 + $0x14] sm:$0xf]
        %v470 = vld [vmem:[%s373 + $0x18] sm:$0xf]
        %v471 = vld [vmem:[%s373 + $0x1c] sm:$0xf]
        %v472 = vld [vmem:[%s373 + $0x20] sm:$0xf]
        %v473 = vld [vmem:[%s373 + $0x24] sm:$0xf]
        %v474 = vld [vmem:[%s373 + $0x28] sm:$0xf]
        %v475 = vld [vmem:[%s373 + $0x2c] sm:$0xf]
        %v476 = vld [vmem:[%s373 + $0x30] sm:$0xf]
        %v477 = vld [vmem:[%s373 + $0x34] sm:$0xf]
        %v478 = vld [vmem:[%s373 + $0x38] sm:$0xf]
        %v479 = vld [vmem:[%s373 + $0x3c] sm:$0xf]
        %v480 = vld [vmem:[%s373 + $0x40] sm:$0xf]
        %v481 = vld [vmem:[%s373 + $0x44] sm:$0xf]
        %v482 = vld [vmem:[%s373 + $0x48] sm:$0xf]
        %v483 = vld [vmem:[%s373 + $0x4c] sm:$0xf]
        %v484 = vld [vmem:[%s373 + $0x50] sm:$0xf]
        %v485 = vld [vmem:[%s373 + $0x54] sm:$0xf]
        %v486 = vld [vmem:[%s373 + $0x58] sm:$0xf]
        %v487 = vld [vmem:[%s373 + $0x5c] sm:$0xf]
        %v488 = vld [vmem:[%s373 + $0x60] sm:$0xf]
        %v489 = vld [vmem:[%s373 + $0x64] sm:$0xf]
        %v490 = vld [vmem:[%s373 + $0x68] sm:$0xf]
        %v491 = vld [vmem:[%s373 + $0x6c] sm:$0xf]
        %v492 = vld [vmem:[%s373 + $0x70] sm:$0xf]
        %v493 = vld [vmem:[%s373 + $0x74] sm:$0xf]
        %v494 = vld [vmem:[%s373 + $0x78] sm:$0xf]
        %v495 = vld [vmem:[%s373 + $0x7c] sm:$0xf]
        %v496 = vld [vmem:[%s373 + $0x80] sm:$0xf]
        %v497 = vld [vmem:[%s373 + $0x84] sm:$0xf]
        %v498 = vld [vmem:[%s373 + $0x88] sm:$0xf]
        %v499 = vld [vmem:[%s373 + $0x8c] sm:$0xf]
        %v500 = vld [vmem:[%s373 + $0x90] sm:$0xf]
        %v501 = vld [vmem:[%s373 + $0x94] sm:$0xf]
        %v502 = vld [vmem:[%s373 + $0x98] sm:$0xf]
        %v503 = vld [vmem:[%s373 + $0x9c] sm:$0xf]
        %v504 = vld [vmem:[%s373 + $0xa0] sm:$0xf]
        %v505 = vld [vmem:[%s373 + $0xa4] sm:$0xf]
        %v506 = vld [vmem:[%s373 + $0xa8] sm:$0xf]
        %v507 = vld [vmem:[%s373 + $0xac] sm:$0xf]
        %v508 = vld [vmem:[%s373 + $0xb0] sm:$0xf]
        %v509 = vld [vmem:[%s373 + $0xb4] sm:$0xf]
        %v510 = vld [vmem:[%s373 + $0xb8] sm:$0xf]
        %v511 = vld [vmem:[%s373 + $0xbc] sm:$0xf]
        %v512 = vpack.c.bf16 %v461, %v460
        %v513 = vpack.c.bf16 %v463, %v462
        %v514 = vld [vmem:[%s368] sm:$0xff]
        %v515 = vld [vmem:[%s368 + $0x8] sm:$0xff]
        %v516 = vld [vmem:[%s368 + $0x10] sm:$0xff]
        %v517 = vld [vmem:[%s368 + $0x18] sm:$0xff]
        %v518 = vld [vmem:[%s368 + $0x20] sm:$0xff]
        %v519 = vld [vmem:[%s368 + $0x28] sm:$0xff]
        %v520 = vld [vmem:[%s368 + $0x30] sm:$0xff]
        %v521 = vld [vmem:[%s368 + $0x38] sm:$0xff]
        %v522 = vld [vmem:[%s368 + $0x40] sm:$0xff]
        %v523 = vld [vmem:[%s368 + $0x48] sm:$0xff]
        %v524 = vld [vmem:[%s368 + $0x50] sm:$0xff]
        %v525 = vld [vmem:[%s368 + $0x58] sm:$0xff]
        %v526 = vld [vmem:[%s368 + $0x60] sm:$0xff]
        %v527 = vld [vmem:[%s368 + $0x68] sm:$0xff]
        %v528 = vld [vmem:[%s368 + $0x70] sm:$0xff]
        %v529 = vld [vmem:[%s368 + $0x78] sm:$0xff]
        %v530 = vld [vmem:[%s368 + $0x80] sm:$0xff]
        %v531 = vld [vmem:[%s368 + $0x88] sm:$0xff]
        %v532 = vld [vmem:[%s368 + $0x90] sm:$0xff]
        %v533 = vld [vmem:[%s368 + $0x98] sm:$0xff]
        %v534 = vld [vmem:[%s368 + $0xa0] sm:$0xff]
        %v535 = vld [vmem:[%s368 + $0xa8] sm:$0xff]
        %v536 = vld [vmem:[%s368 + $0xb0] sm:$0xff]
        %v537 = vld [vmem:[%s368 + $0xb8] sm:$0xff]
        %v538 = vld [vmem:[%s368 + $0xc0] sm:$0xff]
        %v539 = vld [vmem:[%s368 + $0xc8] sm:$0xff]
        %v540 = vld [vmem:[%s368 + $0xd0] sm:$0xff]
        %v541 = vld [vmem:[%s368 + $0xd8] sm:$0xff]
        %v542 = vld [vmem:[%s368 + $0xe0] sm:$0xff]
        %v543 = vld [vmem:[%s368 + $0xe8] sm:$0xff]
        %v544 = vld [vmem:[%s368 + $0xf0] sm:$0xff]
        %v545 = vld [vmem:[%s368 + $0xf8] sm:$0xff]
        %v546 = vld [vmem:[%s368 + $0x100] sm:$0xff]
        %v547 = vld [vmem:[%s368 + $0x108] sm:$0xff]
        %v548 = vld [vmem:[%s368 + $0x110] sm:$0xff]
        %v549 = vld [vmem:[%s368 + $0x118] sm:$0xff]
        %v550 = vld [vmem:[%s368 + $0x120] sm:$0xff]
        %v551 = vld [vmem:[%s368 + $0x128] sm:$0xff]
        %v552 = vld [vmem:[%s368 + $0x130] sm:$0xff]
        %v553 = vld [vmem:[%s368 + $0x138] sm:$0xff]
        %v554 = vld [vmem:[%s368 + $0x140] sm:$0xff]
        %v555 = vld [vmem:[%s368 + $0x148] sm:$0xff]
        %v556 = vld [vmem:[%s368 + $0x150] sm:$0xff]
        %v557 = vld [vmem:[%s368 + $0x158] sm:$0xff]
        %v558 = vld [vmem:[%s368 + $0x160] sm:$0xff]
        %v559 = vld [vmem:[%s368 + $0x168] sm:$0xff]
        %v560 = vld [vmem:[%s368 + $0x170] sm:$0xff]
        %v561 = vld [vmem:[%s368 + $0x178] sm:$0xff]
        %563 = vset.pattern.permute.xlu0 0
        %564 = vperm.xlu0 %563, %v514
        %v565 = vpop.permute.xlu0 %564
        %568 = vset.pattern.permute.xlu0 0
        %569 = vperm.xlu0 %568, %v515
        %v570 = vpop.permute.xlu0 %569
        %573 = vset.pattern.permute.xlu0 0
        %574 = vperm.xlu0 %573, %v516
        %v575 = vpop.permute.xlu0 %574
        %578 = vset.pattern.permute.xlu0 0
        %579 = vperm.xlu0 %578, %v517
        %v580 = vpop.permute.xlu0 %579
        %583 = vset.pattern.permute.xlu0 0
        %584 = vperm.xlu0 %583, %v518
        %v585 = vpop.permute.xlu0 %584
        %588 = vset.pattern.permute.xlu0 0
        %589 = vperm.xlu0 %588, %v519
        %v590 = vpop.permute.xlu0 %589
        %593 = vset.pattern.permute.xlu0 0
        %594 = vperm.xlu0 %593, %v520
        %v595 = vpop.permute.xlu0 %594
        %598 = vset.pattern.permute.xlu0 0
        %599 = vperm.xlu0 %598, %v521
        %v600 = vpop.permute.xlu0 %599
        %603 = vset.pattern.permute.xlu0 0
        %604 = vperm.xlu0 %603, %v522
        %v605 = vpop.permute.xlu0 %604
        %608 = vset.pattern.permute.xlu0 0
        %609 = vperm.xlu0 %608, %v523
        %v610 = vpop.permute.xlu0 %609
        %613 = vset.pattern.permute.xlu0 0
        %614 = vperm.xlu0 %613, %v524
        %v615 = vpop.permute.xlu0 %614
        %618 = vset.pattern.permute.xlu0 0
        %619 = vperm.xlu0 %618, %v525
        %v620 = vpop.permute.xlu0 %619
        %623 = vset.pattern.permute.xlu0 0
        %624 = vperm.xlu0 %623, %v526
        %v625 = vpop.permute.xlu0 %624
        %628 = vset.pattern.permute.xlu0 0
        %629 = vperm.xlu0 %628, %v527
        %v630 = vpop.permute.xlu0 %629
        %633 = vset.pattern.permute.xlu0 0
        %634 = vperm.xlu0 %633, %v528
        %v635 = vpop.permute.xlu0 %634
        %638 = vset.pattern.permute.xlu0 0
        %639 = vperm.xlu0 %638, %v529
        %v640 = vpop.permute.xlu0 %639
        %643 = vset.pattern.permute.xlu0 0
        %644 = vperm.xlu0 %643, %v530
        %v645 = vpop.permute.xlu0 %644
        %648 = vset.pattern.permute.xlu0 0
        %649 = vperm.xlu0 %648, %v531
        %v650 = vpop.permute.xlu0 %649
        %653 = vset.pattern.permute.xlu0 0
        %654 = vperm.xlu0 %653, %v532
        %v655 = vpop.permute.xlu0 %654
        %658 = vset.pattern.permute.xlu0 0
        %659 = vperm.xlu0 %658, %v533
        %v660 = vpop.permute.xlu0 %659
        %663 = vset.pattern.permute.xlu0 0
        %664 = vperm.xlu0 %663, %v534
        %v665 = vpop.permute.xlu0 %664
        %668 = vset.pattern.permute.xlu0 0
        %669 = vperm.xlu0 %668, %v535
        %v670 = vpop.permute.xlu0 %669
        %673 = vset.pattern.permute.xlu0 0
        %674 = vperm.xlu0 %673, %v536
        %v675 = vpop.permute.xlu0 %674
        %678 = vset.pattern.permute.xlu0 0
        %679 = vperm.xlu0 %678, %v537
        %v680 = vpop.permute.xlu0 %679
        %683 = vset.pattern.permute.xlu0 0
        %684 = vperm.xlu0 %683, %v538
        %v685 = vpop.permute.xlu0 %684
        %688 = vset.pattern.permute.xlu0 0
        %689 = vperm.xlu0 %688, %v539
        %v690 = vpop.permute.xlu0 %689
        %693 = vset.pattern.permute.xlu0 0
        %694 = vperm.xlu0 %693, %v540
        %v695 = vpop.permute.xlu0 %694
        %698 = vset.pattern.permute.xlu0 0
        %699 = vperm.xlu0 %698, %v541
        %v700 = vpop.permute.xlu0 %699
        %703 = vset.pattern.permute.xlu0 0
        %704 = vperm.xlu0 %703, %v542
        %v705 = vpop.permute.xlu0 %704
        %708 = vset.pattern.permute.xlu0 0
        %709 = vperm.xlu0 %708, %v543
        %v710 = vpop.permute.xlu0 %709
        %713 = vset.pattern.permute.xlu0 0
        %714 = vperm.xlu0 %713, %v544
        %v715 = vpop.permute.xlu0 %714
        %718 = vset.pattern.permute.xlu0 0
        %719 = vperm.xlu0 %718, %v545
        %v720 = vpop.permute.xlu0 %719
        %723 = vset.pattern.permute.xlu0 0
        %724 = vperm.xlu0 %723, %v546
        %v725 = vpop.permute.xlu0 %724
        %728 = vset.pattern.permute.xlu0 0
        %729 = vperm.xlu0 %728, %v547
        %v730 = vpop.permute.xlu0 %729
        %733 = vset.pattern.permute.xlu0 0
        %734 = vperm.xlu0 %733, %v548
        %v735 = vpop.permute.xlu0 %734
        %738 = vset.pattern.permute.xlu0 0
        %739 = vperm.xlu0 %738, %v549
        %v740 = vpop.permute.xlu0 %739
        %743 = vset.pattern.permute.xlu0 0
        %744 = vperm.xlu0 %743, %v550
        %v745 = vpop.permute.xlu0 %744
        %748 = vset.pattern.permute.xlu0 0
        %749 = vperm.xlu0 %748, %v551
        %v750 = vpop.permute.xlu0 %749
        %753 = vset.pattern.permute.xlu0 0
        %754 = vperm.xlu0 %753, %v552
        %v755 = vpop.permute.xlu0 %754
        %758 = vset.pattern.permute.xlu0 0
        %759 = vperm.xlu0 %758, %v553
        %v760 = vpop.permute.xlu0 %759
        %763 = vset.pattern.permute.xlu0 0
        %764 = vperm.xlu0 %763, %v554
        %v765 = vpop.permute.xlu0 %764
        %768 = vset.pattern.permute.xlu0 0
        %769 = vperm.xlu0 %768, %v555
        %v770 = vpop.permute.xlu0 %769
        %773 = vset.pattern.permute.xlu0 0
        %774 = vperm.xlu0 %773, %v556
        %v775 = vpop.permute.xlu0 %774
        %778 = vset.pattern.permute.xlu0 0
        %779 = vperm.xlu0 %778, %v557
        %v780 = vpop.permute.xlu0 %779
        %783 = vset.pattern.permute.xlu0 0
        %784 = vperm.xlu0 %783, %v558
        %v785 = vpop.permute.xlu0 %784
        %788 = vset.pattern.permute.xlu0 0
        %789 = vperm.xlu0 %788, %v559
        %v790 = vpop.permute.xlu0 %789
        %793 = vset.pattern.permute.xlu0 0
        %794 = vperm.xlu0 %793, %v560
        %v795 = vpop.permute.xlu0 %794
        %798 = vset.pattern.permute.xlu0 0
        %799 = vperm.xlu0 %798, %v561
        %v800 = vpop.permute.xlu0 %799
        %v850 = vunpack.c.l.b16 %v464
        %v851 = vunpack.c.l.b16 %v465
        %v852 = vunpack.c.l.b16 %v466
        %v853 = vunpack.c.l.b16 %v467
        %v854 = vunpack.c.l.b16 %v468
        %v855 = vunpack.c.l.b16 %v469
        %v856 = vunpack.c.l.b16 %v470
        %v857 = vunpack.c.l.b16 %v471
        %v858 = vunpack.c.l.b16 %v472
        %v859 = vunpack.c.l.b16 %v473
        %v860 = vunpack.c.l.b16 %v474
        %v861 = vunpack.c.l.b16 %v475
        %v862 = vunpack.c.l.b16 %v476
        %v863 = vunpack.c.l.b16 %v477
        %v864 = vunpack.c.l.b16 %v478
        %v865 = vunpack.c.l.b16 %v479
        %v866 = vunpack.c.l.b16 %v480
        %v867 = vunpack.c.l.b16 %v481
        %v868 = vunpack.c.l.b16 %v482
        %v869 = vunpack.c.l.b16 %v483
        %v870 = vunpack.c.l.b16 %v484
        %v871 = vunpack.c.l.b16 %v485
        %v872 = vunpack.c.l.b16 %v486
        %v873 = vunpack.c.l.b16 %v487
        %v874 = vunpack.c.l.b16 %v488
        %v875 = vunpack.c.l.b16 %v489
        %v876 = vunpack.c.l.b16 %v490
        %v877 = vunpack.c.l.b16 %v491
        %v878 = vunpack.c.l.b16 %v492
        %v879 = vunpack.c.l.b16 %v493
        %v880 = vunpack.c.l.b16 %v494
        %v881 = vunpack.c.l.b16 %v495
        %v882 = vunpack.c.l.b16 %v496
        %v883 = vunpack.c.l.b16 %v497
        %v884 = vunpack.c.l.b16 %v498
        %v885 = vunpack.c.l.b16 %v499
        %v886 = vunpack.c.l.b16 %v500
        %v887 = vunpack.c.l.b16 %v501
        %v888 = vunpack.c.l.b16 %v502
        %v889 = vunpack.c.l.b16 %v503
        %v890 = vunpack.c.l.b16 %v504
        %v891 = vunpack.c.l.b16 %v505
        %v892 = vunpack.c.l.b16 %v506
        %v893 = vunpack.c.l.b16 %v507
        %v894 = vunpack.c.l.b16 %v508
        %v895 = vunpack.c.l.b16 %v509
        %v896 = vunpack.c.l.b16 %v510
        %v897 = vunpack.c.l.b16 %v511
        %v898 = vpack.c.b16 %v851, %v850
        %v899 = vpack.c.b16 %v853, %v852
        %v900 = vpack.c.b16 %v855, %v854
        %v901 = vpack.c.b16 %v857, %v856
        %v902 = vpack.c.b16 %v859, %v858
        %v903 = vpack.c.b16 %v861, %v860
        %v904 = vpack.c.b16 %v863, %v862
        %v905 = vpack.c.b16 %v865, %v864
        %v906 = vpack.c.b16 %v867, %v866
        %v907 = vpack.c.b16 %v869, %v868
        %v908 = vpack.c.b16 %v871, %v870
        %v909 = vpack.c.b16 %v873, %v872
        %v910 = vpack.c.b16 %v875, %v874
        %v911 = vpack.c.b16 %v877, %v876
        %v912 = vpack.c.b16 %v879, %v878
        %v913 = vpack.c.b16 %v881, %v880
        %v914 = vpack.c.b16 %v883, %v882
        %v915 = vpack.c.b16 %v885, %v884
        %v916 = vpack.c.b16 %v887, %v886
        %v917 = vpack.c.b16 %v889, %v888
        %v918 = vpack.c.b16 %v891, %v890
        %v919 = vpack.c.b16 %v893, %v892
        %v920 = vpack.c.b16 %v895, %v894
        %v921 = vpack.c.b16 %v897, %v896
        %946 = vmatprep.subr.bf16.mxu0 0
        %947 = vmatpush1.bf16.xpose.msra.mxu0 0
        %948 = vmatprep.subr.bf16.mxu0 0
        %949 = vmatpush1.bf16.xpose.msra.mxu0 0
        %950 = vmatprep.subr.bf16.mxu0 0
        %951 = vmatpush1.bf16.xpose.msra.mxu0 0
        %952 = vmatprep.subr.bf16.mxu0 0
        %953 = vmatpush1.bf16.xpose.msra.mxu0 0
        %954 = vmatprep.subr.bf16.mxu0 0
        %955 = vmatpush1.bf16.xpose.msra.mxu0 0
        %956 = vmatprep.subr.bf16.mxu0 0
        %957 = vmatpush1.bf16.xpose.msra.mxu0 0
        %958 = vmatprep.subr.bf16.mxu0 0
        %959 = vmatpush1.bf16.xpose.msra.mxu0 %v513
        %960 = vmatprep.subr.bf16.mxu0 0
        %961 = vmatpush1.bf16.xpose.msra.mxu0 %v512
        %962 = vmatprep.subr.bf16.mxu0 0
        %963 = vmatpush2.bf16.xpose.msra.mxu0 0
        %964 = vmatprep.subr.bf16.mxu0 0
        %965 = vmatpush2.bf16.xpose.msra.mxu0 0
        %966 = vmatprep.subr.bf16.mxu0 0
        %967 = vmatpush2.bf16.xpose.msra.mxu0 0
        %968 = vmatprep.subr.bf16.mxu0 0
        %969 = vmatpush2.bf16.xpose.msra.mxu0 0
        %970 = vmatprep.subr.bf16.mxu0 0
        %971 = vmatpush2.bf16.xpose.msra.mxu0 0
        %972 = vmatprep.subr.bf16.mxu0 0
        %973 = vmatpush2.bf16.xpose.msra.mxu0 0
        %974 = vmatprep.subr.bf16.mxu0 0
        %975 = vmatpush2.bf16.xpose.msra.mxu0 0
        %976 = vmatprep.subr.bf16.mxu0 0
        %977 = vmatpush2.bf16.xpose.msra.mxu0 0
        %978 = vmatprep.mubr.bf16.mxu0 0
        %979 = vmatmul.mubr.bf16.gmra.mxu0 %v898
        %v980 = vpop.f32.mrf.mxu0
        %v981 = vadd.f32 %v565, %v980
        %v982 = vpop.f32.mrf.mxu0
        %v983 = vpop.f32.mrf.mxu0
        %v984 = vadd.f32 %v570, %v983
        %v985 = vpop.f32.mrf.mxu0
        %986 = vmatprep.mubr.bf16.mxu0 0
        %987 = vmatmul.mubr.bf16.gmra.mxu0 %v899
        %v988 = vpop.f32.mrf.mxu0
        %v989 = vadd.f32 %v575, %v988
        %v990 = vpop.f32.mrf.mxu0
        %v991 = vpop.f32.mrf.mxu0
        %v992 = vadd.f32 %v580, %v991
        %v993 = vpop.f32.mrf.mxu0
        %994 = vmatprep.mubr.bf16.mxu0 0
        %995 = vmatmul.mubr.bf16.gmra.mxu0 %v900
        %v996 = vpop.f32.mrf.mxu0
        %v997 = vadd.f32 %v585, %v996
        %v998 = vpop.f32.mrf.mxu0
        %v999 = vpop.f32.mrf.mxu0
        %v1000 = vadd.f32 %v590, %v999
        %v1001 = vpop.f32.mrf.mxu0
        %1002 = vmatprep.mubr.bf16.mxu0 0
        %1003 = vmatmul.mubr.bf16.gmra.mxu0 %v901
        %v1004 = vpop.f32.mrf.mxu0
        %v1005 = vadd.f32 %v595, %v1004
        %v1006 = vpop.f32.mrf.mxu0
        %v1007 = vpop.f32.mrf.mxu0
        %v1008 = vadd.f32 %v600, %v1007
        %v1009 = vpop.f32.mrf.mxu0
        %1010 = vmatprep.mubr.bf16.mxu0 0
        %1011 = vmatmul.mubr.bf16.gmra.mxu0 %v902
        %v1012 = vpop.f32.mrf.mxu0
        %v1013 = vadd.f32 %v605, %v1012
        %v1014 = vpop.f32.mrf.mxu0
        %v1015 = vpop.f32.mrf.mxu0
        %v1016 = vadd.f32 %v610, %v1015
        %v1017 = vpop.f32.mrf.mxu0
        %1018 = vmatprep.mubr.bf16.mxu0 0
        %1019 = vmatmul.mubr.bf16.gmra.mxu0 %v903
        %v1020 = vpop.f32.mrf.mxu0
        %v1021 = vadd.f32 %v615, %v1020
        %v1022 = vpop.f32.mrf.mxu0
        %v1023 = vpop.f32.mrf.mxu0
        %v1024 = vadd.f32 %v620, %v1023
        %v1025 = vpop.f32.mrf.mxu0
        %1026 = vmatprep.mubr.bf16.mxu0 0
        %1027 = vmatmul.mubr.bf16.gmra.mxu0 %v904
        %v1028 = vpop.f32.mrf.mxu0
        %v1029 = vadd.f32 %v625, %v1028
        %v1030 = vpop.f32.mrf.mxu0
        %v1031 = vpop.f32.mrf.mxu0
        %v1032 = vadd.f32 %v630, %v1031
        %v1033 = vpop.f32.mrf.mxu0
        %1034 = vmatprep.mubr.bf16.mxu0 0
        %1035 = vmatmul.mubr.bf16.gmra.mxu0 %v905
        %v1036 = vpop.f32.mrf.mxu0
        %v1037 = vadd.f32 %v635, %v1036
        %v1038 = vpop.f32.mrf.mxu0
        %v1039 = vpop.f32.mrf.mxu0
        %v1040 = vadd.f32 %v640, %v1039
        %v1041 = vpop.f32.mrf.mxu0
        %1042 = vmatprep.mubr.bf16.mxu0 0
        %1043 = vmatmul.mubr.bf16.gmra.mxu0 %v906
        %v1044 = vpop.f32.mrf.mxu0
        %v1045 = vadd.f32 %v645, %v1044
        %v1046 = vpop.f32.mrf.mxu0
        %v1047 = vpop.f32.mrf.mxu0
        %v1048 = vadd.f32 %v650, %v1047
        %v1049 = vpop.f32.mrf.mxu0
        %1050 = vmatprep.mubr.bf16.mxu0 0
        %1051 = vmatmul.mubr.bf16.gmra.mxu0 %v907
        %v1052 = vpop.f32.mrf.mxu0
        %v1053 = vadd.f32 %v655, %v1052
        %v1054 = vpop.f32.mrf.mxu0
        %v1055 = vpop.f32.mrf.mxu0
        %v1056 = vadd.f32 %v660, %v1055
        %v1057 = vpop.f32.mrf.mxu0
        %1058 = vmatprep.mubr.bf16.mxu0 0
        %1059 = vmatmul.mubr.bf16.gmra.mxu0 %v908
        %v1060 = vpop.f32.mrf.mxu0
        %v1061 = vadd.f32 %v665, %v1060
        %v1062 = vpop.f32.mrf.mxu0
        %v1063 = vpop.f32.mrf.mxu0
        %v1064 = vadd.f32 %v670, %v1063
        %v1065 = vpop.f32.mrf.mxu0
        %1066 = vmatprep.mubr.bf16.mxu0 0
        %1067 = vmatmul.mubr.bf16.gmra.mxu0 %v909
        %v1068 = vpop.f32.mrf.mxu0
        %v1069 = vadd.f32 %v675, %v1068
        %v1070 = vpop.f32.mrf.mxu0
        %v1071 = vpop.f32.mrf.mxu0
        %v1072 = vadd.f32 %v680, %v1071
        %v1073 = vpop.f32.mrf.mxu0
        %1074 = vmatprep.mubr.bf16.mxu0 0
        %1075 = vmatmul.mubr.bf16.gmra.mxu0 %v910
        %v1076 = vpop.f32.mrf.mxu0
        %v1077 = vadd.f32 %v685, %v1076
        %v1078 = vpop.f32.mrf.mxu0
        %v1079 = vpop.f32.mrf.mxu0
        %v1080 = vadd.f32 %v690, %v1079
        %v1081 = vpop.f32.mrf.mxu0
        %1082 = vmatprep.mubr.bf16.mxu0 0
        %1083 = vmatmul.mubr.bf16.gmra.mxu0 %v911
        %v1084 = vpop.f32.mrf.mxu0
        %v1085 = vadd.f32 %v695, %v1084
        %v1086 = vpop.f32.mrf.mxu0
        %v1087 = vpop.f32.mrf.mxu0
        %v1088 = vadd.f32 %v700, %v1087
        %v1089 = vpop.f32.mrf.mxu0
        %1090 = vmatprep.mubr.bf16.mxu0 0
        %1091 = vmatmul.mubr.bf16.gmra.mxu0 %v912
        %v1092 = vpop.f32.mrf.mxu0
        %v1093 = vadd.f32 %v705, %v1092
        %v1094 = vpop.f32.mrf.mxu0
        %v1095 = vpop.f32.mrf.mxu0
        %v1096 = vadd.f32 %v710, %v1095
        %v1097 = vpop.f32.mrf.mxu0
        %1098 = vmatprep.mubr.bf16.mxu0 0
        %1099 = vmatmul.mubr.bf16.gmra.mxu0 %v913
        %v1100 = vpop.f32.mrf.mxu0
        %v1101 = vadd.f32 %v715, %v1100
        %v1102 = vpop.f32.mrf.mxu0
        %v1103 = vpop.f32.mrf.mxu0
        %v1104 = vadd.f32 %v720, %v1103
        %v1105 = vpop.f32.mrf.mxu0
        %1106 = vmatprep.mubr.bf16.mxu0 0
        %1107 = vmatmul.mubr.bf16.gmra.mxu0 %v914
        %v1108 = vpop.f32.mrf.mxu0
        %v1109 = vadd.f32 %v725, %v1108
        %v1110 = vpop.f32.mrf.mxu0
        %v1111 = vpop.f32.mrf.mxu0
        %v1112 = vadd.f32 %v730, %v1111
        %v1113 = vpop.f32.mrf.mxu0
        %1114 = vmatprep.mubr.bf16.mxu0 0
        %1115 = vmatmul.mubr.bf16.gmra.mxu0 %v915
        %v1116 = vpop.f32.mrf.mxu0
        %v1117 = vadd.f32 %v735, %v1116
        %v1118 = vpop.f32.mrf.mxu0
        %v1119 = vpop.f32.mrf.mxu0
        %v1120 = vadd.f32 %v740, %v1119
        %v1121 = vpop.f32.mrf.mxu0
        %1122 = vmatprep.mubr.bf16.mxu0 0
        %1123 = vmatmul.mubr.bf16.gmra.mxu0 %v916
        %v1124 = vpop.f32.mrf.mxu0
        %v1125 = vadd.f32 %v745, %v1124
        %v1126 = vpop.f32.mrf.mxu0
        %v1127 = vpop.f32.mrf.mxu0
        %v1128 = vadd.f32 %v750, %v1127
        %v1129 = vpop.f32.mrf.mxu0
        %1130 = vmatprep.mubr.bf16.mxu0 0
        %1131 = vmatmul.mubr.bf16.gmra.mxu0 %v917
        %v1132 = vpop.f32.mrf.mxu0
        %v1133 = vadd.f32 %v755, %v1132
        %v1134 = vpop.f32.mrf.mxu0
        %v1135 = vpop.f32.mrf.mxu0
        %v1136 = vadd.f32 %v760, %v1135
        %v1137 = vpop.f32.mrf.mxu0
        %1138 = vmatprep.mubr.bf16.mxu0 0
        %1139 = vmatmul.mubr.bf16.gmra.mxu0 %v918
        %v1140 = vpop.f32.mrf.mxu0
        %v1141 = vadd.f32 %v765, %v1140
        %v1142 = vpop.f32.mrf.mxu0
        %v1143 = vpop.f32.mrf.mxu0
        %v1144 = vadd.f32 %v770, %v1143
        %v1145 = vpop.f32.mrf.mxu0
        %1146 = vmatprep.mubr.bf16.mxu0 0
        %1147 = vmatmul.mubr.bf16.gmra.mxu0 %v919
        %v1148 = vpop.f32.mrf.mxu0
        %v1149 = vadd.f32 %v775, %v1148
        %v1150 = vpop.f32.mrf.mxu0
        %v1151 = vpop.f32.mrf.mxu0
        %v1152 = vadd.f32 %v780, %v1151
        %v1153 = vpop.f32.mrf.mxu0
        %1154 = vmatprep.mubr.bf16.mxu0 0
        %1155 = vmatmul.mubr.bf16.gmra.mxu0 %v920
        %v1156 = vpop.f32.mrf.mxu0
        %v1157 = vadd.f32 %v785, %v1156
        %v1158 = vpop.f32.mrf.mxu0
        %v1159 = vpop.f32.mrf.mxu0
        %v1160 = vadd.f32 %v790, %v1159
        %v1161 = vpop.f32.mrf.mxu0
        %1162 = vmatprep.mubr.bf16.mxu0 0
        %1163 = vmatmul.mubr.bf16.gmra.mxu0 %v921
        %v1164 = vpop.f32.mrf.mxu0
        %v1165 = vadd.f32 %v795, %v1164
        %v1166 = vpop.f32.mrf.mxu0
        %v1167 = vpop.f32.mrf.mxu0
        %v1168 = vadd.f32 %v800, %v1167
        %v1169 = vpop.f32.mrf.mxu0
        %1170 = vdwg.mxu0
        %v1171 = vmul.f32 %v981, 0.17677669
        %v1172 = vmul.f32 %v984, 0.17677669
        %v1173 = vmul.f32 %v989, 0.17677669
        %v1174 = vmul.f32 %v992, 0.17677669
        %v1175 = vpack.c.bf16 %v1172, %v1171
        %v1176 = vpack.c.bf16 %v1174, %v1173
        %v1177 = vpack.c.bf16 %v1048, %v1045
        %v1178 = vpack.c.bf16 %v1056, %v1053
        %v1179 = vpack.c.bf16 %v1112, %v1109
        %v1180 = vpack.c.bf16 %v1120, %v1117
        %1181 = vxpose.xlu0.c.b16.start [1/8] %v1175, 128
        %1182 = vxpose.xlu0.c.b16.cont [2/8] %v1176, 128
        %1183 = vxpose.xlu0.c.b16.cont [3/8] 0, 128
        %1184 = vxpose.xlu0.c.b16.cont [4/8] 0, 128
        %1185 = vxpose.xlu0.c.b16.cont [5/8] 0, 128
        %1186 = vxpose.xlu0.c.b16.cont [6/8] 0, 128
        %1187 = vxpose.xlu0.c.b16.cont [7/8] 0, 128
        %1188 = vxpose.xlu0.c.b16.end [8/8] 0, 128
        %v1189 = vpop.trf.xlu0
        %v1190 = vpop.trf.xlu0
        %v1191 = vpop.trf.xlu0
        %v1192 = vpop.trf.xlu0
        %v1193 = vpop.trf.xlu0
        %v1194 = vpop.trf.xlu0
        %v1195 = vpop.trf.xlu0
        %v1196 = vpop.trf.xlu0
        %vm1197 = vcmask 261120
        %v1199 = vsel %vm1197, %v1189, 0
        %1201 = vmatprep.subr.bf16.mxu0 0
        %1202 = vmatpush1.bf16.msra.mxu0 0
        %1203 = vmatprep.subr.bf16.mxu0 0
        %1204 = vmatpush1.bf16.msra.mxu0 0
        %1205 = vmatprep.subr.bf16.mxu0 0
        %1206 = vmatpush1.bf16.msra.mxu0 0
        %1207 = vmatprep.subr.bf16.mxu0 0
        %1208 = vmatpush1.bf16.msra.mxu0 0
        %1209 = vmatprep.subr.bf16.mxu0 0
        %1210 = vmatpush1.bf16.msra.mxu0 0
        %1211 = vmatprep.subr.bf16.mxu0 0
        %1212 = vmatpush1.bf16.msra.mxu0 0
        %1213 = vmatprep.subr.bf16.mxu0 0
        %1214 = vmatpush1.bf16.msra.mxu0 %v1178
        %1215 = vmatprep.subr.bf16.mxu0 0
        %1216 = vmatpush1.bf16.msra.mxu0 %v1177
        %1217 = vmatprep.subr.bf16.mxu0 0
        %1218 = vmatpush2.bf16.msra.mxu0 0
        %1219 = vmatprep.subr.bf16.mxu0 0
        %1220 = vmatpush2.bf16.msra.mxu0 0
        %1221 = vmatprep.subr.bf16.mxu0 0
        %1222 = vmatpush2.bf16.msra.mxu0 0
        %1223 = vmatprep.subr.bf16.mxu0 0
        %1224 = vmatpush2.bf16.msra.mxu0 0
        %1225 = vmatprep.subr.bf16.mxu0 0
        %1226 = vmatpush2.bf16.msra.mxu0 0
        %1227 = vmatprep.subr.bf16.mxu0 0
        %1228 = vmatpush2.bf16.msra.mxu0 0
        %1229 = vmatprep.subr.bf16.mxu0 0
        %1230 = vmatpush2.bf16.msra.mxu0 0
        %1231 = vmatprep.subr.bf16.mxu0 0
        %1232 = vmatpush2.bf16.msra.mxu0 0
        %1233 = vmatprep.mubr.bf16.mxu0 0
        %1234 = vmatmul.mubr.bf16.gmra.mxu0 %v1199
        %v1235 = vpop.f32.mrf.mxu0
        %v1236 = vadd.f32 0.0, %v1235
        %v1237 = vpop.f32.mrf.mxu0
        %v1238 = vpop.f32.mrf.mxu0
        %v1239 = vadd.f32 0.0, %v1238
        %v1240 = vpop.f32.mrf.mxu0
        %1241 = vdwg.mxu0
        %vm1242 = vcmask 130048
        %v1243 = vsel %vm1242, %v1236, -inf
        %1244 = vmax.xlane.f32.xlu0 %v1243
        %v1245 = vpop.xlane.xlu0 %1244
        %v1246 = vsel %vm1242, %v1239, -inf
        %1247 = vmax.xlane.f32.xlu0 %v1246
        %v1248 = vpop.xlane.xlu0 %1247
        %v1249 = vsub.f32 %v1236, %v1245
        %v1250 = vsub.f32 %v1239, %v1248
        %v1251 = vmul.f32 %v1249, 1.442695
        %v1252 = vpow.pop %v1251
        %v1253 = vmul.f32 %v1250, 1.442695
        %v1254 = vpow.pop %v1253
        %v1255 = vsel %vm1242, %v1252, 0.0
        %1256 = vadd.xlane.f32.xlu0 %v1255
        %v1257 = vpop.xlane.xlu0 %1256
        %v1258 = vsel %vm1242, %v1254, 0.0
        %1259 = vadd.xlane.f32.xlu0 %v1258
        %v1260 = vpop.xlane.xlu0 %1259
        %v1261 = vrcp.pop %v1257
        %v1262 = vrcp.pop %v1260
        %v1263 = vmul.f32 %v1252, %v1261
        %v1264 = vmul.f32 %v1254, %v1262
        %v1265 = vpack.c.bf16 %v1264, %v1263
        %v1267 = vsel %vm1242, %v1179, 0
        %v1270 = vsel %vm1242, %v1180, 0
        %v1273 = vsel %vm1242, %v1265, 0
        %1275 = vmatprep.subr.bf16.mxu0 0
        %1276 = vmatpush1.bf16.xpose.msra.mxu0 0
        %1277 = vmatprep.subr.bf16.mxu0 0
        %1278 = vmatpush1.bf16.xpose.msra.mxu0 0
        %1279 = vmatprep.subr.bf16.mxu0 0
        %1280 = vmatpush1.bf16.xpose.msra.mxu0 0
        %1281 = vmatprep.subr.bf16.mxu0 0
        %1282 = vmatpush1.bf16.xpose.msra.mxu0 0
        %1283 = vmatprep.subr.bf16.mxu0 0
        %1284 = vmatpush1.bf16.xpose.msra.mxu0 0
        %1285 = vmatprep.subr.bf16.mxu0 0
        %1286 = vmatpush1.bf16.xpose.msra.mxu0 0
        %1287 = vmatprep.subr.bf16.mxu0 0
        %1288 = vmatpush1.bf16.xpose.msra.mxu0 0
        %1289 = vmatprep.subr.bf16.mxu0 0
        %1290 = vmatpush1.bf16.xpose.msra.mxu0 %v1273
        %1291 = vmatprep.subr.bf16.mxu0 0
        %1292 = vmatpush2.bf16.xpose.msra.mxu0 0
        %1293 = vmatprep.subr.bf16.mxu0 0
        %1294 = vmatpush2.bf16.xpose.msra.mxu0 0
        %1295 = vmatprep.subr.bf16.mxu0 0
        %1296 = vmatpush2.bf16.xpose.msra.mxu0 0
        %1297 = vmatprep.subr.bf16.mxu0 0
        %1298 = vmatpush2.bf16.xpose.msra.mxu0 0
        %1299 = vmatprep.subr.bf16.mxu0 0
        %1300 = vmatpush2.bf16.xpose.msra.mxu0 0
        %1301 = vmatprep.subr.bf16.mxu0 0
        %1302 = vmatpush2.bf16.xpose.msra.mxu0 0
        %1303 = vmatprep.subr.bf16.mxu0 0
        %1304 = vmatpush2.bf16.xpose.msra.mxu0 0
        %1305 = vmatprep.subr.bf16.mxu0 0
        %1306 = vmatpush2.bf16.xpose.msra.mxu0 0
        %1307 = vmatprep.mubr.bf16.mxu0 0
        %1308 = vmatmul.mubr.bf16.gmra.mxu0 %v1267
        %v1309 = vpop.f32.mrf.mxu0
        %v1310 = vadd.f32 0.0, %v1309
        %v1311 = vpop.f32.mrf.mxu0
        %v1312 = vpop.f32.mrf.mxu0
        %v1313 = vadd.f32 0.0, %v1312
        %v1314 = vpop.f32.mrf.mxu0
        %1315 = vmatprep.mubr.bf16.mxu0 0
        %1316 = vmatmul.mubr.bf16.gmra.mxu0 %v1270
        %v1317 = vpop.f32.mrf.mxu0
        %v1318 = vadd.f32 0.0, %v1317
        %v1319 = vpop.f32.mrf.mxu0
        %v1320 = vpop.f32.mrf.mxu0
        %v1321 = vadd.f32 0.0, %v1320
        %v1322 = vpop.f32.mrf.mxu0
        %1323 = vdwg.mxu0
        %1324 = vst.msk [vmem:[#allocation2] sm:$0xff] %vm1242, %v1310
        %1325 = vst.msk [vmem:[#allocation2 + $0x8] sm:$0xff] %vm1242, %v1313
        %1326 = vst.msk [vmem:[#allocation2 + $0x10] sm:$0xff] %vm1242, %v1318
        %1327 = vst.msk [vmem:[#allocation2 + $0x18] sm:$0xff] %vm1242, %v1321
        %v1328 = vmul.f32 %v997, 0.17677669
        %v1329 = vmul.f32 %v1000, 0.17677669
        %v1330 = vmul.f32 %v1005, 0.17677669
        %v1331 = vmul.f32 %v1008, 0.17677669
        %v1332 = vpack.c.bf16 %v1329, %v1328
        %v1333 = vpack.c.bf16 %v1331, %v1330
        %v1334 = vpack.c.bf16 %v1064, %v1061
        %v1335 = vpack.c.bf16 %v1072, %v1069
        %v1336 = vpack.c.bf16 %v1128, %v1125
        %v1337 = vpack.c.bf16 %v1136, %v1133
        %1338 = vxpose.xlu0.c.b16.start [1/8] %v1332, 128
        %1339 = vxpose.xlu0.c.b16.cont [2/8] %v1333, 128
        %1340 = vxpose.xlu0.c.b16.cont [3/8] 0, 128
        %1341 = vxpose.xlu0.c.b16.cont [4/8] 0, 128
        %1342 = vxpose.xlu0.c.b16.cont [5/8] 0, 128
        %1343 = vxpose.xlu0.c.b16.cont [6/8] 0, 128
        %1344 = vxpose.xlu0.c.b16.cont [7/8] 0, 128
        %1345 = vxpose.xlu0.c.b16.end [8/8] 0, 128
        %v1346 = vpop.trf.xlu0
        %v1347 = vpop.trf.xlu0
        %v1348 = vpop.trf.xlu0
        %v1349 = vpop.trf.xlu0
        %v1350 = vpop.trf.xlu0
        %v1351 = vpop.trf.xlu0
        %v1352 = vpop.trf.xlu0
        %v1353 = vpop.trf.xlu0
        %v1355 = vsel %vm1197, %v1346, 0
        %1357 = vmatprep.subr.bf16.mxu0 0
        %1358 = vmatpush1.bf16.msra.mxu0 0
        %1359 = vmatprep.subr.bf16.mxu0 0
        %1360 = vmatpush1.bf16.msra.mxu0 0
        %1361 = vmatprep.subr.bf16.mxu0 0
        %1362 = vmatpush1.bf16.msra.mxu0 0
        %1363 = vmatprep.subr.bf16.mxu0 0
        %1364 = vmatpush1.bf16.msra.mxu0 0
        %1365 = vmatprep.subr.bf16.mxu0 0
        %1366 = vmatpush1.bf16.msra.mxu0 0
        %1367 = vmatprep.subr.bf16.mxu0 0
        %1368 = vmatpush1.bf16.msra.mxu0 0
        %1369 = vmatprep.subr.bf16.mxu0 0
        %1370 = vmatpush1.bf16.msra.mxu0 %v1335
        %1371 = vmatprep.subr.bf16.mxu0 0
        %1372 = vmatpush1.bf16.msra.mxu0 %v1334
        %1373 = vmatprep.subr.bf16.mxu0 0
        %1374 = vmatpush2.bf16.msra.mxu0 0
        %1375 = vmatprep.subr.bf16.mxu0 0
        %1376 = vmatpush2.bf16.msra.mxu0 0
        %1377 = vmatprep.subr.bf16.mxu0 0
        %1378 = vmatpush2.bf16.msra.mxu0 0
        %1379 = vmatprep.subr.bf16.mxu0 0
        %1380 = vmatpush2.bf16.msra.mxu0 0
        %1381 = vmatprep.subr.bf16.mxu0 0
        %1382 = vmatpush2.bf16.msra.mxu0 0
        %1383 = vmatprep.subr.bf16.mxu0 0
        %1384 = vmatpush2.bf16.msra.mxu0 0
        %1385 = vmatprep.subr.bf16.mxu0 0
        %1386 = vmatpush2.bf16.msra.mxu0 0
        %1387 = vmatprep.subr.bf16.mxu0 0
        %1388 = vmatpush2.bf16.msra.mxu0 0
        %1389 = vmatprep.mubr.bf16.mxu0 0
        %1390 = vmatmul.mubr.bf16.gmra.mxu0 %v1355
        %v1391 = vpop.f32.mrf.mxu0
        %v1392 = vadd.f32 0.0, %v1391
        %v1393 = vpop.f32.mrf.mxu0
        %v1394 = vpop.f32.mrf.mxu0
        %v1395 = vadd.f32 0.0, %v1394
        %v1396 = vpop.f32.mrf.mxu0
        %1397 = vdwg.mxu0
        %v1398 = vsel %vm1242, %v1392, -inf
        %1399 = vmax.xlane.f32.xlu0 %v1398
        %v1400 = vpop.xlane.xlu0 %1399
        %v1401 = vsel %vm1242, %v1395, -inf
        %1402 = vmax.xlane.f32.xlu0 %v1401
        %v1403 = vpop.xlane.xlu0 %1402
        %v1404 = vsub.f32 %v1392, %v1400
        %v1405 = vsub.f32 %v1395, %v1403
        %v1406 = vmul.f32 %v1404, 1.442695
        %v1407 = vpow.pop %v1406
        %v1408 = vmul.f32 %v1405, 1.442695
        %v1409 = vpow.pop %v1408
        %v1410 = vsel %vm1242, %v1407, 0.0
        %1411 = vadd.xlane.f32.xlu0 %v1410
        %v1412 = vpop.xlane.xlu0 %1411
        %v1413 = vsel %vm1242, %v1409, 0.0
        %1414 = vadd.xlane.f32.xlu0 %v1413
        %v1415 = vpop.xlane.xlu0 %1414
        %v1416 = vrcp.pop %v1412
        %v1417 = vrcp.pop %v1415
        %v1418 = vmul.f32 %v1407, %v1416
        %v1419 = vmul.f32 %v1409, %v1417
        %v1420 = vpack.c.bf16 %v1419, %v1418
        %v1422 = vsel %vm1242, %v1336, 0
        %v1425 = vsel %vm1242, %v1337, 0
        %v1428 = vsel %vm1242, %v1420, 0
        %1430 = vmatprep.subr.bf16.mxu0 0
        %1431 = vmatpush1.bf16.xpose.msra.mxu0 0
        %1432 = vmatprep.subr.bf16.mxu0 0
        %1433 = vmatpush1.bf16.xpose.msra.mxu0 0
        %1434 = vmatprep.subr.bf16.mxu0 0
        %1435 = vmatpush1.bf16.xpose.msra.mxu0 0
        %1436 = vmatprep.subr.bf16.mxu0 0
        %1437 = vmatpush1.bf16.xpose.msra.mxu0 0
        %1438 = vmatprep.subr.bf16.mxu0 0
        %1439 = vmatpush1.bf16.xpose.msra.mxu0 0
        %1440 = vmatprep.subr.bf16.mxu0 0
        %1441 = vmatpush1.bf16.xpose.msra.mxu0 0
        %1442 = vmatprep.subr.bf16.mxu0 0
        %1443 = vmatpush1.bf16.xpose.msra.mxu0 0
        %1444 = vmatprep.subr.bf16.mxu0 0
        %1445 = vmatpush1.bf16.xpose.msra.mxu0 %v1428
        %1446 = vmatprep.subr.bf16.mxu0 0
        %1447 = vmatpush2.bf16.xpose.msra.mxu0 0
        %1448 = vmatprep.subr.bf16.mxu0 0
        %1449 = vmatpush2.bf16.xpose.msra.mxu0 0
        %1450 = vmatprep.subr.bf16.mxu0 0
        %1451 = vmatpush2.bf16.xpose.msra.mxu0 0
        %1452 = vmatprep.subr.bf16.mxu0 0
        %1453 = vmatpush2.bf16.xpose.msra.mxu0 0
        %1454 = vmatprep.subr.bf16.mxu0 0
        %1455 = vmatpush2.bf16.xpose.msra.mxu0 0
        %1456 = vmatprep.subr.bf16.mxu0 0
        %1457 = vmatpush2.bf16.xpose.msra.mxu0 0
        %1458 = vmatprep.subr.bf16.mxu0 0
        %1459 = vmatpush2.bf16.xpose.msra.mxu0 0
        %1460 = vmatprep.subr.bf16.mxu0 0
        %1461 = vmatpush2.bf16.xpose.msra.mxu0 0
        %1462 = vmatprep.mubr.bf16.mxu0 0
        %1463 = vmatmul.mubr.bf16.gmra.mxu0 %v1422
        %v1464 = vpop.f32.mrf.mxu0
        %v1465 = vadd.f32 0.0, %v1464
        %v1466 = vpop.f32.mrf.mxu0
        %v1467 = vpop.f32.mrf.mxu0
        %v1468 = vadd.f32 0.0, %v1467
        %v1469 = vpop.f32.mrf.mxu0
        %1470 = vmatprep.mubr.bf16.mxu0 0
        %1471 = vmatmul.mubr.bf16.gmra.mxu0 %v1425
        %v1472 = vpop.f32.mrf.mxu0
        %v1473 = vadd.f32 0.0, %v1472
        %v1474 = vpop.f32.mrf.mxu0
        %v1475 = vpop.f32.mrf.mxu0
        %v1476 = vadd.f32 0.0, %v1475
        %v1477 = vpop.f32.mrf.mxu0
        %1478 = vdwg.mxu0
        %1479 = vst.msk [vmem:[#allocation2 + $0x20] sm:$0xff] %vm1242, %v1465
        %1480 = vst.msk [vmem:[#allocation2 + $0x28] sm:$0xff] %vm1242, %v1468
        %1481 = vst.msk [vmem:[#allocation2 + $0x30] sm:$0xff] %vm1242, %v1473
        %1482 = vst.msk [vmem:[#allocation2 + $0x38] sm:$0xff] %vm1242, %v1476
        %v1483 = vmul.f32 %v1013, 0.17677669
        %v1484 = vmul.f32 %v1016, 0.17677669
        %v1485 = vmul.f32 %v1021, 0.17677669
        %v1486 = vmul.f32 %v1024, 0.17677669
        %v1487 = vpack.c.bf16 %v1484, %v1483
        %v1488 = vpack.c.bf16 %v1486, %v1485
        %v1489 = vpack.c.bf16 %v1080, %v1077
        %v1490 = vpack.c.bf16 %v1088, %v1085
        %v1491 = vpack.c.bf16 %v1144, %v1141
        %v1492 = vpack.c.bf16 %v1152, %v1149
        %1493 = vxpose.xlu0.c.b16.start [1/8] %v1487, 128
        %1494 = vxpose.xlu0.c.b16.cont [2/8] %v1488, 128
        %1495 = vxpose.xlu0.c.b16.cont [3/8] 0, 128
        %1496 = vxpose.xlu0.c.b16.cont [4/8] 0, 128
        %1497 = vxpose.xlu0.c.b16.cont [5/8] 0, 128
        %1498 = vxpose.xlu0.c.b16.cont [6/8] 0, 128
        %1499 = vxpose.xlu0.c.b16.cont [7/8] 0, 128
        %1500 = vxpose.xlu0.c.b16.end [8/8] 0, 128
        %v1501 = vpop.trf.xlu0
        %v1502 = vpop.trf.xlu0
        %v1503 = vpop.trf.xlu0
        %v1504 = vpop.trf.xlu0
        %v1505 = vpop.trf.xlu0
        %v1506 = vpop.trf.xlu0
        %v1507 = vpop.trf.xlu0
        %v1508 = vpop.trf.xlu0
        %v1510 = vsel %vm1197, %v1501, 0
        %1512 = vmatprep.subr.bf16.mxu0 0
        %1513 = vmatpush1.bf16.msra.mxu0 0
        %1514 = vmatprep.subr.bf16.mxu0 0
        %1515 = vmatpush1.bf16.msra.mxu0 0
        %1516 = vmatprep.subr.bf16.mxu0 0
        %1517 = vmatpush1.bf16.msra.mxu0 0
        %1518 = vmatprep.subr.bf16.mxu0 0
        %1519 = vmatpush1.bf16.msra.mxu0 0
        %1520 = vmatprep.subr.bf16.mxu0 0
        %1521 = vmatpush1.bf16.msra.mxu0 0
        %1522 = vmatprep.subr.bf16.mxu0 0
        %1523 = vmatpush1.bf16.msra.mxu0 0
        %1524 = vmatprep.subr.bf16.mxu0 0
        %1525 = vmatpush1.bf16.msra.mxu0 %v1490
        %1526 = vmatprep.subr.bf16.mxu0 0
        %1527 = vmatpush1.bf16.msra.mxu0 %v1489
        %1528 = vmatprep.subr.bf16.mxu0 0
        %1529 = vmatpush2.bf16.msra.mxu0 0
        %1530 = vmatprep.subr.bf16.mxu0 0
        %1531 = vmatpush2.bf16.msra.mxu0 0
        %1532 = vmatprep.subr.bf16.mxu0 0
        %1533 = vmatpush2.bf16.msra.mxu0 0
        %1534 = vmatprep.subr.bf16.mxu0 0
        %1535 = vmatpush2.bf16.msra.mxu0 0
        %1536 = vmatprep.subr.bf16.mxu0 0
        %1537 = vmatpush2.bf16.msra.mxu0 0
        %1538 = vmatprep.subr.bf16.mxu0 0
        %1539 = vmatpush2.bf16.msra.mxu0 0
        %1540 = vmatprep.subr.bf16.mxu0 0
        %1541 = vmatpush2.bf16.msra.mxu0 0
        %1542 = vmatprep.subr.bf16.mxu0 0
        %1543 = vmatpush2.bf16.msra.mxu0 0
        %1544 = vmatprep.mubr.bf16.mxu0 0
        %1545 = vmatmul.mubr.bf16.gmra.mxu0 %v1510
        %v1546 = vpop.f32.mrf.mxu0
        %v1547 = vadd.f32 0.0, %v1546
        %v1548 = vpop.f32.mrf.mxu0
        %v1549 = vpop.f32.mrf.mxu0
        %v1550 = vadd.f32 0.0, %v1549
        %v1551 = vpop.f32.mrf.mxu0
        %1552 = vdwg.mxu0
        %v1553 = vsel %vm1242, %v1547, -inf
        %1554 = vmax.xlane.f32.xlu0 %v1553
        %v1555 = vpop.xlane.xlu0 %1554
        %v1556 = vsel %vm1242, %v1550, -inf
        %1557 = vmax.xlane.f32.xlu0 %v1556
        %v1558 = vpop.xlane.xlu0 %1557
        %v1559 = vsub.f32 %v1547, %v1555
        %v1560 = vsub.f32 %v1550, %v1558
        %v1561 = vmul.f32 %v1559, 1.442695
        %v1562 = vpow.pop %v1561
        %v1563 = vmul.f32 %v1560, 1.442695
        %v1564 = vpow.pop %v1563
        %v1565 = vsel %vm1242, %v1562, 0.0
        %1566 = vadd.xlane.f32.xlu0 %v1565
        %v1567 = vpop.xlane.xlu0 %1566
        %v1568 = vsel %vm1242, %v1564, 0.0
        %1569 = vadd.xlane.f32.xlu0 %v1568
        %v1570 = vpop.xlane.xlu0 %1569
        %v1571 = vrcp.pop %v1567
        %v1572 = vrcp.pop %v1570
        %v1573 = vmul.f32 %v1562, %v1571
        %v1574 = vmul.f32 %v1564, %v1572
        %v1575 = vpack.c.bf16 %v1574, %v1573
        %v1577 = vsel %vm1242, %v1491, 0
        %v1580 = vsel %vm1242, %v1492, 0
        %v1583 = vsel %vm1242, %v1575, 0
        %1585 = vmatprep.subr.bf16.mxu0 0
        %1586 = vmatpush1.bf16.xpose.msra.mxu0 0
        %1587 = vmatprep.subr.bf16.mxu0 0
        %1588 = vmatpush1.bf16.xpose.msra.mxu0 0
        %1589 = vmatprep.subr.bf16.mxu0 0
        %1590 = vmatpush1.bf16.xpose.msra.mxu0 0
        %1591 = vmatprep.subr.bf16.mxu0 0
        %1592 = vmatpush1.bf16.xpose.msra.mxu0 0
        %1593 = vmatprep.subr.bf16.mxu0 0
        %1594 = vmatpush1.bf16.xpose.msra.mxu0 0
        %1595 = vmatprep.subr.bf16.mxu0 0
        %1596 = vmatpush1.bf16.xpose.msra.mxu0 0
        %1597 = vmatprep.subr.bf16.mxu0 0
        %1598 = vmatpush1.bf16.xpose.msra.mxu0 0
        %1599 = vmatprep.subr.bf16.mxu0 0
        %1600 = vmatpush1.bf16.xpose.msra.mxu0 %v1583
        %1601 = vmatprep.subr.bf16.mxu0 0
        %1602 = vmatpush2.bf16.xpose.msra.mxu0 0
        %1603 = vmatprep.subr.bf16.mxu0 0
        %1604 = vmatpush2.bf16.xpose.msra.mxu0 0
        %1605 = vmatprep.subr.bf16.mxu0 0
        %1606 = vmatpush2.bf16.xpose.msra.mxu0 0
        %1607 = vmatprep.subr.bf16.mxu0 0
        %1608 = vmatpush2.bf16.xpose.msra.mxu0 0
        %1609 = vmatprep.subr.bf16.mxu0 0
        %1610 = vmatpush2.bf16.xpose.msra.mxu0 0
        %1611 = vmatprep.subr.bf16.mxu0 0
        %1612 = vmatpush2.bf16.xpose.msra.mxu0 0
        %1613 = vmatprep.subr.bf16.mxu0 0
        %1614 = vmatpush2.bf16.xpose.msra.mxu0 0
        %1615 = vmatprep.subr.bf16.mxu0 0
        %1616 = vmatpush2.bf16.xpose.msra.mxu0 0
        %1617 = vmatprep.mubr.bf16.mxu0 0
        %1618 = vmatmul.mubr.bf16.gmra.mxu0 %v1577
        %v1619 = vpop.f32.mrf.mxu0
        %v1620 = vadd.f32 0.0, %v1619
        %v1621 = vpop.f32.mrf.mxu0
        %v1622 = vpop.f32.mrf.mxu0
        %v1623 = vadd.f32 0.0, %v1622
        %v1624 = vpop.f32.mrf.mxu0
        %1625 = vmatprep.mubr.bf16.mxu0 0
        %1626 = vmatmul.mubr.bf16.gmra.mxu0 %v1580
        %v1627 = vpop.f32.mrf.mxu0
        %v1628 = vadd.f32 0.0, %v1627
        %v1629 = vpop.f32.mrf.mxu0
        %v1630 = vpop.f32.mrf.mxu0
        %v1631 = vadd.f32 0.0, %v1630
        %v1632 = vpop.f32.mrf.mxu0
        %1633 = vdwg.mxu0
        %1634 = vst.msk [vmem:[#allocation2 + $0x40] sm:$0xff] %vm1242, %v1620
        %1635 = vst.msk [vmem:[#allocation2 + $0x48] sm:$0xff] %vm1242, %v1623
        %1636 = vst.msk [vmem:[#allocation2 + $0x50] sm:$0xff] %vm1242, %v1628
        %1637 = vst.msk [vmem:[#allocation2 + $0x58] sm:$0xff] %vm1242, %v1631
        %v1638 = vmul.f32 %v1029, 0.17677669
        %v1639 = vmul.f32 %v1032, 0.17677669
        %v1640 = vmul.f32 %v1037, 0.17677669
        %v1641 = vmul.f32 %v1040, 0.17677669
        %v1642 = vpack.c.bf16 %v1639, %v1638
        %v1643 = vpack.c.bf16 %v1641, %v1640
        %v1644 = vpack.c.bf16 %v1096, %v1093
        %v1645 = vpack.c.bf16 %v1104, %v1101
        %v1646 = vpack.c.bf16 %v1160, %v1157
        %v1647 = vpack.c.bf16 %v1168, %v1165
        %1648 = vxpose.xlu0.c.b16.start [1/8] %v1642, 128
        %1649 = vxpose.xlu0.c.b16.cont [2/8] %v1643, 128
        %1650 = vxpose.xlu0.c.b16.cont [3/8] 0, 128
        %1651 = vxpose.xlu0.c.b16.cont [4/8] 0, 128
        %1652 = vxpose.xlu0.c.b16.cont [5/8] 0, 128
        %1653 = vxpose.xlu0.c.b16.cont [6/8] 0, 128
        %1654 = vxpose.xlu0.c.b16.cont [7/8] 0, 128
        %1655 = vxpose.xlu0.c.b16.end [8/8] 0, 128
        %v1656 = vpop.trf.xlu0
        %v1657 = vpop.trf.xlu0
        %v1658 = vpop.trf.xlu0
        %v1659 = vpop.trf.xlu0
        %v1660 = vpop.trf.xlu0
        %v1661 = vpop.trf.xlu0
        %v1662 = vpop.trf.xlu0
        %v1663 = vpop.trf.xlu0
        %v1665 = vsel %vm1197, %v1656, 0
        %1667 = vmatprep.subr.bf16.mxu0 0
        %1668 = vmatpush1.bf16.msra.mxu0 0
        %1669 = vmatprep.subr.bf16.mxu0 0
        %1670 = vmatpush1.bf16.msra.mxu0 0
        %1671 = vmatprep.subr.bf16.mxu0 0
        %1672 = vmatpush1.bf16.msra.mxu0 0
        %1673 = vmatprep.subr.bf16.mxu0 0
        %1674 = vmatpush1.bf16.msra.mxu0 0
        %1675 = vmatprep.subr.bf16.mxu0 0
        %1676 = vmatpush1.bf16.msra.mxu0 0
        %1677 = vmatprep.subr.bf16.mxu0 0
        %1678 = vmatpush1.bf16.msra.mxu0 0
        %1679 = vmatprep.subr.bf16.mxu0 0
        %1680 = vmatpush1.bf16.msra.mxu0 %v1645
        %1681 = vmatprep.subr.bf16.mxu0 0
        %1682 = vmatpush1.bf16.msra.mxu0 %v1644
        %1683 = vmatprep.subr.bf16.mxu0 0
        %1684 = vmatpush2.bf16.msra.mxu0 0
        %1685 = vmatprep.subr.bf16.mxu0 0
        %1686 = vmatpush2.bf16.msra.mxu0 0
        %1687 = vmatprep.subr.bf16.mxu0 0
        %1688 = vmatpush2.bf16.msra.mxu0 0
        %1689 = vmatprep.subr.bf16.mxu0 0
        %1690 = vmatpush2.bf16.msra.mxu0 0
        %1691 = vmatprep.subr.bf16.mxu0 0
        %1692 = vmatpush2.bf16.msra.mxu0 0
        %1693 = vmatprep.subr.bf16.mxu0 0
        %1694 = vmatpush2.bf16.msra.mxu0 0
        %1695 = vmatprep.subr.bf16.mxu0 0
        %1696 = vmatpush2.bf16.msra.mxu0 0
        %1697 = vmatprep.subr.bf16.mxu0 0
        %1698 = vmatpush2.bf16.msra.mxu0 0
        %1699 = vmatprep.mubr.bf16.mxu0 0
        %1700 = vmatmul.mubr.bf16.gmra.mxu0 %v1665
        %v1701 = vpop.f32.mrf.mxu0
        %v1702 = vadd.f32 0.0, %v1701
        %v1703 = vpop.f32.mrf.mxu0
        %v1704 = vpop.f32.mrf.mxu0
        %v1705 = vadd.f32 0.0, %v1704
        %v1706 = vpop.f32.mrf.mxu0
        %1707 = vdwg.mxu0
        %v1708 = vsel %vm1242, %v1702, -inf
        %1709 = vmax.xlane.f32.xlu0 %v1708
        %v1710 = vpop.xlane.xlu0 %1709
        %v1711 = vsel %vm1242, %v1705, -inf
        %1712 = vmax.xlane.f32.xlu0 %v1711
        %v1713 = vpop.xlane.xlu0 %1712
        %v1714 = vsub.f32 %v1702, %v1710
        %v1715 = vsub.f32 %v1705, %v1713
        %v1716 = vmul.f32 %v1714, 1.442695
        %v1717 = vpow.pop %v1716
        %v1718 = vmul.f32 %v1715, 1.442695
        %v1719 = vpow.pop %v1718
        %v1720 = vsel %vm1242, %v1717, 0.0
        %1721 = vadd.xlane.f32.xlu0 %v1720
        %v1722 = vpop.xlane.xlu0 %1721
        %v1723 = vsel %vm1242, %v1719, 0.0
        %1724 = vadd.xlane.f32.xlu0 %v1723
        %v1725 = vpop.xlane.xlu0 %1724
        %v1726 = vrcp.pop %v1722
        %v1727 = vrcp.pop %v1725
        %v1728 = vmul.f32 %v1717, %v1726
        %v1729 = vmul.f32 %v1719, %v1727
        %v1730 = vpack.c.bf16 %v1729, %v1728
        %v1732 = vsel %vm1242, %v1646, 0
        %v1735 = vsel %vm1242, %v1647, 0
        %v1738 = vsel %vm1242, %v1730, 0
        %1740 = vmatprep.subr.bf16.mxu0 0
        %1741 = vmatpush1.bf16.xpose.msra.mxu0 0
        %1742 = vmatprep.subr.bf16.mxu0 0
        %1743 = vmatpush1.bf16.xpose.msra.mxu0 0
        %1744 = vmatprep.subr.bf16.mxu0 0
        %1745 = vmatpush1.bf16.xpose.msra.mxu0 0
        %1746 = vmatprep.subr.bf16.mxu0 0
        %1747 = vmatpush1.bf16.xpose.msra.mxu0 0
        %1748 = vmatprep.subr.bf16.mxu0 0
        %1749 = vmatpush1.bf16.xpose.msra.mxu0 0
        %1750 = vmatprep.subr.bf16.mxu0 0
        %1751 = vmatpush1.bf16.xpose.msra.mxu0 0
        %1752 = vmatprep.subr.bf16.mxu0 0
        %1753 = vmatpush1.bf16.xpose.msra.mxu0 0
        %1754 = vmatprep.subr.bf16.mxu0 0
        %1755 = vmatpush1.bf16.xpose.msra.mxu0 %v1738
        %1756 = vmatprep.subr.bf16.mxu0 0
        %1757 = vmatpush2.bf16.xpose.msra.mxu0 0
        %1758 = vmatprep.subr.bf16.mxu0 0
        %1759 = vmatpush2.bf16.xpose.msra.mxu0 0
        %1760 = vmatprep.subr.bf16.mxu0 0
        %1761 = vmatpush2.bf16.xpose.msra.mxu0 0
        %1762 = vmatprep.subr.bf16.mxu0 0
        %1763 = vmatpush2.bf16.xpose.msra.mxu0 0
        %1764 = vmatprep.subr.bf16.mxu0 0
        %1765 = vmatpush2.bf16.xpose.msra.mxu0 0
        %1766 = vmatprep.subr.bf16.mxu0 0
        %1767 = vmatpush2.bf16.xpose.msra.mxu0 0
        %1768 = vmatprep.subr.bf16.mxu0 0
        %1769 = vmatpush2.bf16.xpose.msra.mxu0 0
        %1770 = vmatprep.subr.bf16.mxu0 0
        %1771 = vmatpush2.bf16.xpose.msra.mxu0 0
        %1772 = vmatprep.mubr.bf16.mxu0 0
        %1773 = vmatmul.mubr.bf16.gmra.mxu0 %v1732
        %v1774 = vpop.f32.mrf.mxu0
        %v1775 = vadd.f32 0.0, %v1774
        %v1776 = vpop.f32.mrf.mxu0
        %v1777 = vpop.f32.mrf.mxu0
        %v1778 = vadd.f32 0.0, %v1777
        %v1779 = vpop.f32.mrf.mxu0
        %1780 = vmatprep.mubr.bf16.mxu0 0
        %1781 = vmatmul.mubr.bf16.gmra.mxu0 %v1735
        %v1782 = vpop.f32.mrf.mxu0
        %v1783 = vadd.f32 0.0, %v1782
        %v1784 = vpop.f32.mrf.mxu0
        %v1785 = vpop.f32.mrf.mxu0
        %v1786 = vadd.f32 0.0, %v1785
        %v1787 = vpop.f32.mrf.mxu0
        %1788 = vdwg.mxu0
        %1789 = vst.msk [vmem:[#allocation2 + $0x60] sm:$0xff] %vm1242, %v1775
        %1790 = vst.msk [vmem:[#allocation2 + $0x68] sm:$0xff] %vm1242, %v1778
        %1791 = vst.msk [vmem:[#allocation2 + $0x70] sm:$0xff] %vm1242, %v1783
        %1792 = vst.msk [vmem:[#allocation2 + $0x78] sm:$0xff] %vm1242, %v1786
        %1795 = vrot.lane.b32.xlu0 %v1175, 112
        %v1796 = vpop.permute.xlu0 %1795
        %1797 = vrot.lane.b32.xlu0 %v1176, 112
        %v1798 = vpop.permute.xlu0 %1797
        %1801 = vxpose.xlu0.c.b16.start [1/8] %v1796, 128
        %1802 = vxpose.xlu0.c.b16.cont [2/8] %v1798, 128
        %1803 = vxpose.xlu0.c.b16.cont [3/8] 0, 128
        %1804 = vxpose.xlu0.c.b16.cont [4/8] 0, 128
        %1805 = vxpose.xlu0.c.b16.cont [5/8] 0, 128
        %1806 = vxpose.xlu0.c.b16.cont [6/8] 0, 128
        %1807 = vxpose.xlu0.c.b16.cont [7/8] 0, 128
        %1808 = vxpose.xlu0.c.b16.end [8/8] 0, 128
        %v1809 = vpop.trf.xlu0
        %v1810 = vpop.trf.xlu0
        %v1811 = vpop.trf.xlu0
        %v1812 = vpop.trf.xlu0
        %v1813 = vpop.trf.xlu0
        %v1814 = vpop.trf.xlu0
        %v1815 = vpop.trf.xlu0
        %v1816 = vpop.trf.xlu0
        %1819 = vrot.lane.b32.xlu0 %v1177, 112
        %v1820 = vpop.permute.xlu0 %1819
        %1821 = vrot.lane.b32.xlu0 %v1178, 112
        %v1822 = vpop.permute.xlu0 %1821
        %v1826 = vsel %vm1197, %v1809, 0
        %1828 = vmatprep.subr.bf16.mxu0 0
        %1829 = vmatpush1.bf16.msra.mxu0 0
        %1830 = vmatprep.subr.bf16.mxu0 0
        %1831 = vmatpush1.bf16.msra.mxu0 0
        %1832 = vmatprep.subr.bf16.mxu0 0
        %1833 = vmatpush1.bf16.msra.mxu0 0
        %1834 = vmatprep.subr.bf16.mxu0 0
        %1835 = vmatpush1.bf16.msra.mxu0 0
        %1836 = vmatprep.subr.bf16.mxu0 0
        %1837 = vmatpush1.bf16.msra.mxu0 0
        %1838 = vmatprep.subr.bf16.mxu0 0
        %1839 = vmatpush1.bf16.msra.mxu0 0
        %1840 = vmatprep.subr.bf16.mxu0 0
        %1841 = vmatpush1.bf16.msra.mxu0 %v1822
        %1842 = vmatprep.subr.bf16.mxu0 0
        %1843 = vmatpush1.bf16.msra.mxu0 %v1820
        %1844 = vmatprep.subr.bf16.mxu0 0
        %1845 = vmatpush2.bf16.msra.mxu0 0
        %1846 = vmatprep.subr.bf16.mxu0 0
        %1847 = vmatpush2.bf16.msra.mxu0 0
        %1848 = vmatprep.subr.bf16.mxu0 0
        %1849 = vmatpush2.bf16.msra.mxu0 0
        %1850 = vmatprep.subr.bf16.mxu0 0
        %1851 = vmatpush2.bf16.msra.mxu0 0
        %1852 = vmatprep.subr.bf16.mxu0 0
        %1853 = vmatpush2.bf16.msra.mxu0 0
        %1854 = vmatprep.subr.bf16.mxu0 0
        %1855 = vmatpush2.bf16.msra.mxu0 0
        %1856 = vmatprep.subr.bf16.mxu0 0
        %1857 = vmatpush2.bf16.msra.mxu0 0
        %1858 = vmatprep.subr.bf16.mxu0 0
        %1859 = vmatpush2.bf16.msra.mxu0 0
        %1860 = vmatprep.mubr.bf16.mxu0 0
        %1861 = vmatmul.mubr.bf16.gmra.mxu0 %v1826
        %v1862 = vpop.f32.mrf.mxu0
        %v1863 = vadd.f32 0.0, %v1862
        %v1864 = vpop.f32.mrf.mxu0
        %v1865 = vpop.f32.mrf.mxu0
        %v1866 = vadd.f32 0.0, %v1865
        %v1867 = vpop.f32.mrf.mxu0
        %1868 = vdwg.mxu0
        %v1869 = vsel %vm1242, %v1863, -inf
        %1870 = vmax.xlane.f32.xlu0 %v1869
        %v1871 = vpop.xlane.xlu0 %1870
        %v1872 = vsel %vm1242, %v1866, -inf
        %1873 = vmax.xlane.f32.xlu0 %v1872
        %v1874 = vpop.xlane.xlu0 %1873
        %v1875 = vsub.f32 %v1863, %v1871
        %v1876 = vsub.f32 %v1866, %v1874
        %v1877 = vmul.f32 %v1875, 1.442695
        %v1878 = vpow.pop %v1877
        %v1879 = vmul.f32 %v1876, 1.442695
        %v1880 = vpow.pop %v1879
        %v1881 = vsel %vm1242, %v1878, 0.0
        %1882 = vadd.xlane.f32.xlu0 %v1881
        %v1883 = vpop.xlane.xlu0 %1882
        %v1884 = vsel %vm1242, %v1880, 0.0
        %1885 = vadd.xlane.f32.xlu0 %v1884
        %v1886 = vpop.xlane.xlu0 %1885
        %v1887 = vrcp.pop %v1883
        %v1888 = vrcp.pop %v1886
        %v1889 = vmul.f32 %v1878, %v1887
        %v1890 = vmul.f32 %v1880, %v1888
        %v1891 = vpack.c.bf16 %v1890, %v1889
        %1894 = vrot.lane.b32.xlu0 %v1179, 112
        %v1895 = vpop.permute.xlu0 %1894
        %1896 = vrot.lane.b32.xlu0 %v1180, 112
        %v1897 = vpop.permute.xlu0 %1896
        %v1899 = vsel %vm1242, %v1895, 0
        %v1902 = vsel %vm1242, %v1897, 0
        %v1905 = vsel %vm1242, %v1891, 0
        %1907 = vmatprep.subr.bf16.mxu0 0
        %1908 = vmatpush1.bf16.xpose.msra.mxu0 0
        %1909 = vmatprep.subr.bf16.mxu0 0
        %1910 = vmatpush1.bf16.xpose.msra.mxu0 0
        %1911 = vmatprep.subr.bf16.mxu0 0
        %1912 = vmatpush1.bf16.xpose.msra.mxu0 0
        %1913 = vmatprep.subr.bf16.mxu0 0
        %1914 = vmatpush1.bf16.xpose.msra.mxu0 0
        %1915 = vmatprep.subr.bf16.mxu0 0
        %1916 = vmatpush1.bf16.xpose.msra.mxu0 0
        %1917 = vmatprep.subr.bf16.mxu0 0
        %1918 = vmatpush1.bf16.xpose.msra.mxu0 0
        %1919 = vmatprep.subr.bf16.mxu0 0
        %1920 = vmatpush1.bf16.xpose.msra.mxu0 0
        %1921 = vmatprep.subr.bf16.mxu0 0
        %1922 = vmatpush1.bf16.xpose.msra.mxu0 %v1905
        %1923 = vmatprep.subr.bf16.mxu0 0
        %1924 = vmatpush2.bf16.xpose.msra.mxu0 0
        %1925 = vmatprep.subr.bf16.mxu0 0
        %1926 = vmatpush2.bf16.xpose.msra.mxu0 0
        %1927 = vmatprep.subr.bf16.mxu0 0
        %1928 = vmatpush2.bf16.xpose.msra.mxu0 0
        %1929 = vmatprep.subr.bf16.mxu0 0
        %1930 = vmatpush2.bf16.xpose.msra.mxu0 0
        %1931 = vmatprep.subr.bf16.mxu0 0
        %1932 = vmatpush2.bf16.xpose.msra.mxu0 0
        %1933 = vmatprep.subr.bf16.mxu0 0
        %1934 = vmatpush2.bf16.xpose.msra.mxu0 0
        %1935 = vmatprep.subr.bf16.mxu0 0
        %1936 = vmatpush2.bf16.xpose.msra.mxu0 0
        %1937 = vmatprep.subr.bf16.mxu0 0
        %1938 = vmatpush2.bf16.xpose.msra.mxu0 0
        %1939 = vmatprep.mubr.bf16.mxu0 0
        %1940 = vmatmul.mubr.bf16.gmra.mxu0 %v1899
        %v1941 = vpop.f32.mrf.mxu0
        %v1942 = vadd.f32 0.0, %v1941
        %v1943 = vpop.f32.mrf.mxu0
        %v1944 = vpop.f32.mrf.mxu0
        %v1945 = vadd.f32 0.0, %v1944
        %v1946 = vpop.f32.mrf.mxu0
        %1947 = vmatprep.mubr.bf16.mxu0 0
        %1948 = vmatmul.mubr.bf16.gmra.mxu0 %v1902
        %v1949 = vpop.f32.mrf.mxu0
        %v1950 = vadd.f32 0.0, %v1949
        %v1951 = vpop.f32.mrf.mxu0
        %v1952 = vpop.f32.mrf.mxu0
        %v1953 = vadd.f32 0.0, %v1952
        %v1954 = vpop.f32.mrf.mxu0
        %1955 = vdwg.mxu0
        %1960 = vrot.lane.b32.xlu0 %v1942, 16
        %v1961 = vpop.permute.xlu0 %1960
        %1962 = vrot.lane.b32.xlu0 %v1945, 16
        %v1963 = vpop.permute.xlu0 %1962
        %1964 = vrot.lane.b32.xlu0 %v1950, 16
        %v1965 = vpop.permute.xlu0 %1964
        %1966 = vrot.lane.b32.xlu0 %v1953, 16
        %v1967 = vpop.permute.xlu0 %1966
        %vm1972 = vcmask 261248
        %1973 = vst.msk [vmem:[#allocation2] sm:$0xff] %vm1972, %v1961
        %1974 = vst.msk [vmem:[#allocation2 + $0x8] sm:$0xff] %vm1972, %v1963
        %1975 = vst.msk [vmem:[#allocation2 + $0x10] sm:$0xff] %vm1972, %v1965
        %1976 = vst.msk [vmem:[#allocation2 + $0x18] sm:$0xff] %vm1972, %v1967
        %1979 = vrot.lane.b32.xlu0 %v1332, 112
        %v1980 = vpop.permute.xlu0 %1979
        %1981 = vrot.lane.b32.xlu0 %v1333, 112
        %v1982 = vpop.permute.xlu0 %1981
        %1985 = vxpose.xlu0.c.b16.start [1/8] %v1980, 128
        %1986 = vxpose.xlu0.c.b16.cont [2/8] %v1982, 128
        %1987 = vxpose.xlu0.c.b16.cont [3/8] 0, 128
        %1988 = vxpose.xlu0.c.b16.cont [4/8] 0, 128
        %1989 = vxpose.xlu0.c.b16.cont [5/8] 0, 128
        %1990 = vxpose.xlu0.c.b16.cont [6/8] 0, 128
        %1991 = vxpose.xlu0.c.b16.cont [7/8] 0, 128
        %1992 = vxpose.xlu0.c.b16.end [8/8] 0, 128
        %v1993 = vpop.trf.xlu0
        %v1994 = vpop.trf.xlu0
        %v1995 = vpop.trf.xlu0
        %v1996 = vpop.trf.xlu0
        %v1997 = vpop.trf.xlu0
        %v1998 = vpop.trf.xlu0
        %v1999 = vpop.trf.xlu0
        %v2000 = vpop.trf.xlu0
        %2003 = vrot.lane.b32.xlu0 %v1334, 112
        %v2004 = vpop.permute.xlu0 %2003
        %2005 = vrot.lane.b32.xlu0 %v1335, 112
        %v2006 = vpop.permute.xlu0 %2005
        %v2010 = vsel %vm1197, %v1993, 0
        %2012 = vmatprep.subr.bf16.mxu0 0
        %2013 = vmatpush1.bf16.msra.mxu0 0
        %2014 = vmatprep.subr.bf16.mxu0 0
        %2015 = vmatpush1.bf16.msra.mxu0 0
        %2016 = vmatprep.subr.bf16.mxu0 0
        %2017 = vmatpush1.bf16.msra.mxu0 0
        %2018 = vmatprep.subr.bf16.mxu0 0
        %2019 = vmatpush1.bf16.msra.mxu0 0
        %2020 = vmatprep.subr.bf16.mxu0 0
        %2021 = vmatpush1.bf16.msra.mxu0 0
        %2022 = vmatprep.subr.bf16.mxu0 0
        %2023 = vmatpush1.bf16.msra.mxu0 0
        %2024 = vmatprep.subr.bf16.mxu0 0
        %2025 = vmatpush1.bf16.msra.mxu0 %v2006
        %2026 = vmatprep.subr.bf16.mxu0 0
        %2027 = vmatpush1.bf16.msra.mxu0 %v2004
        %2028 = vmatprep.subr.bf16.mxu0 0
        %2029 = vmatpush2.bf16.msra.mxu0 0
        %2030 = vmatprep.subr.bf16.mxu0 0
        %2031 = vmatpush2.bf16.msra.mxu0 0
        %2032 = vmatprep.subr.bf16.mxu0 0
        %2033 = vmatpush2.bf16.msra.mxu0 0
        %2034 = vmatprep.subr.bf16.mxu0 0
        %2035 = vmatpush2.bf16.msra.mxu0 0
        %2036 = vmatprep.subr.bf16.mxu0 0
        %2037 = vmatpush2.bf16.msra.mxu0 0
        %2038 = vmatprep.subr.bf16.mxu0 0
        %2039 = vmatpush2.bf16.msra.mxu0 0
        %2040 = vmatprep.subr.bf16.mxu0 0
        %2041 = vmatpush2.bf16.msra.mxu0 0
        %2042 = vmatprep.subr.bf16.mxu0 0
        %2043 = vmatpush2.bf16.msra.mxu0 0
        %2044 = vmatprep.mubr.bf16.mxu0 0
        %2045 = vmatmul.mubr.bf16.gmra.mxu0 %v2010
        %v2046 = vpop.f32.mrf.mxu0
        %v2047 = vadd.f32 0.0, %v2046
        %v2048 = vpop.f32.mrf.mxu0
        %v2049 = vpop.f32.mrf.mxu0
        %v2050 = vadd.f32 0.0, %v2049
        %v2051 = vpop.f32.mrf.mxu0
        %2052 = vdwg.mxu0
        %v2053 = vsel %vm1242, %v2047, -inf
        %2054 = vmax.xlane.f32.xlu0 %v2053
        %v2055 = vpop.xlane.xlu0 %2054
        %v2056 = vsel %vm1242, %v2050, -inf
        %2057 = vmax.xlane.f32.xlu0 %v2056
        %v2058 = vpop.xlane.xlu0 %2057
        %v2059 = vsub.f32 %v2047, %v2055
        %v2060 = vsub.f32 %v2050, %v2058
        %v2061 = vmul.f32 %v2059, 1.442695
        %v2062 = vpow.pop %v2061
        %v2063 = vmul.f32 %v2060, 1.442695
        %v2064 = vpow.pop %v2063
        %v2065 = vsel %vm1242, %v2062, 0.0
        %2066 = vadd.xlane.f32.xlu0 %v2065
        %v2067 = vpop.xlane.xlu0 %2066
        %v2068 = vsel %vm1242, %v2064, 0.0
        %2069 = vadd.xlane.f32.xlu0 %v2068
        %v2070 = vpop.xlane.xlu0 %2069
        %v2071 = vrcp.pop %v2067
        %v2072 = vrcp.pop %v2070
        %v2073 = vmul.f32 %v2062, %v2071
        %v2074 = vmul.f32 %v2064, %v2072
        %v2075 = vpack.c.bf16 %v2074, %v2073
        %2078 = vrot.lane.b32.xlu0 %v1336, 112
        %v2079 = vpop.permute.xlu0 %2078
        %2080 = vrot.lane.b32.xlu0 %v1337, 112
        %v2081 = vpop.permute.xlu0 %2080
        %v2083 = vsel %vm1242, %v2079, 0
        %v2086 = vsel %vm1242, %v2081, 0
        %v2089 = vsel %vm1242, %v2075, 0
        %2091 = vmatprep.subr.bf16.mxu0 0
        %2092 = vmatpush1.bf16.xpose.msra.mxu0 0
        %2093 = vmatprep.subr.bf16.mxu0 0
        %2094 = vmatpush1.bf16.xpose.msra.mxu0 0
        %2095 = vmatprep.subr.bf16.mxu0 0
        %2096 = vmatpush1.bf16.xpose.msra.mxu0 0
        %2097 = vmatprep.subr.bf16.mxu0 0
        %2098 = vmatpush1.bf16.xpose.msra.mxu0 0
        %2099 = vmatprep.subr.bf16.mxu0 0
        %2100 = vmatpush1.bf16.xpose.msra.mxu0 0
        %2101 = vmatprep.subr.bf16.mxu0 0
        %2102 = vmatpush1.bf16.xpose.msra.mxu0 0
        %2103 = vmatprep.subr.bf16.mxu0 0
        %2104 = vmatpush1.bf16.xpose.msra.mxu0 0
        %2105 = vmatprep.subr.bf16.mxu0 0
        %2106 = vmatpush1.bf16.xpose.msra.mxu0 %v2089
        %2107 = vmatprep.subr.bf16.mxu0 0
        %2108 = vmatpush2.bf16.xpose.msra.mxu0 0
        %2109 = vmatprep.subr.bf16.mxu0 0
        %2110 = vmatpush2.bf16.xpose.msra.mxu0 0
        %2111 = vmatprep.subr.bf16.mxu0 0
        %2112 = vmatpush2.bf16.xpose.msra.mxu0 0
        %2113 = vmatprep.subr.bf16.mxu0 0
        %2114 = vmatpush2.bf16.xpose.msra.mxu0 0
        %2115 = vmatprep.subr.bf16.mxu0 0
        %2116 = vmatpush2.bf16.xpose.msra.mxu0 0
        %2117 = vmatprep.subr.bf16.mxu0 0
        %2118 = vmatpush2.bf16.xpose.msra.mxu0 0
        %2119 = vmatprep.subr.bf16.mxu0 0
        %2120 = vmatpush2.bf16.xpose.msra.mxu0 0
        %2121 = vmatprep.subr.bf16.mxu0 0
        %2122 = vmatpush2.bf16.xpose.msra.mxu0 0
        %2123 = vmatprep.mubr.bf16.mxu0 0
        %2124 = vmatmul.mubr.bf16.gmra.mxu0 %v2083
        %v2125 = vpop.f32.mrf.mxu0
        %v2126 = vadd.f32 0.0, %v2125
        %v2127 = vpop.f32.mrf.mxu0
        %v2128 = vpop.f32.mrf.mxu0
        %v2129 = vadd.f32 0.0, %v2128
        %v2130 = vpop.f32.mrf.mxu0
        %2131 = vmatprep.mubr.bf16.mxu0 0
        %2132 = vmatmul.mubr.bf16.gmra.mxu0 %v2086
        %v2133 = vpop.f32.mrf.mxu0
        %v2134 = vadd.f32 0.0, %v2133
        %v2135 = vpop.f32.mrf.mxu0
        %v2136 = vpop.f32.mrf.mxu0
        %v2137 = vadd.f32 0.0, %v2136
        %v2138 = vpop.f32.mrf.mxu0
        %2139 = vdwg.mxu0
        %2144 = vrot.lane.b32.xlu0 %v2126, 16
        %v2145 = vpop.permute.xlu0 %2144
        %2146 = vrot.lane.b32.xlu0 %v2129, 16
        %v2147 = vpop.permute.xlu0 %2146
        %2148 = vrot.lane.b32.xlu0 %v2134, 16
        %v2149 = vpop.permute.xlu0 %2148
        %2150 = vrot.lane.b32.xlu0 %v2137, 16
        %v2151 = vpop.permute.xlu0 %2150
        %2156 = vst.msk [vmem:[#allocation2 + $0x20] sm:$0xff] %vm1972, %v2145
        %2157 = vst.msk [vmem:[#allocation2 + $0x28] sm:$0xff] %vm1972, %v2147
        %2158 = vst.msk [vmem:[#allocation2 + $0x30] sm:$0xff] %vm1972, %v2149
        %2159 = vst.msk [vmem:[#allocation2 + $0x38] sm:$0xff] %vm1972, %v2151
        %2162 = vrot.lane.b32.xlu0 %v1487, 112
        %v2163 = vpop.permute.xlu0 %2162
        %2164 = vrot.lane.b32.xlu0 %v1488, 112
        %v2165 = vpop.permute.xlu0 %2164
        %2168 = vxpose.xlu0.c.b16.start [1/8] %v2163, 128
        %2169 = vxpose.xlu0.c.b16.cont [2/8] %v2165, 128
        %2170 = vxpose.xlu0.c.b16.cont [3/8] 0, 128
        %2171 = vxpose.xlu0.c.b16.cont [4/8] 0, 128
        %2172 = vxpose.xlu0.c.b16.cont [5/8] 0, 128
        %2173 = vxpose.xlu0.c.b16.cont [6/8] 0, 128
        %2174 = vxpose.xlu0.c.b16.cont [7/8] 0, 128
        %2175 = vxpose.xlu0.c.b16.end [8/8] 0, 128
        %v2176 = vpop.trf.xlu0
        %v2177 = vpop.trf.xlu0
        %v2178 = vpop.trf.xlu0
        %v2179 = vpop.trf.xlu0
        %v2180 = vpop.trf.xlu0
        %v2181 = vpop.trf.xlu0
        %v2182 = vpop.trf.xlu0
        %v2183 = vpop.trf.xlu0
        %2186 = vrot.lane.b32.xlu0 %v1489, 112
        %v2187 = vpop.permute.xlu0 %2186
        %2188 = vrot.lane.b32.xlu0 %v1490, 112
        %v2189 = vpop.permute.xlu0 %2188
        %v2193 = vsel %vm1197, %v2176, 0
        %2195 = vmatprep.subr.bf16.mxu0 0
        %2196 = vmatpush1.bf16.msra.mxu0 0
        %2197 = vmatprep.subr.bf16.mxu0 0
        %2198 = vmatpush1.bf16.msra.mxu0 0
        %2199 = vmatprep.subr.bf16.mxu0 0
        %2200 = vmatpush1.bf16.msra.mxu0 0
        %2201 = vmatprep.subr.bf16.mxu0 0
        %2202 = vmatpush1.bf16.msra.mxu0 0
        %2203 = vmatprep.subr.bf16.mxu0 0
        %2204 = vmatpush1.bf16.msra.mxu0 0
        %2205 = vmatprep.subr.bf16.mxu0 0
        %2206 = vmatpush1.bf16.msra.mxu0 0
        %2207 = vmatprep.subr.bf16.mxu0 0
        %2208 = vmatpush1.bf16.msra.mxu0 %v2189
        %2209 = vmatprep.subr.bf16.mxu0 0
        %2210 = vmatpush1.bf16.msra.mxu0 %v2187
        %2211 = vmatprep.subr.bf16.mxu0 0
        %2212 = vmatpush2.bf16.msra.mxu0 0
        %2213 = vmatprep.subr.bf16.mxu0 0
        %2214 = vmatpush2.bf16.msra.mxu0 0
        %2215 = vmatprep.subr.bf16.mxu0 0
        %2216 = vmatpush2.bf16.msra.mxu0 0
        %2217 = vmatprep.subr.bf16.mxu0 0
        %2218 = vmatpush2.bf16.msra.mxu0 0
        %2219 = vmatprep.subr.bf16.mxu0 0
        %2220 = vmatpush2.bf16.msra.mxu0 0
        %2221 = vmatprep.subr.bf16.mxu0 0
        %2222 = vmatpush2.bf16.msra.mxu0 0
        %2223 = vmatprep.subr.bf16.mxu0 0
        %2224 = vmatpush2.bf16.msra.mxu0 0
        %2225 = vmatprep.subr.bf16.mxu0 0
        %2226 = vmatpush2.bf16.msra.mxu0 0
        %2227 = vmatprep.mubr.bf16.mxu0 0
        %2228 = vmatmul.mubr.bf16.gmra.mxu0 %v2193
        %v2229 = vpop.f32.mrf.mxu0
        %v2230 = vadd.f32 0.0, %v2229
        %v2231 = vpop.f32.mrf.mxu0
        %v2232 = vpop.f32.mrf.mxu0
        %v2233 = vadd.f32 0.0, %v2232
        %v2234 = vpop.f32.mrf.mxu0
        %2235 = vdwg.mxu0
        %v2236 = vsel %vm1242, %v2230, -inf
        %2237 = vmax.xlane.f32.xlu0 %v2236
        %v2238 = vpop.xlane.xlu0 %2237
        %v2239 = vsel %vm1242, %v2233, -inf
        %2240 = vmax.xlane.f32.xlu0 %v2239
        %v2241 = vpop.xlane.xlu0 %2240
        %v2242 = vsub.f32 %v2230, %v2238
        %v2243 = vsub.f32 %v2233, %v2241
        %v2244 = vmul.f32 %v2242, 1.442695
        %v2245 = vpow.pop %v2244
        %v2246 = vmul.f32 %v2243, 1.442695
        %v2247 = vpow.pop %v2246
        %v2248 = vsel %vm1242, %v2245, 0.0
        %2249 = vadd.xlane.f32.xlu0 %v2248
        %v2250 = vpop.xlane.xlu0 %2249
        %v2251 = vsel %vm1242, %v2247, 0.0
        %2252 = vadd.xlane.f32.xlu0 %v2251
        %v2253 = vpop.xlane.xlu0 %2252
        %v2254 = vrcp.pop %v2250
        %v2255 = vrcp.pop %v2253
        %v2256 = vmul.f32 %v2245, %v2254
        %v2257 = vmul.f32 %v2247, %v2255
        %v2258 = vpack.c.bf16 %v2257, %v2256
        %2261 = vrot.lane.b32.xlu0 %v1491, 112
        %v2262 = vpop.permute.xlu0 %2261
        %2263 = vrot.lane.b32.xlu0 %v1492, 112
        %v2264 = vpop.permute.xlu0 %2263
        %v2266 = vsel %vm1242, %v2262, 0
        %v2269 = vsel %vm1242, %v2264, 0
        %v2272 = vsel %vm1242, %v2258, 0
        %2274 = vmatprep.subr.bf16.mxu0 0
        %2275 = vmatpush1.bf16.xpose.msra.mxu0 0
        %2276 = vmatprep.subr.bf16.mxu0 0
        %2277 = vmatpush1.bf16.xpose.msra.mxu0 0
        %2278 = vmatprep.subr.bf16.mxu0 0
        %2279 = vmatpush1.bf16.xpose.msra.mxu0 0
        %2280 = vmatprep.subr.bf16.mxu0 0
        %2281 = vmatpush1.bf16.xpose.msra.mxu0 0
        %2282 = vmatprep.subr.bf16.mxu0 0
        %2283 = vmatpush1.bf16.xpose.msra.mxu0 0
        %2284 = vmatprep.subr.bf16.mxu0 0
        %2285 = vmatpush1.bf16.xpose.msra.mxu0 0
        %2286 = vmatprep.subr.bf16.mxu0 0
        %2287 = vmatpush1.bf16.xpose.msra.mxu0 0
        %2288 = vmatprep.subr.bf16.mxu0 0
        %2289 = vmatpush1.bf16.xpose.msra.mxu0 %v2272
        %2290 = vmatprep.subr.bf16.mxu0 0
        %2291 = vmatpush2.bf16.xpose.msra.mxu0 0
        %2292 = vmatprep.subr.bf16.mxu0 0
        %2293 = vmatpush2.bf16.xpose.msra.mxu0 0
        %2294 = vmatprep.subr.bf16.mxu0 0
        %2295 = vmatpush2.bf16.xpose.msra.mxu0 0
        %2296 = vmatprep.subr.bf16.mxu0 0
        %2297 = vmatpush2.bf16.xpose.msra.mxu0 0
        %2298 = vmatprep.subr.bf16.mxu0 0
        %2299 = vmatpush2.bf16.xpose.msra.mxu0 0
        %2300 = vmatprep.subr.bf16.mxu0 0
        %2301 = vmatpush2.bf16.xpose.msra.mxu0 0
        %2302 = vmatprep.subr.bf16.mxu0 0
        %2303 = vmatpush2.bf16.xpose.msra.mxu0 0
        %2304 = vmatprep.subr.bf16.mxu0 0
        %2305 = vmatpush2.bf16.xpose.msra.mxu0 0
        %2306 = vmatprep.mubr.bf16.mxu0 0
        %2307 = vmatmul.mubr.bf16.gmra.mxu0 %v2266
        %v2308 = vpop.f32.mrf.mxu0
        %v2309 = vadd.f32 0.0, %v2308
        %v2310 = vpop.f32.mrf.mxu0
        %v2311 = vpop.f32.mrf.mxu0
        %v2312 = vadd.f32 0.0, %v2311
        %v2313 = vpop.f32.mrf.mxu0
        %2314 = vmatprep.mubr.bf16.mxu0 0
        %2315 = vmatmul.mubr.bf16.gmra.mxu0 %v2269
        %v2316 = vpop.f32.mrf.mxu0
        %v2317 = vadd.f32 0.0, %v2316
        %v2318 = vpop.f32.mrf.mxu0
        %v2319 = vpop.f32.mrf.mxu0
        %v2320 = vadd.f32 0.0, %v2319
        %v2321 = vpop.f32.mrf.mxu0
        %2322 = vdwg.mxu0
        %2327 = vrot.lane.b32.xlu0 %v2309, 16
        %v2328 = vpop.permute.xlu0 %2327
        %2329 = vrot.lane.b32.xlu0 %v2312, 16
        %v2330 = vpop.permute.xlu0 %2329
        %2331 = vrot.lane.b32.xlu0 %v2317, 16
        %v2332 = vpop.permute.xlu0 %2331
        %2333 = vrot.lane.b32.xlu0 %v2320, 16
        %v2334 = vpop.permute.xlu0 %2333
        %2339 = vst.msk [vmem:[#allocation2 + $0x40] sm:$0xff] %vm1972, %v2328
        %2340 = vst.msk [vmem:[#allocation2 + $0x48] sm:$0xff] %vm1972, %v2330
        %2341 = vst.msk [vmem:[#allocation2 + $0x50] sm:$0xff] %vm1972, %v2332
        %2342 = vst.msk [vmem:[#allocation2 + $0x58] sm:$0xff] %vm1972, %v2334
        %2345 = vrot.lane.b32.xlu0 %v1642, 112
        %v2346 = vpop.permute.xlu0 %2345
        %2347 = vrot.lane.b32.xlu0 %v1643, 112
        %v2348 = vpop.permute.xlu0 %2347
        %2351 = vxpose.xlu0.c.b16.start [1/8] %v2346, 128
        %2352 = vxpose.xlu0.c.b16.cont [2/8] %v2348, 128
        %2353 = vxpose.xlu0.c.b16.cont [3/8] 0, 128
        %2354 = vxpose.xlu0.c.b16.cont [4/8] 0, 128
        %2355 = vxpose.xlu0.c.b16.cont [5/8] 0, 128
        %2356 = vxpose.xlu0.c.b16.cont [6/8] 0, 128
        %2357 = vxpose.xlu0.c.b16.cont [7/8] 0, 128
        %2358 = vxpose.xlu0.c.b16.end [8/8] 0, 128
        %v2359 = vpop.trf.xlu0
        %v2360 = vpop.trf.xlu0
        %v2361 = vpop.trf.xlu0
        %v2362 = vpop.trf.xlu0
        %v2363 = vpop.trf.xlu0
        %v2364 = vpop.trf.xlu0
        %v2365 = vpop.trf.xlu0
        %v2366 = vpop.trf.xlu0
        %2369 = vrot.lane.b32.xlu0 %v1644, 112
        %v2370 = vpop.permute.xlu0 %2369
        %2371 = vrot.lane.b32.xlu0 %v1645, 112
        %v2372 = vpop.permute.xlu0 %2371
        %v2376 = vsel %vm1197, %v2359, 0
        %2378 = vmatprep.subr.bf16.mxu0 0
        %2379 = vmatpush1.bf16.msra.mxu0 0
        %2380 = vmatprep.subr.bf16.mxu0 0
        %2381 = vmatpush1.bf16.msra.mxu0 0
        %2382 = vmatprep.subr.bf16.mxu0 0
        %2383 = vmatpush1.bf16.msra.mxu0 0
        %2384 = vmatprep.subr.bf16.mxu0 0
        %2385 = vmatpush1.bf16.msra.mxu0 0
        %2386 = vmatprep.subr.bf16.mxu0 0
        %2387 = vmatpush1.bf16.msra.mxu0 0
        %2388 = vmatprep.subr.bf16.mxu0 0
        %2389 = vmatpush1.bf16.msra.mxu0 0
        %2390 = vmatprep.subr.bf16.mxu0 0
        %2391 = vmatpush1.bf16.msra.mxu0 %v2372
        %2392 = vmatprep.subr.bf16.mxu0 0
        %2393 = vmatpush1.bf16.msra.mxu0 %v2370
        %2394 = vmatprep.subr.bf16.mxu0 0
        %2395 = vmatpush2.bf16.msra.mxu0 0
        %2396 = vmatprep.subr.bf16.mxu0 0
        %2397 = vmatpush2.bf16.msra.mxu0 0
        %2398 = vmatprep.subr.bf16.mxu0 0
        %2399 = vmatpush2.bf16.msra.mxu0 0
        %2400 = vmatprep.subr.bf16.mxu0 0
        %2401 = vmatpush2.bf16.msra.mxu0 0
        %2402 = vmatprep.subr.bf16.mxu0 0
        %2403 = vmatpush2.bf16.msra.mxu0 0
        %2404 = vmatprep.subr.bf16.mxu0 0
        %2405 = vmatpush2.bf16.msra.mxu0 0
        %2406 = vmatprep.subr.bf16.mxu0 0
        %2407 = vmatpush2.bf16.msra.mxu0 0
        %2408 = vmatprep.subr.bf16.mxu0 0
        %2409 = vmatpush2.bf16.msra.mxu0 0
        %2410 = vmatprep.mubr.bf16.mxu0 0
        %2411 = vmatmul.mubr.bf16.gmra.mxu0 %v2376
        %v2412 = vpop.f32.mrf.mxu0
        %v2413 = vadd.f32 0.0, %v2412
        %v2414 = vpop.f32.mrf.mxu0
        %v2415 = vpop.f32.mrf.mxu0
        %v2416 = vadd.f32 0.0, %v2415
        %v2417 = vpop.f32.mrf.mxu0
        %2418 = vdwg.mxu0
        %v2419 = vsel %vm1242, %v2413, -inf
        %2420 = vmax.xlane.f32.xlu0 %v2419
        %v2421 = vpop.xlane.xlu0 %2420
        %v2422 = vsel %vm1242, %v2416, -inf
        %2423 = vmax.xlane.f32.xlu0 %v2422
        %v2424 = vpop.xlane.xlu0 %2423
        %v2425 = vsub.f32 %v2413, %v2421
        %v2426 = vsub.f32 %v2416, %v2424
        %v2427 = vmul.f32 %v2425, 1.442695
        %v2428 = vpow.pop %v2427
        %v2429 = vmul.f32 %v2426, 1.442695
        %v2430 = vpow.pop %v2429
        %v2431 = vsel %vm1242, %v2428, 0.0
        %2432 = vadd.xlane.f32.xlu0 %v2431
        %v2433 = vpop.xlane.xlu0 %2432
        %v2434 = vsel %vm1242, %v2430, 0.0
        %2435 = vadd.xlane.f32.xlu0 %v2434
        %v2436 = vpop.xlane.xlu0 %2435
        %v2437 = vrcp.pop %v2433
        %v2438 = vrcp.pop %v2436
        %v2439 = vmul.f32 %v2428, %v2437
        %v2440 = vmul.f32 %v2430, %v2438
        %v2441 = vpack.c.bf16 %v2440, %v2439
        %2444 = vrot.lane.b32.xlu0 %v1646, 112
        %v2445 = vpop.permute.xlu0 %2444
        %2446 = vrot.lane.b32.xlu0 %v1647, 112
        %v2447 = vpop.permute.xlu0 %2446
        %v2449 = vsel %vm1242, %v2445, 0
        %v2452 = vsel %vm1242, %v2447, 0
        %v2455 = vsel %vm1242, %v2441, 0
        %2457 = vmatprep.subr.bf16.mxu0 0
        %2458 = vmatpush1.bf16.xpose.msra.mxu0 0
        %2459 = vmatprep.subr.bf16.mxu0 0
        %2460 = vmatpush1.bf16.xpose.msra.mxu0 0
        %2461 = vmatprep.subr.bf16.mxu0 0
        %2462 = vmatpush1.bf16.xpose.msra.mxu0 0
        %2463 = vmatprep.subr.bf16.mxu0 0
        %2464 = vmatpush1.bf16.xpose.msra.mxu0 0
        %2465 = vmatprep.subr.bf16.mxu0 0
        %2466 = vmatpush1.bf16.xpose.msra.mxu0 0
        %2467 = vmatprep.subr.bf16.mxu0 0
        %2468 = vmatpush1.bf16.xpose.msra.mxu0 0
        %2469 = vmatprep.subr.bf16.mxu0 0
        %2470 = vmatpush1.bf16.xpose.msra.mxu0 0
        %2471 = vmatprep.subr.bf16.mxu0 0
        %2472 = vmatpush1.bf16.xpose.msra.mxu0 %v2455
        %2473 = vmatprep.subr.bf16.mxu0 0
        %2474 = vmatpush2.bf16.xpose.msra.mxu0 0
        %2475 = vmatprep.subr.bf16.mxu0 0
        %2476 = vmatpush2.bf16.xpose.msra.mxu0 0
        %2477 = vmatprep.subr.bf16.mxu0 0
        %2478 = vmatpush2.bf16.xpose.msra.mxu0 0
        %2479 = vmatprep.subr.bf16.mxu0 0
        %2480 = vmatpush2.bf16.xpose.msra.mxu0 0
        %2481 = vmatprep.subr.bf16.mxu0 0
        %2482 = vmatpush2.bf16.xpose.msra.mxu0 0
        %2483 = vmatprep.subr.bf16.mxu0 0
        %2484 = vmatpush2.bf16.xpose.msra.mxu0 0
        %2485 = vmatprep.subr.bf16.mxu0 0
        %2486 = vmatpush2.bf16.xpose.msra.mxu0 0
        %2487 = vmatprep.subr.bf16.mxu0 0
        %2488 = vmatpush2.bf16.xpose.msra.mxu0 0
        %2489 = vmatprep.mubr.bf16.mxu0 0
        %2490 = vmatmul.mubr.bf16.gmra.mxu0 %v2449
        %v2491 = vpop.f32.mrf.mxu0
        %v2492 = vadd.f32 0.0, %v2491
        %v2493 = vpop.f32.mrf.mxu0
        %v2494 = vpop.f32.mrf.mxu0
        %v2495 = vadd.f32 0.0, %v2494
        %v2496 = vpop.f32.mrf.mxu0
        %2497 = vmatprep.mubr.bf16.mxu0 0
        %2498 = vmatmul.mubr.bf16.gmra.mxu0 %v2452
        %v2499 = vpop.f32.mrf.mxu0
        %v2500 = vadd.f32 0.0, %v2499
        %v2501 = vpop.f32.mrf.mxu0
        %v2502 = vpop.f32.mrf.mxu0
        %v2503 = vadd.f32 0.0, %v2502
        %v2504 = vpop.f32.mrf.mxu0
        %2505 = vdwg.mxu0
        %2510 = vrot.lane.b32.xlu0 %v2492, 16
        %v2511 = vpop.permute.xlu0 %2510
        %2512 = vrot.lane.b32.xlu0 %v2495, 16
        %v2513 = vpop.permute.xlu0 %2512
        %2514 = vrot.lane.b32.xlu0 %v2500, 16
        %v2515 = vpop.permute.xlu0 %2514
        %2516 = vrot.lane.b32.xlu0 %v2503, 16
        %v2517 = vpop.permute.xlu0 %2516
        %2522 = vst.msk [vmem:[#allocation2 + $0x60] sm:$0xff] %vm1972, %v2511
        %2523 = vst.msk [vmem:[#allocation2 + $0x68] sm:$0xff] %vm1972, %v2513
        %2524 = vst.msk [vmem:[#allocation2 + $0x70] sm:$0xff] %vm1972, %v2515
        %2525 = vst.msk [vmem:[#allocation2 + $0x78] sm:$0xff] %vm1972, %v2517
        %v2526 = vld [vmem:[#allocation2] sm:$0xff]
        %v2527 = vld [vmem:[#allocation2 + $0x8] sm:$0xff]
        %v2528 = vld [vmem:[#allocation2 + $0x10] sm:$0xff]
        %v2529 = vld [vmem:[#allocation2 + $0x18] sm:$0xff]
        %v2530 = vld [vmem:[#allocation2 + $0x20] sm:$0xff]
        %v2531 = vld [vmem:[#allocation2 + $0x28] sm:$0xff]
        %v2532 = vld [vmem:[#allocation2 + $0x30] sm:$0xff]
        %v2533 = vld [vmem:[#allocation2 + $0x38] sm:$0xff]
        %v2534 = vld [vmem:[#allocation2 + $0x40] sm:$0xff]
        %v2535 = vld [vmem:[#allocation2 + $0x48] sm:$0xff]
        %v2536 = vld [vmem:[#allocation2 + $0x50] sm:$0xff]
        %v2537 = vld [vmem:[#allocation2 + $0x58] sm:$0xff]
        %v2538 = vld [vmem:[#allocation2 + $0x60] sm:$0xff]
        %v2539 = vld [vmem:[#allocation2 + $0x68] sm:$0xff]
        %v2540 = vld [vmem:[#allocation2 + $0x70] sm:$0xff]
        %v2541 = vld [vmem:[#allocation2 + $0x78] sm:$0xff]
        %v2542 = vpack.c.bf16 %v2527, %v2526
        %v2543 = vpack.c.bf16 %v2529, %v2528
        %v2544 = vpack.c.bf16 %v2531, %v2530
        %v2545 = vpack.c.bf16 %v2533, %v2532
        %v2546 = vpack.c.bf16 %v2535, %v2534
        %v2547 = vpack.c.bf16 %v2537, %v2536
        %v2548 = vpack.c.bf16 %v2539, %v2538
        %v2549 = vpack.c.bf16 %v2541, %v2540
        %v2550 = vld [vmem:[%s378] sm:$0xf]
        %v2551 = vld [vmem:[%s378 + $0x4] sm:$0xf]
        %v2552 = vld [vmem:[%s378 + $0x8] sm:$0xf]
        %v2553 = vld [vmem:[%s378 + $0xc] sm:$0xf]
        %v2554 = vld [vmem:[%s378 + $0x10] sm:$0xf]
        %v2555 = vld [vmem:[%s378 + $0x14] sm:$0xf]
        %v2556 = vld [vmem:[%s378 + $0x18] sm:$0xf]
        %v2557 = vld [vmem:[%s378 + $0x1c] sm:$0xf]
        %v2558 = vld [vmem:[%s378 + $0x20] sm:$0xf]
        %v2559 = vld [vmem:[%s378 + $0x24] sm:$0xf]
        %v2560 = vld [vmem:[%s378 + $0x28] sm:$0xf]
        %v2561 = vld [vmem:[%s378 + $0x2c] sm:$0xf]
        %v2562 = vld [vmem:[%s378 + $0x30] sm:$0xf]
        %v2563 = vld [vmem:[%s378 + $0x34] sm:$0xf]
        %v2564 = vld [vmem:[%s378 + $0x38] sm:$0xf]
        %v2565 = vld [vmem:[%s378 + $0x3c] sm:$0xf]
        %2566 = vxpose.xlu0.c.b16.start [1/8] %v2542, 128
        %2567 = vxpose.xlu0.c.b16.cont [2/8] %v2543, 128
        %2568 = vxpose.xlu0.c.b16.cont [3/8] %v2544, 128
        %2569 = vxpose.xlu0.c.b16.cont [4/8] %v2545, 128
        %2570 = vxpose.xlu0.c.b16.cont [5/8] %v2546, 128
        %2571 = vxpose.xlu0.c.b16.cont [6/8] %v2547, 128
        %2572 = vxpose.xlu0.c.b16.cont [7/8] %v2548, 128
        %2573 = vxpose.xlu0.c.b16.end [8/8] %v2549, 128
        %v2574 = vpop.trf.xlu0
        %v2575 = vpop.trf.xlu0
        %v2576 = vpop.trf.xlu0
        %v2577 = vpop.trf.xlu0
        %v2578 = vpop.trf.xlu0
        %v2579 = vpop.trf.xlu0
        %v2580 = vpop.trf.xlu0
        %v2581 = vpop.trf.xlu0
        %v2598 = vunpack.c.l.b16 %v2550
        %v2599 = vunpack.c.l.b16 %v2551
        %v2600 = vunpack.c.l.b16 %v2552
        %v2601 = vunpack.c.l.b16 %v2553
        %v2602 = vunpack.c.l.b16 %v2554
        %v2603 = vunpack.c.l.b16 %v2555
        %v2604 = vunpack.c.l.b16 %v2556
        %v2605 = vunpack.c.l.b16 %v2557
        %v2606 = vunpack.c.l.b16 %v2558
        %v2607 = vunpack.c.l.b16 %v2559
        %v2608 = vunpack.c.l.b16 %v2560
        %v2609 = vunpack.c.l.b16 %v2561
        %v2610 = vunpack.c.l.b16 %v2562
        %v2611 = vunpack.c.l.b16 %v2563
        %v2612 = vunpack.c.l.b16 %v2564
        %v2613 = vunpack.c.l.b16 %v2565
        %v2614 = vpack.c.b16 %v2599, %v2598
        %v2615 = vpack.c.b16 %v2601, %v2600
        %v2616 = vpack.c.b16 %v2603, %v2602
        %v2617 = vpack.c.b16 %v2605, %v2604
        %v2618 = vpack.c.b16 %v2607, %v2606
        %v2619 = vpack.c.b16 %v2609, %v2608
        %v2620 = vpack.c.b16 %v2611, %v2610
        %v2621 = vpack.c.b16 %v2613, %v2612
        %2630 = vmatprep.subr.bf16.mxu0 0
        %2631 = vmatpush1.bf16.msra.mxu0 %v2621
        %2632 = vmatprep.subr.bf16.mxu0 0
        %2633 = vmatpush1.bf16.msra.mxu0 %v2620
        %2634 = vmatprep.subr.bf16.mxu0 0
        %2635 = vmatpush1.bf16.msra.mxu0 %v2619
        %2636 = vmatprep.subr.bf16.mxu0 0
        %2637 = vmatpush1.bf16.msra.mxu0 %v2618
        %2638 = vmatprep.subr.bf16.mxu0 0
        %2639 = vmatpush1.bf16.msra.mxu0 %v2617
        %2640 = vmatprep.subr.bf16.mxu0 0
        %2641 = vmatpush1.bf16.msra.mxu0 %v2616
        %2642 = vmatprep.subr.bf16.mxu0 0
        %2643 = vmatpush1.bf16.msra.mxu0 %v2615
        %2644 = vmatprep.subr.bf16.mxu0 0
        %2645 = vmatpush1.bf16.msra.mxu0 %v2614
        %2646 = vmatprep.subr.bf16.mxu0 0
        %2647 = vmatpush2.bf16.msra.mxu0 0
        %2648 = vmatprep.subr.bf16.mxu0 0
        %2649 = vmatpush2.bf16.msra.mxu0 0
        %2650 = vmatprep.subr.bf16.mxu0 0
        %2651 = vmatpush2.bf16.msra.mxu0 0
        %2652 = vmatprep.subr.bf16.mxu0 0
        %2653 = vmatpush2.bf16.msra.mxu0 0
        %2654 = vmatprep.subr.bf16.mxu0 0
        %2655 = vmatpush2.bf16.msra.mxu0 0
        %2656 = vmatprep.subr.bf16.mxu0 0
        %2657 = vmatpush2.bf16.msra.mxu0 0
        %2658 = vmatprep.subr.bf16.mxu0 0
        %2659 = vmatpush2.bf16.msra.mxu0 0
        %2660 = vmatprep.subr.bf16.mxu0 0
        %2661 = vmatpush2.bf16.msra.mxu0 0
        %2662 = vmatprep.mubr.bf16.mxu0 0
        %2663 = vmatmul.mubr.bf16.gmra.mxu0 %v2574
        %v2664 = vpop.f32.mrf.mxu0
        %v2665 = vadd.f32 0.0, %v2664
        %v2666 = vpop.f32.mrf.mxu0
        %v2667 = vpop.f32.mrf.mxu0
        %v2668 = vadd.f32 0.0, %v2667
        %v2669 = vpop.f32.mrf.mxu0
        %2670 = vmatprep.mubr.bf16.mxu0 0
        %2671 = vmatmul.mubr.bf16.gmra.mxu0 %v2575
        %v2672 = vpop.f32.mrf.mxu0
        %v2673 = vadd.f32 0.0, %v2672
        %v2674 = vpop.f32.mrf.mxu0
        %v2675 = vpop.f32.mrf.mxu0
        %v2676 = vadd.f32 0.0, %v2675
        %v2677 = vpop.f32.mrf.mxu0
        %2678 = vdwg.mxu0
        %v2679 = vadd.f32 %v397, %v2665
        %v2680 = vadd.f32 %v398, %v2668
        %v2681 = vadd.f32 %v399, %v2673
        %v2682 = vadd.f32 %v400, %v2676
        %v2683 = vlaneseq
        %v2684 = vshrl.u32 %v2683, 7
        %v2685 = vsub.s32 2, %v2684
        %v2686 = vrot.slane %v401, %v2685
        %v2687 = vadd.f32 %v2679, %v2686
        %v2688 = vadd.f32 %v2680, %v2686
        %v2689 = vadd.f32 %v2681, %v2686
        %v2690 = vadd.f32 %v2682, %v2686
        %2691 = vadd.xlane.f32.xlu0 %v2687
        %v2692 = vpop.xlane.xlu0 %2691
        %2693 = vadd.xlane.f32.xlu0 %v2688
        %v2694 = vpop.xlane.xlu0 %2693
        %2695 = vadd.xlane.f32.xlu0 %v2689
        %v2696 = vpop.xlane.xlu0 %2695
        %2697 = vadd.xlane.f32.xlu0 %v2690
        %v2698 = vpop.xlane.xlu0 %2697
        %v2699 = vmul.f32 %v2692, %v411
        %v2700 = vmul.f32 %v2694, %v411
        %v2701 = vmul.f32 %v2696, %v411
        %v2702 = vmul.f32 %v2698, %v411
        %v2703 = vsub.f32 %v2687, %v2699
        %v2704 = vsub.f32 %v2688, %v2700
        %v2705 = vsub.f32 %v2689, %v2701
        %v2706 = vsub.f32 %v2690, %v2702
        %v2707 = vmul.f32 %v2703, %v2703
        %v2708 = vmul.f32 %v2704, %v2704
        %v2709 = vmul.f32 %v2705, %v2705
        %v2710 = vmul.f32 %v2706, %v2706
        %2711 = vadd.xlane.f32.xlu0 %v2707
        %v2712 = vpop.xlane.xlu0 %2711
        %2713 = vadd.xlane.f32.xlu0 %v2708
        %v2714 = vpop.xlane.xlu0 %2713
        %2715 = vadd.xlane.f32.xlu0 %v2709
        %v2716 = vpop.xlane.xlu0 %2715
        %2717 = vadd.xlane.f32.xlu0 %v2710
        %v2718 = vpop.xlane.xlu0 %2717
        %v2719 = vmul.f32 %v2712, %v411
        %v2720 = vmul.f32 %v2714, %v411
        %v2721 = vmul.f32 %v2716, %v411
        %v2722 = vmul.f32 %v2718, %v411
        %v2723 = vadd.f32 %v2719, 1e-06
        %v2724 = vadd.f32 %v2720, 1e-06
        %v2725 = vadd.f32 %v2721, 1e-06
        %v2726 = vadd.f32 %v2722, 1e-06
        %v2727 = vrsqrt.pop %v2723
        %v2728 = vrsqrt.pop %v2724
        %v2729 = vrsqrt.pop %v2725
        %v2730 = vrsqrt.pop %v2726
        %v2731 = vmul.f32 %v2703, %v2727
        %v2732 = vmul.f32 %v2704, %v2728
        %v2733 = vmul.f32 %v2705, %v2729
        %v2734 = vmul.f32 %v2706, %v2730
        %v2735 = vlaneseq
        %v2736 = vshrl.u32 %v2735, 7
        %v2737 = vsub.s32 3, %v2736
        %v2738 = vrot.slane %v401, %v2737
        %v2739 = vmul.f32 %v2731, %v2738
        %v2740 = vmul.f32 %v2732, %v2738
        %v2741 = vmul.f32 %v2733, %v2738
        %v2742 = vmul.f32 %v2734, %v2738
        %v2743 = vlaneseq
        %v2744 = vshrl.u32 %v2743, 7
        %v2745 = vsub.s32 4, %v2744
        %v2746 = vrot.slane %v401, %v2745
        %v2747 = vadd.f32 %v2739, %v2746
        %v2748 = vadd.f32 %v2740, %v2746
        %v2749 = vadd.f32 %v2741, %v2746
        %v2750 = vadd.f32 %v2742, %v2746
        %v2751 = vpack.c.bf16 %v2748, %v2747
        %v2752 = vpack.c.bf16 %v2750, %v2749
        %v2753 = vld [vmem:[%s383] sm:$0xff]
        %v2754 = vld [vmem:[%s383 + $0x8] sm:$0xff]
        %v2755 = vld [vmem:[%s383 + $0x10] sm:$0xff]
        %v2756 = vld [vmem:[%s383 + $0x18] sm:$0xff]
        %v2757 = vld [vmem:[%s383 + $0x20] sm:$0xff]
        %v2758 = vld [vmem:[%s383 + $0x28] sm:$0xff]
        %v2759 = vld [vmem:[%s383 + $0x30] sm:$0xff]
        %v2760 = vld [vmem:[%s383 + $0x38] sm:$0xff]
        %v2761 = vld [vmem:[%s383 + $0x40] sm:$0xff]
        %v2762 = vld [vmem:[%s383 + $0x48] sm:$0xff]
        %v2763 = vld [vmem:[%s383 + $0x50] sm:$0xff]
        %v2764 = vld [vmem:[%s383 + $0x58] sm:$0xff]
        %v2765 = vld [vmem:[%s383 + $0x60] sm:$0xff]
        %v2766 = vld [vmem:[%s383 + $0x68] sm:$0xff]
        %v2767 = vld [vmem:[%s383 + $0x70] sm:$0xff]
        %v2768 = vld [vmem:[%s383 + $0x78] sm:$0xff]
        %v2769 = vlaneseq
        %v2770 = vshrl.u32 %v2769, 7
        %v2771 = vsub.s32 6, %v2770
        %v2772 = vrot.slane %v401, %v2771
        %v2773 = vlaneseq
        %v2774 = vshrl.u32 %v2773, 7
        %v2775 = vsub.s32 6, %v2774
        %v2776 = vrot.slane %v402, %v2775
        %v2793 = vunpack.c.l.b16 %v2753
        %v2794 = vunpack.c.h.b16 %v2753
        %v2795 = vunpack.c.l.b16 %v2754
        %v2796 = vunpack.c.h.b16 %v2754
        %v2797 = vunpack.c.l.b16 %v2755
        %v2798 = vunpack.c.h.b16 %v2755
        %v2799 = vunpack.c.l.b16 %v2756
        %v2800 = vunpack.c.h.b16 %v2756
        %v2801 = vunpack.c.l.b16 %v2757
        %v2802 = vunpack.c.h.b16 %v2757
        %v2803 = vunpack.c.l.b16 %v2758
        %v2804 = vunpack.c.h.b16 %v2758
        %v2805 = vunpack.c.l.b16 %v2759
        %v2806 = vunpack.c.h.b16 %v2759
        %v2807 = vunpack.c.l.b16 %v2760
        %v2808 = vunpack.c.h.b16 %v2760
        %v2809 = vunpack.c.l.b16 %v2761
        %v2810 = vunpack.c.h.b16 %v2761
        %v2811 = vunpack.c.l.b16 %v2762
        %v2812 = vunpack.c.h.b16 %v2762
        %v2813 = vunpack.c.l.b16 %v2763
        %v2814 = vunpack.c.h.b16 %v2763
        %v2815 = vunpack.c.l.b16 %v2764
        %v2816 = vunpack.c.h.b16 %v2764
        %v2817 = vunpack.c.l.b16 %v2765
        %v2818 = vunpack.c.h.b16 %v2765
        %v2819 = vunpack.c.l.b16 %v2766
        %v2820 = vunpack.c.h.b16 %v2766
        %v2821 = vunpack.c.l.b16 %v2767
        %v2822 = vunpack.c.h.b16 %v2767
        %v2823 = vunpack.c.l.b16 %v2768
        %v2824 = vunpack.c.h.b16 %v2768
        %v2825 = vpack.c.b16 %v2795, %v2793
        %v2826 = vpack.c.b16 %v2796, %v2794
        %v2827 = vpack.c.b16 %v2799, %v2797
        %v2828 = vpack.c.b16 %v2800, %v2798
        %v2829 = vpack.c.b16 %v2803, %v2801
        %v2830 = vpack.c.b16 %v2804, %v2802
        %v2831 = vpack.c.b16 %v2807, %v2805
        %v2832 = vpack.c.b16 %v2808, %v2806
        %v2833 = vpack.c.b16 %v2811, %v2809
        %v2834 = vpack.c.b16 %v2812, %v2810
        %v2835 = vpack.c.b16 %v2815, %v2813
        %v2836 = vpack.c.b16 %v2816, %v2814
        %v2837 = vpack.c.b16 %v2819, %v2817
        %v2838 = vpack.c.b16 %v2820, %v2818
        %v2839 = vpack.c.b16 %v2823, %v2821
        %v2840 = vpack.c.b16 %v2824, %v2822
        %2857 = vmatprep.subr.bf16.mxu0 %v2840
        %2858 = vmatpush1.bf16.msra.mxu0 %v2839
        %2859 = vmatprep.subr.bf16.mxu0 %v2838
        %2860 = vmatpush1.bf16.msra.mxu0 %v2837
        %2861 = vmatprep.subr.bf16.mxu0 %v2836
        %2862 = vmatpush1.bf16.msra.mxu0 %v2835
        %2863 = vmatprep.subr.bf16.mxu0 %v2834
        %2864 = vmatpush1.bf16.msra.mxu0 %v2833
        %2865 = vmatprep.subr.bf16.mxu0 %v2832
        %2866 = vmatpush1.bf16.msra.mxu0 %v2831
        %2867 = vmatprep.subr.bf16.mxu0 %v2830
        %2868 = vmatpush1.bf16.msra.mxu0 %v2829
        %2869 = vmatprep.subr.bf16.mxu0 %v2828
        %2870 = vmatpush1.bf16.msra.mxu0 %v2827
        %2871 = vmatprep.subr.bf16.mxu0 %v2826
        %2872 = vmatpush1.bf16.msra.mxu0 %v2825
        %2873 = vmatprep.subr.bf16.mxu0 0
        %2874 = vmatpush2.bf16.msra.mxu0 0
        %2875 = vmatprep.subr.bf16.mxu0 0
        %2876 = vmatpush2.bf16.msra.mxu0 0
        %2877 = vmatprep.subr.bf16.mxu0 0
        %2878 = vmatpush2.bf16.msra.mxu0 0
        %2879 = vmatprep.subr.bf16.mxu0 0
        %2880 = vmatpush2.bf16.msra.mxu0 0
        %2881 = vmatprep.subr.bf16.mxu0 0
        %2882 = vmatpush2.bf16.msra.mxu0 0
        %2883 = vmatprep.subr.bf16.mxu0 0
        %2884 = vmatpush2.bf16.msra.mxu0 0
        %2885 = vmatprep.subr.bf16.mxu0 0
        %2886 = vmatpush2.bf16.msra.mxu0 0
        %2887 = vmatprep.subr.bf16.mxu0 0
        %2888 = vmatpush2.bf16.msra.mxu0 0
        %2889 = vmatprep.mubr.bf16.mxu0 0
        %2890 = vmatmul.mubr.bf16.gmra.mxu0 %v2751
        %v2891 = vpop.f32.mrf.mxu0
        %v2892 = vadd.f32 %v2772, %v2891
        %v2893 = vpop.f32.mrf.mxu0
        %v2894 = vadd.f32 %v2776, %v2893
        %v2895 = vpop.f32.mrf.mxu0
        %v2896 = vadd.f32 %v2772, %v2895
        %v2897 = vpop.f32.mrf.mxu0
        %v2898 = vadd.f32 %v2776, %v2897
        %2899 = vmatprep.mubr.bf16.mxu0 0
        %2900 = vmatmul.mubr.bf16.gmra.mxu0 %v2752
        %v2901 = vpop.f32.mrf.mxu0
        %v2902 = vadd.f32 %v2772, %v2901
        %v2903 = vpop.f32.mrf.mxu0
        %v2904 = vadd.f32 %v2776, %v2903
        %v2905 = vpop.f32.mrf.mxu0
        %v2906 = vadd.f32 %v2772, %v2905
        %v2907 = vpop.f32.mrf.mxu0
        %v2908 = vadd.f32 %v2776, %v2907
        %2909 = vdwg.mxu0
        %v2910 = vmul.f32 %v2892, 0.5
        %v2911 = vmul.f32 %v2894, 0.5
        %v2912 = vmul.f32 %v2896, 0.5
        %v2913 = vmul.f32 %v2898, 0.5
        %v2914 = vmul.f32 %v2902, 0.5
        %v2915 = vmul.f32 %v2904, 0.5
        %v2916 = vmul.f32 %v2906, 0.5
        %v2917 = vmul.f32 %v2908, 0.5
        %v2918 = vmul.f32 %v2892, 0.70710677
        %v2919 = vmul.f32 %v2894, 0.70710677
        %v2920 = vmul.f32 %v2896, 0.70710677
        %v2921 = vmul.f32 %v2898, 0.70710677
        %v2922 = vmul.f32 %v2902, 0.70710677
        %v2923 = vmul.f32 %v2904, 0.70710677
        %v2924 = vmul.f32 %v2906, 0.70710677
        %v2925 = vmul.f32 %v2908, 0.70710677
        %v2926 = verf.f32.pop %v2918
        %v2927 = verf.f32.pop %v2919
        %v2928 = verf.f32.pop %v2920
        %v2929 = verf.f32.pop %v2921
        %v2930 = verf.f32.pop %v2922
        %v2931 = verf.f32.pop %v2923
        %v2932 = verf.f32.pop %v2924
        %v2933 = verf.f32.pop %v2925
        %v2934 = vadd.f32 %v2926, 1.0
        %v2935 = vadd.f32 %v2927, 1.0
        %v2936 = vadd.f32 %v2928, 1.0
        %v2937 = vadd.f32 %v2929, 1.0
        %v2938 = vadd.f32 %v2930, 1.0
        %v2939 = vadd.f32 %v2931, 1.0
        %v2940 = vadd.f32 %v2932, 1.0
        %v2941 = vadd.f32 %v2933, 1.0
        %v2942 = vmul.f32 %v2910, %v2934
        %v2943 = vmul.f32 %v2911, %v2935
        %v2944 = vmul.f32 %v2912, %v2936
        %v2945 = vmul.f32 %v2913, %v2937
        %v2946 = vmul.f32 %v2914, %v2938
        %v2947 = vmul.f32 %v2915, %v2939
        %v2948 = vmul.f32 %v2916, %v2940
        %v2949 = vmul.f32 %v2917, %v2941
        %v2950 = vpack.c.bf16 %v2944, %v2942
        %v2951 = vpack.c.bf16 %v2945, %v2943
        %v2952 = vpack.c.bf16 %v2948, %v2946
        %v2953 = vpack.c.bf16 %v2949, %v2947
        %v2954 = vld [vmem:[%s308] sm:$0xf]
        %v2955 = vld [vmem:[%s308 + $0x4] sm:$0xf]
        %v2956 = vld [vmem:[%s308 + $0x8] sm:$0xf]
        %v2957 = vld [vmem:[%s308 + $0xc] sm:$0xf]
        %v2958 = vld [vmem:[%s308 + $0x10] sm:$0xf]
        %v2959 = vld [vmem:[%s308 + $0x14] sm:$0xf]
        %v2960 = vld [vmem:[%s308 + $0x18] sm:$0xf]
        %v2961 = vld [vmem:[%s308 + $0x1c] sm:$0xf]
        %v2962 = vld [vmem:[%s308 + $0x20] sm:$0xf]
        %v2963 = vld [vmem:[%s308 + $0x24] sm:$0xf]
        %v2964 = vld [vmem:[%s308 + $0x28] sm:$0xf]
        %v2965 = vld [vmem:[%s308 + $0x2c] sm:$0xf]
        %v2966 = vld [vmem:[%s308 + $0x30] sm:$0xf]
        %v2967 = vld [vmem:[%s308 + $0x34] sm:$0xf]
        %v2968 = vld [vmem:[%s308 + $0x38] sm:$0xf]
        %v2969 = vld [vmem:[%s308 + $0x3c] sm:$0xf]
        %v2970 = vld [vmem:[%s308 + $0x40] sm:$0xf]
        %v2971 = vld [vmem:[%s308 + $0x44] sm:$0xf]
        %v2972 = vld [vmem:[%s308 + $0x48] sm:$0xf]
        %v2973 = vld [vmem:[%s308 + $0x4c] sm:$0xf]
        %v2974 = vld [vmem:[%s308 + $0x50] sm:$0xf]
        %v2975 = vld [vmem:[%s308 + $0x54] sm:$0xf]
        %v2976 = vld [vmem:[%s308 + $0x58] sm:$0xf]
        %v2977 = vld [vmem:[%s308 + $0x5c] sm:$0xf]
        %v2978 = vld [vmem:[%s308 + $0x60] sm:$0xf]
        %v2979 = vld [vmem:[%s308 + $0x64] sm:$0xf]
        %v2980 = vld [vmem:[%s308 + $0x68] sm:$0xf]
        %v2981 = vld [vmem:[%s308 + $0x6c] sm:$0xf]
        %v2982 = vld [vmem:[%s308 + $0x70] sm:$0xf]
        %v2983 = vld [vmem:[%s308 + $0x74] sm:$0xf]
        %v2984 = vld [vmem:[%s308 + $0x78] sm:$0xf]
        %v2985 = vld [vmem:[%s308 + $0x7c] sm:$0xf]
        %v2986 = vlaneseq
        %v2987 = vshrl.u32 %v2986, 7
        %v2988 = vsub.s32 5, %v2987
        %v2989 = vrot.slane %v401, %v2988
        %v3022 = vunpack.c.l.b16 %v2954
        %v3023 = vunpack.c.l.b16 %v2955
        %v3024 = vunpack.c.l.b16 %v2956
        %v3025 = vunpack.c.l.b16 %v2957
        %v3026 = vunpack.c.l.b16 %v2958
        %v3027 = vunpack.c.l.b16 %v2959
        %v3028 = vunpack.c.l.b16 %v2960
        %v3029 = vunpack.c.l.b16 %v2961
        %v3030 = vunpack.c.l.b16 %v2962
        %v3031 = vunpack.c.l.b16 %v2963
        %v3032 = vunpack.c.l.b16 %v2964
        %v3033 = vunpack.c.l.b16 %v2965
        %v3034 = vunpack.c.l.b16 %v2966
        %v3035 = vunpack.c.l.b16 %v2967
        %v3036 = vunpack.c.l.b16 %v2968
        %v3037 = vunpack.c.l.b16 %v2969
        %v3038 = vunpack.c.l.b16 %v2970
        %v3039 = vunpack.c.l.b16 %v2971
        %v3040 = vunpack.c.l.b16 %v2972
        %v3041 = vunpack.c.l.b16 %v2973
        %v3042 = vunpack.c.l.b16 %v2974
        %v3043 = vunpack.c.l.b16 %v2975
        %v3044 = vunpack.c.l.b16 %v2976
        %v3045 = vunpack.c.l.b16 %v2977
        %v3046 = vunpack.c.l.b16 %v2978
        %v3047 = vunpack.c.l.b16 %v2979
        %v3048 = vunpack.c.l.b16 %v2980
        %v3049 = vunpack.c.l.b16 %v2981
        %v3050 = vunpack.c.l.b16 %v2982
        %v3051 = vunpack.c.l.b16 %v2983
        %v3052 = vunpack.c.l.b16 %v2984
        %v3053 = vunpack.c.l.b16 %v2985
        %v3054 = vpack.c.b16 %v3023, %v3022
        %v3055 = vpack.c.b16 %v3025, %v3024
        %v3056 = vpack.c.b16 %v3027, %v3026
        %v3057 = vpack.c.b16 %v3029, %v3028
        %v3058 = vpack.c.b16 %v3031, %v3030
        %v3059 = vpack.c.b16 %v3033, %v3032
        %v3060 = vpack.c.b16 %v3035, %v3034
        %v3061 = vpack.c.b16 %v3037, %v3036
        %v3062 = vpack.c.b16 %v3039, %v3038
        %v3063 = vpack.c.b16 %v3041, %v3040
        %v3064 = vpack.c.b16 %v3043, %v3042
        %v3065 = vpack.c.b16 %v3045, %v3044
        %v3066 = vpack.c.b16 %v3047, %v3046
        %v3067 = vpack.c.b16 %v3049, %v3048
        %v3068 = vpack.c.b16 %v3051, %v3050
        %v3069 = vpack.c.b16 %v3053, %v3052
        %3086 = vmatprep.subr.bf16.mxu0 0
        %3087 = vmatpush1.bf16.msra.mxu0 %v3061
        %3088 = vmatprep.subr.bf16.mxu0 0
        %3089 = vmatpush1.bf16.msra.mxu0 %v3060
        %3090 = vmatprep.subr.bf16.mxu0 0
        %3091 = vmatpush1.bf16.msra.mxu0 %v3059
        %3092 = vmatprep.subr.bf16.mxu0 0
        %3093 = vmatpush1.bf16.msra.mxu0 %v3058
        %3094 = vmatprep.subr.bf16.mxu0 0
        %3095 = vmatpush1.bf16.msra.mxu0 %v3057
        %3096 = vmatprep.subr.bf16.mxu0 0
        %3097 = vmatpush1.bf16.msra.mxu0 %v3056
        %3098 = vmatprep.subr.bf16.mxu0 0
        %3099 = vmatpush1.bf16.msra.mxu0 %v3055
        %3100 = vmatprep.subr.bf16.mxu0 0
        %3101 = vmatpush1.bf16.msra.mxu0 %v3054
        %3102 = vmatprep.subr.bf16.mxu0 0
        %3103 = vmatpush2.bf16.msra.mxu0 %v3069
        %3104 = vmatprep.subr.bf16.mxu0 0
        %3105 = vmatpush2.bf16.msra.mxu0 %v3068
        %3106 = vmatprep.subr.bf16.mxu0 0
        %3107 = vmatpush2.bf16.msra.mxu0 %v3067
        %3108 = vmatprep.subr.bf16.mxu0 0
        %3109 = vmatpush2.bf16.msra.mxu0 %v3066
        %3110 = vmatprep.subr.bf16.mxu0 0
        %3111 = vmatpush2.bf16.msra.mxu0 %v3065
        %3112 = vmatprep.subr.bf16.mxu0 0
        %3113 = vmatpush2.bf16.msra.mxu0 %v3064
        %3114 = vmatprep.subr.bf16.mxu0 0
        %3115 = vmatpush2.bf16.msra.mxu0 %v3063
        %3116 = vmatprep.subr.bf16.mxu0 0
        %3117 = vmatpush2.bf16.msra.mxu0 %v3062
        %3118 = vmatprep.mubr.bf16.mxu0 %v2951
        %3119 = vmatmul.mubr.bf16.gmra.mxu0 %v2950
        %v3120 = vpop.f32.mrf.mxu0
        %v3121 = vadd.f32 %v2989, %v3120
        %v3122 = vpop.f32.mrf.mxu0
        %v3123 = vpop.f32.mrf.mxu0
        %v3124 = vadd.f32 %v2989, %v3123
        %v3125 = vpop.f32.mrf.mxu0
        %3126 = vmatprep.mubr.bf16.mxu0 %v2953
        %3127 = vmatmul.mubr.bf16.gmra.mxu0 %v2952
        %v3128 = vpop.f32.mrf.mxu0
        %v3129 = vadd.f32 %v2989, %v3128
        %v3130 = vpop.f32.mrf.mxu0
        %v3131 = vpop.f32.mrf.mxu0
        %v3132 = vadd.f32 %v2989, %v3131
        %v3133 = vpop.f32.mrf.mxu0
        %3134 = vdwg.mxu0
        %v3135 = vadd.f32 %v2687, %v3121
        %v3136 = vadd.f32 %v2688, %v3124
        %v3137 = vadd.f32 %v2689, %v3129
        %v3138 = vadd.f32 %v2690, %v3132
        %3139 = vst [vmem:[%s7] sm:$0xff] %v3135
        %3140 = vst [vmem:[%s7 + $0x8] sm:$0xff] %v3136
        %3141 = vst [vmem:[%s7 + $0x10] sm:$0xff] %v3137
        %3142 = vst [vmem:[%s7 + $0x18] sm:$0xff] %v3138
        // Predicated region
        $region57: #{transformer_forward.1} parent=47 // pred_check
          %p3143 = pneg %p211
        $region58: #{transformer_forward.1} parent=47 // pred_check_branch
          %3145 = sbr.rel (%p3143) target = $region60
        $region59: #{transformer_forward.1} parent=47 // pred_region
          _
        $region60: #{transformer_forward.1} parent=47 // pred_fallthru
          _
        // Predicated region
        $region61: #{transformer_forward.1} parent=47 // pred_check
          %p3146 = pneg %p211
        $region62: #{transformer_forward.1} parent=47 // pred_check_branch
          %3148 = sbr.rel (%p3146) target = $region64
        $region63: #{transformer_forward.1} parent=47 // pred_region
          _
        $region64: #{transformer_forward.1} parent=47 // pred_fallthru
          _
      $region48: #{transformer_forward.1} parent=5 // pred_fallthru
        _
      %p3149 = scmp.le.s32.totalorder 2, %s16
      // Predicated region
      $region65: #{transformer_forward.1} parent=5 // pred_check
        %p3150 = pneg %p3149
      $region66: #{transformer_forward.1} parent=5 // pred_check_branch
        %3152 = sbr.rel (%p3150) target = $region68
      $region67: #{transformer_forward.1} parent=5 // pred_region
        %s3153 = ssub.s32 %s16, 2
      $region68: #{transformer_forward.1} parent=5 // pred_fallthru
        _
    $region6: #{transformer_forward.1} parent=1 // loop_footer
      %s20 = sadd.s32 1, %s16
    $region7: #{transformer_forward.1} parent=1 // loop_footer_branch
      %15 = sbr.rel target = $region3
    $region8: #{transformer_forward.1} parent=1 // loop_exit
      _
    %3154 = vsyncpa [#allocation4], 1
    %s3155 = scalar_lea.sflag [#allocation4], 1
    %3156 = vsyncpa %s3155, 1

</llo_original>
